<compile_context>
chip_gen: v7x
topology: tpu7x:2x2x1
jax: 0.10.0
libtpu: 0.0.40
codegen_flags: <defaults>
</compile_context>

<pallas_src>
import functools

import jax
import jax.numpy as jnp
from jax.experimental import pallas as pl
from jax.experimental.pallas import tpu as pltpu


def _round_up(x, m):
    return (x + m - 1) // m * m


def _vmem_limit(nbytes):
    """Scoped-VMEM limit: estimated residency * margin, clamped to capacity."""
    try:
        cap = pltpu.get_tpu_info().vmem_capacity_bytes
    except Exception:
        cap = 64 << 20  # conservative (v7x per-core VMEM)
    limit = int(nbytes * 1.5) + (8 << 20)
    return max(32 << 20, min(limit, int(cap * 0.9)))


# ----------------------------------------------------------------------------
# In-kernel LayerNorm (PyTorch semantics: biased var, eps=1e-5), aware of the
# zero-padded lanes beyond the real embedding width `n_real`.
# ----------------------------------------------------------------------------
def _layernorm(x, w, b, n_real, lane_mask, eps=1e-5):
    # x: (T, Ep) f32 with lanes >= n_real guaranteed zero.
    mu = jnp.sum(x, axis=-1, keepdims=True) / n_real
    d = (x - mu) * lane_mask                       # zero out padded lanes
    var = jnp.sum(d * d, axis=-1, keepdims=True) / n_real
    return d * jax.lax.rsqrt(var + eps) * w + b    # padded lanes stay 0


# ----------------------------------------------------------------------------
# Transformer block kernel:  x = x + MHA(LN1(x));  x = x + FFN(LN2(x))
# ----------------------------------------------------------------------------
def _block_kernel(x_ref, mask_ref,
                  ln1w_ref, ln1b_ref,
                  wqkv_ref, wproj_ref, bproj_ref,
                  ln2w_ref, ln2b_ref,
                  w1_ref, b1_ref, w2_ref, b2_ref,
                  out_ref, acc_ref,
                  *, num_heads, embed_dim, head_pad, ffn_chunk):
    x = x_ref[0].astype(jnp.float32)    # (Tp, Ep) residual stream (bf16 in HBM)
    mask_row = mask_ref[0]              # (1, Tp)  f32; ~0 => masked key
    Tp, Ep = x.shape
    E = embed_dim
    H = num_heads
    hp = head_pad                       # per-head lane-aligned width (>= hs)
    scale = E ** -0.5                   # reference scales by full embed_dim (C)

    lane_mask = (jax.lax.broadcasted_iota(jnp.int32, (1, Ep), 1) < E).astype(jnp.float32)
    # additive key mask, finite (avoids NaN for fully-masked query rows)
    bias = jnp.where(mask_row > 0.5, 0.0, -1e30)            # (1, Tp)

    # ---- multi-head self-attention on LN1(x) ----
    xn = _layernorm(x, ln1w_ref[...], ln1b_ref[...], E, lane_mask)
    xn16 = xn.astype(jnp.bfloat16)
    # one full-width fused QKV projection: (Tp, Ep) @ (Ep, 3*H*hp), lane-aligned
    qkv = jnp.dot(xn16, wqkv_ref[...],
                  preferred_element_type=jnp.float32).astype(jnp.bfloat16)

    acc_ref[...] = jnp.zeros_like(acc_ref)
    for h in range(H):                  # static, 128-lane-aligned slices
        q_h = qkv[:, h * hp:(h + 1) * hp]
        k_h = qkv[:, (H + h) * hp:(H + h + 1) * hp]
        v_h = qkv[:, (2 * H + h) * hp:(2 * H + h + 1) * hp]
        # q @ k^T without materializing a transpose
        wei = jax.lax.dot_general(q_h, k_h, (((1,), (1,)), ((), ())),
                                  preferred_element_type=jnp.float32)   # (Tp, Tp)
        wei = wei * scale + bias
        wei = wei - jnp.max(wei, axis=-1, keepdims=True)
        p = jnp.exp(wei)
        p = p * pl.reciprocal(jnp.sum(p, axis=-1, keepdims=True), approx=True)
        head_out = jnp.dot(p.astype(jnp.bfloat16), v_h,
                           preferred_element_type=jnp.float32).astype(jnp.bfloat16)
        # fold the output projection into the head loop (no concat needed)
        acc_ref[...] += jnp.dot(head_out, wproj_ref[h * hp:(h + 1) * hp, :],
                                preferred_element_type=jnp.float32)
    x1 = x + acc_ref[...] + bproj_ref[...]                              # residual 1

    # ---- feed-forward on LN2(x1), hidden dim in 128-aligned chunks ----
    xn2 = _layernorm(x1, ln2w_ref[...], ln2b_ref[...], E, lane_mask).astype(jnp.bfloat16)
    acc_ref[...] = jnp.zeros_like(acc_ref)
    H4p = w1_ref.shape[1]
    for c in range(0, H4p, ffn_chunk):
        h1 = jnp.dot(xn2, w1_ref[:, c:c + ffn_chunk],
                     preferred_element_type=jnp.float32) + b1_ref[:, c:c + ffn_chunk]
        h1 = jnp.maximum(h1, 0.0).astype(jnp.bfloat16)
        acc_ref[...] += jnp.dot(h1, w2_ref[c:c + ffn_chunk, :],
                                preferred_element_type=jnp.float32)
    out_ref[0] = (x1 + acc_ref[...] + b2_ref[...]).astype(out_ref.dtype)  # residual 2


def run_block(x, mask3, p, *, num_heads, embed_dim, head_pad):
    B, Tp, Ep = x.shape
    H4p = p["w1"].shape[1]
    ffn_chunk = max(c for c in (512, 256, 128) if H4p % c == 0)
    kernel = functools.partial(_block_kernel, num_heads=num_heads, embed_dim=embed_dim,
                               head_pad=head_pad, ffn_chunk=ffn_chunk)

    def const(a):  # grid-invariant weight: single-buffered
        nd = a.ndim
        return pl.BlockSpec(a.shape, lambda b, _nd=nd: (0,) * _nd,
                            pipeline_mode=pl.Buffered(1))

    weights = [p["ln1_w"], p["ln1_b"], p["wqkv"], p["wproj"], p["bproj"],
               p["ln2_w"], p["ln2_b"], p["w1"], p["b1"], p["w2"], p["b2"]]
    in_specs = [pl.BlockSpec((1, Tp, Ep), lambda b: (b, 0, 0)),      # x (bf16)
                pl.BlockSpec((1, 1, Tp), lambda b: (b, 0, 0))        # mask
                ] + [const(w) for w in weights]

    wbytes = sum(int(w.size) * w.dtype.itemsize for w in weights)
    qkv_w = 3 * num_heads * head_pad
    est = (2 * Tp * Ep * 2 * 2            # x in + out, double-buffered bf16
           + wbytes                       # single-buffered constants
           + Tp * Ep * 4                  # f32 accumulator scratch
           + Tp * qkv_w * 6               # qkv f32 + bf16 transient
           + 2 * Tp * Tp * 4              # score transients
           + 4 * Tp * Ep * 4)             # f32 x/xn/x1 temporaries
    flops = (2 * Tp * Ep * qkv_w                        # fused QKV proj
             + num_heads * 4 * Tp * Tp * head_pad       # QK^T + P@V
             + 2 * Tp * num_heads * head_pad * Ep       # output proj
             + 4 * Tp * Ep * H4p)                       # FFN
    cost = pl.CostEstimate(flops=B * flops,
                           transcendentals=B * num_heads * Tp * Tp,
                           bytes_accessed=B * (4 * Tp * Ep) + wbytes)

    return pl.pallas_call(
        kernel,
        out_shape=jax.ShapeDtypeStruct((B, Tp, Ep), x.dtype),
        grid=(B,),
        in_specs=in_specs,
        out_specs=pl.BlockSpec((1, Tp, Ep), lambda b: (b, 0, 0)),
        scratch_shapes=[pltpu.VMEM((Tp, Ep), jnp.float32)],
        input_output_aliases={0: 0},
        compiler_params=pltpu.CompilerParams(
            dimension_semantics=("parallel",),
            vmem_limit_bytes=_vmem_limit(est)),
        cost_estimate=cost,
    )(x, mask3, *weights)


# ----------------------------------------------------------------------------
# Final LayerNorm (applied once, hoisted out of the vocab-tiled LM head).
# ----------------------------------------------------------------------------
def _lnf_kernel(x_ref, lnw_ref, lnb_ref, out_ref, *, embed_dim):
    x = x_ref[0].astype(jnp.float32)
    Ep = x.shape[-1]
    lane_mask = (jax.lax.broadcasted_iota(jnp.int32, (1, Ep), 1)
                 < embed_dim).astype(jnp.float32)
    out_ref[0] = _layernorm(x, lnw_ref[...], lnb_ref[...], embed_dim,
                            lane_mask).astype(out_ref.dtype)


def run_final_ln(x, lnw, lnb, *, embed_dim):
    B, Tp, Ep = x.shape
    kernel = functools.partial(_lnf_kernel, embed_dim=embed_dim)
    const = lambda a: pl.BlockSpec(a.shape, lambda b: (0, 0),
                                   pipeline_mode=pl.Buffered(1))
    return pl.pallas_call(
        kernel,
        out_shape=jax.ShapeDtypeStruct((B, Tp, Ep), jnp.bfloat16),
        grid=(B,),
        in_specs=[pl.BlockSpec((1, Tp, Ep), lambda b: (b, 0, 0)),
                  const(lnw), const(lnb)],
        out_specs=pl.BlockSpec((1, Tp, Ep), lambda b: (b, 0, 0)),
        compiler_params=pltpu.CompilerParams(
            dimension_semantics=("parallel",),
            vmem_limit_bytes=_vmem_limit(8 * Tp * Ep + 2 * Ep * 4)),
    )(x, lnw, lnb)


# ----------------------------------------------------------------------------
# LM head:  logits = h @ W + b, tiled over the vocab dimension (lane-dense).
# ----------------------------------------------------------------------------
def _head_kernel(h_ref, w_ref, b_ref, out_ref):
    out_ref[0] = jnp.dot(h_ref[0], w_ref[...],
                         preferred_element_type=jnp.float32) + b_ref[...]


def run_lm_head(h, w, b, *, tile_v):
    B, Tp, Ep = h.shape
    Vp = w.shape[1]
    nv = Vp // tile_v
    est = (2 * Tp * Ep * 2 + 2 * Ep * tile_v * 2 + 2 * Tp * tile_v * 4
           + 2 * tile_v * 4)
    cost = pl.CostEstimate(flops=2 * B * Tp * Ep * Vp, transcendentals=0,
                           bytes_accessed=B * Tp * Ep * 2 + Ep * Vp * 2
                           + B * Tp * Vp * 4)
    return pl.pallas_call(
        _head_kernel,
        out_shape=jax.ShapeDtypeStruct((B, Tp, Vp), jnp.float32),
        grid=(B, nv),
        in_specs=[pl.BlockSpec((1, Tp, Ep), lambda bb, j: (bb, 0, 0)),
                  pl.BlockSpec((Ep, tile_v), lambda bb, j: (0, j)),
                  pl.BlockSpec((1, tile_v), lambda bb, j: (0, j))],
        out_specs=pl.BlockSpec((1, Tp, tile_v), lambda bb, j: (bb, 0, j)),
        compiler_params=pltpu.CompilerParams(
            dimension_semantics=("parallel", "parallel"),
            vmem_limit_bytes=_vmem_limit(est)),
        cost_estimate=cost,
    )(h, w, b)


# ----------------------------------------------------------------------------
# Parameter init (mirrors weights_init: xavier_uniform / zeros / ones), with
# lane padding (E, V -> x128; per-head width -> x128) and bf16 matmul weights.
# ----------------------------------------------------------------------------
def _xavier(key, shape):
    bound = (6.0 / (shape[0] + shape[1])) ** 0.5
    return jax.random.uniform(key, shape, jnp.float32, -bound, bound)


def init_cmgpt_params(key, vocab_size, embed_dim, block_size, n_layer, n_head):
    E, V = embed_dim, vocab_size
    hs = E // n_head
    hp = _round_up(hs, 128)          # lane-aligned per-head width
    Ep = _round_up(E, 128)
    Vp = _round_up(V, 128)
    H4 = 4 * E
    H4p = _round_up(H4, 128)

    n_keys = 3 + n_layer * (3 * n_head + 3)
    keys = iter(jax.random.split(key, n_keys))

    def pad2(a, rows, cols, dtype=jnp.float32):
        return jnp.pad(a, ((0, rows - a.shape[0]), (0, cols - a.shape[1]))).astype(dtype)

    ln_w = lambda: pad2(jnp.ones((1, E), jnp.float32), 1, Ep)   # padded lanes -> 0
    ln_b = lambda: jnp.zeros((1, Ep), jnp.float32)

    params = {
        "tok_emb": pad2(_xavier(next(keys), (V, E)), V, Ep),
        "pos_emb": pad2(_xavier(next(keys), (block_size, E)), block_size, Ep),
        "lnf_w": ln_w(), "lnf_b": ln_b(),
        "lm_w": pad2(_xavier(next(keys), (E, V)), Ep, Vp, jnp.bfloat16),
        "lm_b": jnp.zeros((1, Vp), jnp.float32),
        "head_pad": hp,
        "blocks": [],
    }
    for _ in range(n_layer):
        # per-head Linear(E, hs) weights (no bias), each head padded to hp lanes,
        # packed as [Q heads | K heads | V heads] -> fused (E, 3*H*hp)
        q_parts, k_parts, v_parts = [], [], []
        for _h in range(n_head):
            q_parts.append(pad2(_xavier(next(keys), (E, hs)), E, hp))
            k_parts.append(pad2(_xavier(next(keys), (E, hs)), E, hp))
            v_parts.append(pad2(_xavier(next(keys), (E, hs)), E, hp))
        wqkv = jnp.concatenate([jnp.concatenate(q_parts, 1),
                                jnp.concatenate(k_parts, 1),
                                jnp.concatenate(v_parts, 1)], axis=1)
        wqkv = pad2(wqkv, Ep, wqkv.shape[1], jnp.bfloat16)

        # output projection rows re-packed to the lane-aligned head layout
        proj = _xavier(next(keys), (E, E))
        proj_parts = [pad2(proj[h * hs:(h + 1) * hs, :], hp, E) for h in range(n_head)]
        wproj = pad2(jnp.concatenate(proj_parts, axis=0), n_head * hp, Ep, jnp.bfloat16)

        blk = {
            "ln1_w": ln_w(), "ln1_b": ln_b(),
            "wqkv": wqkv,                                        # (Ep, 3*H*hp) bf16
            "wproj": wproj,                                      # (H*hp, Ep)   bf16
            "bproj": jnp.zeros((1, Ep), jnp.float32),
            "ln2_w": ln_w(), "ln2_b": ln_b(),
            "w1": pad2(_xavier(next(keys), (E, H4)), Ep, H4p, jnp.bfloat16),
            "b1": jnp.zeros((1, H4p), jnp.float32),
            "w2": pad2(_xavier(next(keys), (H4, E)), H4p, Ep, jnp.bfloat16),
            "b2": jnp.zeros((1, Ep), jnp.float32),
        }
        params["blocks"].append(blk)
    return params


# ----------------------------------------------------------------------------
# CMGPT forward (labels=None path -> logits)
# ----------------------------------------------------------------------------
def cmgpt_forward(params, tokens, attention_mask, *, block_size, n_head,
                  embed_dim, vocab_size):
    tokens = tokens[..., :block_size]
    attention_mask = attention_mask[..., :block_size].astype(jnp.float32)
    B, T = tokens.shape
    Tp = _round_up(max(T, 128), 128)     # lane-aligned sequence padding

    # pad sequence (padded keys are masked out; padded query rows sliced off)
    tokens_p = jnp.pad(tokens, ((0, 0), (0, Tp - T)))
    mask_p = jnp.pad(attention_mask, ((0, 0), (0, Tp - T)))

    tok_e = jnp.take(params["tok_emb"], tokens_p, axis=0)            # (B, Tp, Ep)
    pos_e = jnp.pad(params["pos_emb"][:T], ((0, Tp - T), (0, 0)))[None, :, :]
    x = (tok_e + pos_e).astype(jnp.bfloat16)       # bf16 residual stream, padded lanes 0

    mask3 = mask_p[:, None, :]                                       # (B, 1, Tp)
    hp = params["head_pad"]
    for blk in params["blocks"]:
        x = run_block(x, mask3, blk, num_heads=n_head, embed_dim=embed_dim,
                      head_pad=hp)

    h = run_final_ln(x, params["lnf_w"], params["lnf_b"], embed_dim=embed_dim)

    Vp = params["lm_w"].shape[1]
    tile_v = max(t for t in (2048, 1024, 512, 256, 128) if Vp % t == 0)
    logits = run_lm_head(h, params["lm_w"], params["lm_b"], tile_v=tile_v)
    return logits[:, :T, :vocab_size]


if __name__ == "__main__":
    vocab_size, embed_dim, block_size, n_layer, n_head = 64, 32, 16, 2, 4
    B, T = 2, 8

    key = jax.random.PRNGKey(0)
    k_par, k_tok = jax.random.split(key)
    params = init_cmgpt_params(k_par, vocab_size, embed_dim, block_size, n_layer, n_head)

    tokens = jax.random.randint(k_tok, (B, T), 0, vocab_size, dtype=jnp.int32)
    attention_mask = jnp.ones((B, T), jnp.float32).at[1, -3:].set(0.0)

    logits = cmgpt_forward(params, tokens, attention_mask, block_size=block_size,
                           n_head=n_head, embed_dim=embed_dim, vocab_size=vocab_size)
    logits = jax.block_until_ready(logits)
    assert logits.shape == (B, T, vocab_size), logits.shape
    assert bool(jnp.all(jnp.isfinite(logits)))
    print("KERNEL_OK")
</pallas_src>

<mosaic_0001>
module attributes {stable_mosaic.version = 11 : i64} {
  func.func @_block_kernel(%arg0: i32, %arg1: memref<1x128x128xbf16, #tpu.memory_space<vmem>>, %arg2: memref<1x1x128xf32, #tpu.memory_space<vmem>>, %arg3: memref<1x128xf32, #tpu.memory_space<vmem>>, %arg4: memref<1x128xf32, #tpu.memory_space<vmem>>, %arg5: memref<128x1536xbf16, #tpu.memory_space<vmem>>, %arg6: memref<512x128xbf16, #tpu.memory_space<vmem>>, %arg7: memref<1x128xf32, #tpu.memory_space<vmem>>, %arg8: memref<1x128xf32, #tpu.memory_space<vmem>>, %arg9: memref<1x128xf32, #tpu.memory_space<vmem>>, %arg10: memref<128x128xbf16, #tpu.memory_space<vmem>>, %arg11: memref<1x128xf32, #tpu.memory_space<vmem>>, %arg12: memref<128x128xbf16, #tpu.memory_space<vmem>>, %arg13: memref<1x128xf32, #tpu.memory_space<vmem>>, %arg14: memref<1x128x128xbf16, #tpu.memory_space<vmem>>, %arg15: memref<128x128xf32, #tpu.memory_space<vmem>>) attributes {dimension_semantics = [#tpu.dimension_semantics<parallel>], iteration_bounds = array<i64: 2>, scalar_prefetch = 0 : i64, scratch_operands = 1 : i64, tpu.core_type = #tpu.core_type<tc>, window_params = [{transform_indices = @transform_0, window_bounds = array<i64: 1, 128, 128>}, {transform_indices = @transform_1, window_bounds = array<i64: 1, 1, 128>}, {pipeline_mode = #tpu.pipeline_mode<synchronous>, transform_indices = @transform_2, window_bounds = array<i64: 1, 128>}, {pipeline_mode = #tpu.pipeline_mode<synchronous>, transform_indices = @transform_3, window_bounds = array<i64: 1, 128>}, {pipeline_mode = #tpu.pipeline_mode<synchronous>, transform_indices = @transform_4, window_bounds = array<i64: 128, 1536>}, {pipeline_mode = #tpu.pipeline_mode<synchronous>, transform_indices = @transform_5, window_bounds = array<i64: 512, 128>}, {pipeline_mode = #tpu.pipeline_mode<synchronous>, transform_indices = @transform_6, window_bounds = array<i64: 1, 128>}, {pipeline_mode = #tpu.pipeline_mode<synchronous>, transform_indices = @transform_7, window_bounds = array<i64: 1, 128>}, {pipeline_mode = #tpu.pipeline_mode<synchronous>, transform_indices = @transform_8, window_bounds = array<i64: 1, 128>}, {pipeline_mode = #tpu.pipeline_mode<synchronous>, transform_indices = @transform_9, window_bounds = array<i64: 128, 128>}, {pipeline_mode = #tpu.pipeline_mode<synchronous>, transform_indices = @transform_10, window_bounds = array<i64: 1, 128>}, {pipeline_mode = #tpu.pipeline_mode<synchronous>, transform_indices = @transform_11, window_bounds = array<i64: 128, 128>}, {pipeline_mode = #tpu.pipeline_mode<synchronous>, transform_indices = @transform_12, window_bounds = array<i64: 1, 128>}, {transform_indices = @transform_13, window_bounds = array<i64: 1, 128, 128>}]} {
    %c0 = arith.constant 0 : index
    %c0_0 = arith.constant 0 : index
    %c0_1 = arith.constant 0 : index
    %0 = vector.load %arg1[%c0, %c0_0, %c0_1] : memref<1x128x128xbf16, #tpu.memory_space<vmem>>, vector<1x128x128xbf16>
    %1 = vector.shape_cast %0 : vector<1x128x128xbf16> to vector<128x128xbf16>
    %2 = arith.extf %1 : vector<128x128xbf16> to vector<128x128xf32>
    %c0_2 = arith.constant 0 : index
    %c0_3 = arith.constant 0 : index
    %c0_4 = arith.constant 0 : index
    %3 = vector.load %arg2[%c0_2, %c0_3, %c0_4] : memref<1x1x128xf32, #tpu.memory_space<vmem>>, vector<1x1x128xf32>
    %4 = vector.shape_cast %3 : vector<1x1x128xf32> to vector<1x128xf32>
    %5 = tpu.iota {dimensions = array<i32: 1>} : vector<1x128xi32>
    %c32_i32 = arith.constant 32 : i32
    %6 = vector.broadcast %c32_i32 : i32 to vector<1x128xi32>
    %7 = arith.cmpi slt, %5, %6 : vector<1x128xi32>
    %8 = arith.extui %7 : vector<1x128xi1> to vector<1x128xi32>
    %9 = arith.sitofp %8 : vector<1x128xi32> to vector<1x128xf32>
    %cst = arith.constant 5.000000e-01 : f32
    %10 = vector.broadcast %cst : f32 to vector<1x128xf32>
    %11 = arith.cmpf ogt, %4, %10 : vector<1x128xf32>
    %cst_5 = arith.constant 0.000000e+00 : f32
    %cst_6 = arith.constant -1.000000e+30 : f32
    %12 = vector.broadcast %cst_5 : f32 to vector<1x128xf32>
    %13 = vector.broadcast %cst_6 : f32 to vector<1x128xf32>
    %14 = arith.select %11, %12, %13 : vector<1x128xi1>, vector<1x128xf32>
    %c0_7 = arith.constant 0 : index
    %c0_8 = arith.constant 0 : index
    %15 = vector.load %arg3[%c0_7, %c0_8] : memref<1x128xf32, #tpu.memory_space<vmem>>, vector<1x128xf32>
    %c0_9 = arith.constant 0 : index
    %c0_10 = arith.constant 0 : index
    %16 = vector.load %arg4[%c0_9, %c0_10] : memref<1x128xf32, #tpu.memory_space<vmem>>, vector<1x128xf32>
    %cst_11 = arith.constant dense<0.000000e+00> : vector<128xf32>
    %17 = vector.multi_reduction <add>, %2, %cst_11 [1] : vector<128x128xf32> to vector<128xf32>
    %18 = vector.shape_cast %17 : vector<128xf32> to vector<128x1xf32>
    %cst_12 = arith.constant 3.200000e+01 : f32
    %19 = vector.broadcast %cst_12 : f32 to vector<128x1xf32>
    %20 = arith.divf %18, %19 : vector<128x1xf32>
    %21 = vector.broadcast %20 : vector<128x1xf32> to vector<128x128xf32>
    %22 = arith.subf %2, %21 : vector<128x128xf32>
    %23 = vector.broadcast %9 : vector<1x128xf32> to vector<128x128xf32>
    %24 = arith.mulf %22, %23 : vector<128x128xf32>
    %25 = arith.mulf %24, %24 : vector<128x128xf32>
    %cst_13 = arith.constant dense<0.000000e+00> : vector<128xf32>
    %26 = vector.multi_reduction <add>, %25, %cst_13 [1] : vector<128x128xf32> to vector<128xf32>
    %27 = vector.shape_cast %26 : vector<128xf32> to vector<128x1xf32>
    %cst_14 = arith.constant 3.200000e+01 : f32
    %28 = vector.broadcast %cst_14 : f32 to vector<128x1xf32>
    %29 = arith.divf %27, %28 : vector<128x1xf32>
    %cst_15 = arith.constant 9.99999974E-6 : f32
    %30 = vector.broadcast %cst_15 : f32 to vector<128x1xf32>
    %31 = arith.addf %29, %30 : vector<128x1xf32>
    %32 = math.rsqrt %31 : vector<128x1xf32>
    %33 = vector.broadcast %32 : vector<128x1xf32> to vector<128x128xf32>
    %34 = arith.mulf %24, %33 : vector<128x128xf32>
    %35 = vector.broadcast %15 : vector<1x128xf32> to vector<128x128xf32>
    %36 = arith.mulf %34, %35 : vector<128x128xf32>
    %37 = vector.broadcast %16 : vector<1x128xf32> to vector<128x128xf32>
    %38 = arith.addf %36, %37 : vector<128x128xf32>
    %39 = arith.truncf %38 : vector<128x128xf32> to vector<128x128xbf16>
    %c0_16 = arith.constant 0 : index
    %c0_17 = arith.constant 0 : index
    %40 = vector.load %arg5[%c0_16, %c0_17] : memref<128x1536xbf16, #tpu.memory_space<vmem>>, vector<128x1536xbf16>
    %cst_18 = arith.constant dense<0.000000e+00> : vector<128x1536xf32>
    %41 = tpu.matmul %39, %40, %cst_18 {dimension_numbers = #tpu.dot_dimension_numbers<[1], [0], [0], [1], [0, 0, 1, 1], [], []>} : vector<128x128xbf16>, vector<128x1536xbf16>, vector<128x1536xf32> -> vector<128x1536xf32>
    %42 = arith.truncf %41 : vector<128x1536xf32> to vector<128x1536xbf16>
    %cst_19 = arith.constant 0.000000e+00 : f32
    %43 = vector.broadcast %cst_19 : f32 to vector<128x128xf32>
    %c0_20 = arith.constant 0 : index
    %c0_21 = arith.constant 0 : index
    %44 = vector.load %arg15[%c0_20, %c0_21] : memref<128x128xf32, #tpu.memory_space<vmem>>, vector<128x128xf32>
    tpu.vector_store %arg15[%c0_20, %c0_21], %43 {strides = array<i32>} : memref<128x128xf32, #tpu.memory_space<vmem>>, vector<128x128xf32>,
    %45 = vector.extract_strided_slice %42 {offsets = [0, 0], sizes = [128, 128], strides = [1, 1]} : vector<128x1536xbf16> to vector<128x128xbf16>
    %46 = vector.extract_strided_slice %42 {offsets = [0, 512], sizes = [128, 128], strides = [1, 1]} : vector<128x1536xbf16> to vector<128x128xbf16>
    %47 = vector.extract_strided_slice %42 {offsets = [0, 1024], sizes = [128, 128], strides = [1, 1]} : vector<128x1536xbf16> to vector<128x128xbf16>
    %cst_22 = arith.constant dense<0.000000e+00> : vector<128x128xf32>
    %48 = tpu.matmul %45, %46, %cst_22 {dimension_numbers = #tpu.dot_dimension_numbers<[1], [1], [0], [0], [0, 0, 1, 0], [], []>} : vector<128x128xbf16>, vector<128x128xbf16>, vector<128x128xf32> -> vector<128x128xf32>
    %cst_23 = arith.constant 0.176776692 : f32
    %49 = vector.broadcast %cst_23 : f32 to vector<128x128xf32>
    %50 = arith.mulf %48, %49 : vector<128x128xf32>
    %51 = vector.broadcast %14 : vector<1x128xf32> to vector<128x128xf32>
    %52 = arith.addf %50, %51 : vector<128x128xf32>
    %cst_24 = arith.constant dense<0xFF800000> : vector<128xf32>
    %53 = vector.multi_reduction <maximumf>, %52, %cst_24 [1] : vector<128x128xf32> to vector<128xf32>
    %54 = vector.shape_cast %53 : vector<128xf32> to vector<128x1xf32>
    %55 = vector.broadcast %54 : vector<128x1xf32> to vector<128x128xf32>
    %56 = arith.subf %52, %55 : vector<128x128xf32>
    %57 = math.exp %56 : vector<128x128xf32>
    %cst_25 = arith.constant dense<0.000000e+00> : vector<128xf32>
    %58 = vector.multi_reduction <add>, %57, %cst_25 [1] : vector<128x128xf32> to vector<128xf32>
    %59 = vector.shape_cast %58 : vector<128xf32> to vector<128x1xf32>
    %60 = tpu.reciprocal %59 {approx = true} : vector<128x1xf32> -> vector<128x1xf32>
    %61 = vector.broadcast %60 : vector<128x1xf32> to vector<128x128xf32>
    %62 = arith.mulf %57, %61 : vector<128x128xf32>
    %63 = arith.truncf %62 : vector<128x128xf32> to vector<128x128xbf16>
    %cst_26 = arith.constant dense<0.000000e+00> : vector<128x128xf32>
    %64 = tpu.matmul %63, %47, %cst_26 {dimension_numbers = #tpu.dot_dimension_numbers<[1], [0], [0], [1], [0, 0, 1, 1], [], []>} : vector<128x128xbf16>, vector<128x128xbf16>, vector<128x128xf32> -> vector<128x128xf32>
    %65 = arith.truncf %64 : vector<128x128xf32> to vector<128x128xbf16>
    %c0_27 = arith.constant 0 : index
    %c0_28 = arith.constant 0 : index
    %66 = vector.load %arg15[%c0_27, %c0_28] : memref<128x128xf32, #tpu.memory_space<vmem>>, vector<128x128xf32>
    %c0_29 = arith.constant 0 : index
    %c0_30 = arith.constant 0 : index
    %67 = vector.load %arg6[%c0_29, %c0_30] : memref<512x128xbf16, #tpu.memory_space<vmem>>, vector<128x128xbf16>
    %cst_31 = arith.constant dense<0.000000e+00> : vector<128x128xf32>
    %68 = tpu.matmul %65, %67, %cst_31 {dimension_numbers = #tpu.dot_dimension_numbers<[1], [0], [0], [1], [0, 0, 1, 1], [], []>} : vector<128x128xbf16>, vector<128x128xbf16>, vector<128x128xf32> -> vector<128x128xf32>
    %69 = arith.addf %66, %68 : vector<128x128xf32>
    %c0_32 = arith.constant 0 : index
    %c0_33 = arith.constant 0 : index
    %70 = vector.load %arg15[%c0_32, %c0_33] : memref<128x128xf32, #tpu.memory_space<vmem>>, vector<128x128xf32>
    tpu.vector_store %arg15[%c0_32, %c0_33], %69 {strides = array<i32>} : memref<128x128xf32, #tpu.memory_space<vmem>>, vector<128x128xf32>,
    %71 = vector.extract_strided_slice %42 {offsets = [0, 128], sizes = [128, 128], strides = [1, 1]} : vector<128x1536xbf16> to vector<128x128xbf16>
    %72 = vector.extract_strided_slice %42 {offsets = [0, 640], sizes = [128, 128], strides = [1, 1]} : vector<128x1536xbf16> to vector<128x128xbf16>
    %73 = vector.extract_strided_slice %42 {offsets = [0, 1152], sizes = [128, 128], strides = [1, 1]} : vector<128x1536xbf16> to vector<128x128xbf16>
    %cst_34 = arith.constant dense<0.000000e+00> : vector<128x128xf32>
    %74 = tpu.matmul %71, %72, %cst_34 {dimension_numbers = #tpu.dot_dimension_numbers<[1], [1], [0], [0], [0, 0, 1, 0], [], []>} : vector<128x128xbf16>, vector<128x128xbf16>, vector<128x128xf32> -> vector<128x128xf32>
    %cst_35 = arith.constant 0.176776692 : f32
    %75 = vector.broadcast %cst_35 : f32 to vector<128x128xf32>
    %76 = arith.mulf %74, %75 : vector<128x128xf32>
    %77 = vector.broadcast %14 : vector<1x128xf32> to vector<128x128xf32>
    %78 = arith.addf %76, %77 : vector<128x128xf32>
    %cst_36 = arith.constant dense<0xFF800000> : vector<128xf32>
    %79 = vector.multi_reduction <maximumf>, %78, %cst_36 [1] : vector<128x128xf32> to vector<128xf32>
    %80 = vector.shape_cast %79 : vector<128xf32> to vector<128x1xf32>
    %81 = vector.broadcast %80 : vector<128x1xf32> to vector<128x128xf32>
    %82 = arith.subf %78, %81 : vector<128x128xf32>
    %83 = math.exp %82 : vector<128x128xf32>
    %cst_37 = arith.constant dense<0.000000e+00> : vector<128xf32>
    %84 = vector.multi_reduction <add>, %83, %cst_37 [1] : vector<128x128xf32> to vector<128xf32>
    %85 = vector.shape_cast %84 : vector<128xf32> to vector<128x1xf32>
    %86 = tpu.reciprocal %85 {approx = true} : vector<128x1xf32> -> vector<128x1xf32>
    %87 = vector.broadcast %86 : vector<128x1xf32> to vector<128x128xf32>
    %88 = arith.mulf %83, %87 : vector<128x128xf32>
    %89 = arith.truncf %88 : vector<128x128xf32> to vector<128x128xbf16>
    %cst_38 = arith.constant dense<0.000000e+00> : vector<128x128xf32>
    %90 = tpu.matmul %89, %73, %cst_38 {dimension_numbers = #tpu.dot_dimension_numbers<[1], [0], [0], [1], [0, 0, 1, 1], [], []>} : vector<128x128xbf16>, vector<128x128xbf16>, vector<128x128xf32> -> vector<128x128xf32>
    %91 = arith.truncf %90 : vector<128x128xf32> to vector<128x128xbf16>
    %c0_39 = arith.constant 0 : index
    %c0_40 = arith.constant 0 : index
    %92 = vector.load %arg15[%c0_39, %c0_40] : memref<128x128xf32, #tpu.memory_space<vmem>>, vector<128x128xf32>
    %c128 = arith.constant 128 : index
    %c0_41 = arith.constant 0 : index
    %93 = vector.load %arg6[%c128, %c0_41] : memref<512x128xbf16, #tpu.memory_space<vmem>>, vector<128x128xbf16>
    %cst_42 = arith.constant dense<0.000000e+00> : vector<128x128xf32>
    %94 = tpu.matmul %91, %93, %cst_42 {dimension_numbers = #tpu.dot_dimension_numbers<[1], [0], [0], [1], [0, 0, 1, 1], [], []>} : vector<128x128xbf16>, vector<128x128xbf16>, vector<128x128xf32> -> vector<128x128xf32>
    %95 = arith.addf %92, %94 : vector<128x128xf32>
    %c0_43 = arith.constant 0 : index
    %c0_44 = arith.constant 0 : index
    %96 = vector.load %arg15[%c0_43, %c0_44] : memref<128x128xf32, #tpu.memory_space<vmem>>, vector<128x128xf32>
    tpu.vector_store %arg15[%c0_43, %c0_44], %95 {strides = array<i32>} : memref<128x128xf32, #tpu.memory_space<vmem>>, vector<128x128xf32>,
    %97 = vector.extract_strided_slice %42 {offsets = [0, 256], sizes = [128, 128], strides = [1, 1]} : vector<128x1536xbf16> to vector<128x128xbf16>
    %98 = vector.extract_strided_slice %42 {offsets = [0, 768], sizes = [128, 128], strides = [1, 1]} : vector<128x1536xbf16> to vector<128x128xbf16>
    %99 = vector.extract_strided_slice %42 {offsets = [0, 1280], sizes = [128, 128], strides = [1, 1]} : vector<128x1536xbf16> to vector<128x128xbf16>
    %cst_45 = arith.constant dense<0.000000e+00> : vector<128x128xf32>
    %100 = tpu.matmul %97, %98, %cst_45 {dimension_numbers = #tpu.dot_dimension_numbers<[1], [1], [0], [0], [0, 0, 1, 0], [], []>} : vector<128x128xbf16>, vector<128x128xbf16>, vector<128x128xf32> -> vector<128x128xf32>
    %cst_46 = arith.constant 0.176776692 : f32
    %101 = vector.broadcast %cst_46 : f32 to vector<128x128xf32>
    %102 = arith.mulf %100, %101 : vector<128x128xf32>
    %103 = vector.broadcast %14 : vector<1x128xf32> to vector<128x128xf32>
    %104 = arith.addf %102, %103 : vector<128x128xf32>
    %cst_47 = arith.constant dense<0xFF800000> : vector<128xf32>
    %105 = vector.multi_reduction <maximumf>, %104, %cst_47 [1] : vector<128x128xf32> to vector<128xf32>
    %106 = vector.shape_cast %105 : vector<128xf32> to vector<128x1xf32>
    %107 = vector.broadcast %106 : vector<128x1xf32> to vector<128x128xf32>
    %108 = arith.subf %104, %107 : vector<128x128xf32>
    %109 = math.exp %108 : vector<128x128xf32>
    %cst_48 = arith.constant dense<0.000000e+00> : vector<128xf32>
    %110 = vector.multi_reduction <add>, %109, %cst_48 [1] : vector<128x128xf32> to vector<128xf32>
    %111 = vector.shape_cast %110 : vector<128xf32> to vector<128x1xf32>
    %112 = tpu.reciprocal %111 {approx = true} : vector<128x1xf32> -> vector<128x1xf32>
    %113 = vector.broadcast %112 : vector<128x1xf32> to vector<128x128xf32>
    %114 = arith.mulf %109, %113 : vector<128x128xf32>
    %115 = arith.truncf %114 : vector<128x128xf32> to vector<128x128xbf16>
    %cst_49 = arith.constant dense<0.000000e+00> : vector<128x128xf32>
    %116 = tpu.matmul %115, %99, %cst_49 {dimension_numbers = #tpu.dot_dimension_numbers<[1], [0], [0], [1], [0, 0, 1, 1], [], []>} : vector<128x128xbf16>, vector<128x128xbf16>, vector<128x128xf32> -> vector<128x128xf32>
    %117 = arith.truncf %116 : vector<128x128xf32> to vector<128x128xbf16>
    %c0_50 = arith.constant 0 : index
    %c0_51 = arith.constant 0 : index
    %118 = vector.load %arg15[%c0_50, %c0_51] : memref<128x128xf32, #tpu.memory_space<vmem>>, vector<128x128xf32>
    %c256 = arith.constant 256 : index
    %c0_52 = arith.constant 0 : index
    %119 = vector.load %arg6[%c256, %c0_52] : memref<512x128xbf16, #tpu.memory_space<vmem>>, vector<128x128xbf16>
    %cst_53 = arith.constant dense<0.000000e+00> : vector<128x128xf32>
    %120 = tpu.matmul %117, %119, %cst_53 {dimension_numbers = #tpu.dot_dimension_numbers<[1], [0], [0], [1], [0, 0, 1, 1], [], []>} : vector<128x128xbf16>, vector<128x128xbf16>, vector<128x128xf32> -> vector<128x128xf32>
    %121 = arith.addf %118, %120 : vector<128x128xf32>
    %c0_54 = arith.constant 0 : index
    %c0_55 = arith.constant 0 : index
    %122 = vector.load %arg15[%c0_54, %c0_55] : memref<128x128xf32, #tpu.memory_space<vmem>>, vector<128x128xf32>
    tpu.vector_store %arg15[%c0_54, %c0_55], %121 {strides = array<i32>} : memref<128x128xf32, #tpu.memory_space<vmem>>, vector<128x128xf32>,
    %123 = vector.extract_strided_slice %42 {offsets = [0, 384], sizes = [128, 128], strides = [1, 1]} : vector<128x1536xbf16> to vector<128x128xbf16>
    %124 = vector.extract_strided_slice %42 {offsets = [0, 896], sizes = [128, 128], strides = [1, 1]} : vector<128x1536xbf16> to vector<128x128xbf16>
    %125 = vector.extract_strided_slice %42 {offsets = [0, 1408], sizes = [128, 128], strides = [1, 1]} : vector<128x1536xbf16> to vector<128x128xbf16>
    %cst_56 = arith.constant dense<0.000000e+00> : vector<128x128xf32>
    %126 = tpu.matmul %123, %124, %cst_56 {dimension_numbers = #tpu.dot_dimension_numbers<[1], [1], [0], [0], [0, 0, 1, 0], [], []>} : vector<128x128xbf16>, vector<128x128xbf16>, vector<128x128xf32> -> vector<128x128xf32>
    %cst_57 = arith.constant 0.176776692 : f32
    %127 = vector.broadcast %cst_57 : f32 to vector<128x128xf32>
    %128 = arith.mulf %126, %127 : vector<128x128xf32>
    %129 = vector.broadcast %14 : vector<1x128xf32> to vector<128x128xf32>
    %130 = arith.addf %128, %129 : vector<128x128xf32>
    %cst_58 = arith.constant dense<0xFF800000> : vector<128xf32>
    %131 = vector.multi_reduction <maximumf>, %130, %cst_58 [1] : vector<128x128xf32> to vector<128xf32>
    %132 = vector.shape_cast %131 : vector<128xf32> to vector<128x1xf32>
    %133 = vector.broadcast %132 : vector<128x1xf32> to vector<128x128xf32>
    %134 = arith.subf %130, %133 : vector<128x128xf32>
    %135 = math.exp %134 : vector<128x128xf32>
    %cst_59 = arith.constant dense<0.000000e+00> : vector<128xf32>
    %136 = vector.multi_reduction <add>, %135, %cst_59 [1] : vector<128x128xf32> to vector<128xf32>
    %137 = vector.shape_cast %136 : vector<128xf32> to vector<128x1xf32>
    %138 = tpu.reciprocal %137 {approx = true} : vector<128x1xf32> -> vector<128x1xf32>
    %139 = vector.broadcast %138 : vector<128x1xf32> to vector<128x128xf32>
    %140 = arith.mulf %135, %139 : vector<128x128xf32>
    %141 = arith.truncf %140 : vector<128x128xf32> to vector<128x128xbf16>
    %cst_60 = arith.constant dense<0.000000e+00> : vector<128x128xf32>
    %142 = tpu.matmul %141, %125, %cst_60 {dimension_numbers = #tpu.dot_dimension_numbers<[1], [0], [0], [1], [0, 0, 1, 1], [], []>} : vector<128x128xbf16>, vector<128x128xbf16>, vector<128x128xf32> -> vector<128x128xf32>
    %143 = arith.truncf %142 : vector<128x128xf32> to vector<128x128xbf16>
    %c0_61 = arith.constant 0 : index
    %c0_62 = arith.constant 0 : index
    %144 = vector.load %arg15[%c0_61, %c0_62] : memref<128x128xf32, #tpu.memory_space<vmem>>, vector<128x128xf32>
    %c384 = arith.constant 384 : index
    %c0_63 = arith.constant 0 : index
    %145 = vector.load %arg6[%c384, %c0_63] : memref<512x128xbf16, #tpu.memory_space<vmem>>, vector<128x128xbf16>
    %cst_64 = arith.constant dense<0.000000e+00> : vector<128x128xf32>
    %146 = tpu.matmul %143, %145, %cst_64 {dimension_numbers = #tpu.dot_dimension_numbers<[1], [0], [0], [1], [0, 0, 1, 1], [], []>} : vector<128x128xbf16>, vector<128x128xbf16>, vector<128x128xf32> -> vector<128x128xf32>
    %147 = arith.addf %144, %146 : vector<128x128xf32>
    %c0_65 = arith.constant 0 : index
    %c0_66 = arith.constant 0 : index
    %148 = vector.load %arg15[%c0_65, %c0_66] : memref<128x128xf32, #tpu.memory_space<vmem>>, vector<128x128xf32>
    tpu.vector_store %arg15[%c0_65, %c0_66], %147 {strides = array<i32>} : memref<128x128xf32, #tpu.memory_space<vmem>>, vector<128x128xf32>,
    %c0_67 = arith.constant 0 : index
    %c0_68 = arith.constant 0 : index
    %149 = vector.load %arg15[%c0_67, %c0_68] : memref<128x128xf32, #tpu.memory_space<vmem>>, vector<128x128xf32>
    %150 = arith.addf %2, %149 : vector<128x128xf32>
    %c0_69 = arith.constant 0 : index
    %c0_70 = arith.constant 0 : index
    %151 = vector.load %arg7[%c0_69, %c0_70] : memref<1x128xf32, #tpu.memory_space<vmem>>, vector<1x128xf32>
    %152 = vector.broadcast %151 : vector<1x128xf32> to vector<128x128xf32>
    %153 = arith.addf %150, %152 : vector<128x128xf32>
    %c0_71 = arith.constant 0 : index
    %c0_72 = arith.constant 0 : index
    %154 = vector.load %arg8[%c0_71, %c0_72] : memref<1x128xf32, #tpu.memory_space<vmem>>, vector<1x128xf32>
    %c0_73 = arith.constant 0 : index
    %c0_74 = arith.constant 0 : index
    %155 = vector.load %arg9[%c0_73, %c0_74] : memref<1x128xf32, #tpu.memory_space<vmem>>, vector<1x128xf32>
    %cst_75 = arith.constant dense<0.000000e+00> : vector<128xf32>
    %156 = vector.multi_reduction <add>, %153, %cst_75 [1] : vector<128x128xf32> to vector<128xf32>
    %157 = vector.shape_cast %156 : vector<128xf32> to vector<128x1xf32>
    %cst_76 = arith.constant 3.200000e+01 : f32
    %158 = vector.broadcast %cst_76 : f32 to vector<128x1xf32>
    %159 = arith.divf %157, %158 : vector<128x1xf32>
    %160 = vector.broadcast %159 : vector<128x1xf32> to vector<128x128xf32>
    %161 = arith.subf %153, %160 : vector<128x128xf32>
    %162 = vector.broadcast %9 : vector<1x128xf32> to vector<128x128xf32>
    %163 = arith.mulf %161, %162 : vector<128x128xf32>
    %164 = arith.mulf %163, %163 : vector<128x128xf32>
    %cst_77 = arith.constant dense<0.000000e+00> : vector<128xf32>
    %165 = vector.multi_reduction <add>, %164, %cst_77 [1] : vector<128x128xf32> to vector<128xf32>
    %166 = vector.shape_cast %165 : vector<128xf32> to vector<128x1xf32>
    %cst_78 = arith.constant 3.200000e+01 : f32
    %167 = vector.broadcast %cst_78 : f32 to vector<128x1xf32>
    %168 = arith.divf %166, %167 : vector<128x1xf32>
    %cst_79 = arith.constant 9.99999974E-6 : f32
    %169 = vector.broadcast %cst_79 : f32 to vector<128x1xf32>
    %170 = arith.addf %168, %169 : vector<128x1xf32>
    %171 = math.rsqrt %170 : vector<128x1xf32>
    %172 = vector.broadcast %171 : vector<128x1xf32> to vector<128x128xf32>
    %173 = arith.mulf %163, %172 : vector<128x128xf32>
    %174 = vector.broadcast %154 : vector<1x128xf32> to vector<128x128xf32>
    %175 = arith.mulf %173, %174 : vector<128x128xf32>
    %176 = vector.broadcast %155 : vector<1x128xf32> to vector<128x128xf32>
    %177 = arith.addf %175, %176 : vector<128x128xf32>
    %178 = arith.truncf %177 : vector<128x128xf32> to vector<128x128xbf16>
    %cst_80 = arith.constant 0.000000e+00 : f32
    %179 = vector.broadcast %cst_80 : f32 to vector<128x128xf32>
    %c0_81 = arith.constant 0 : index
    %c0_82 = arith.constant 0 : index
    %180 = vector.load %arg15[%c0_81, %c0_82] : memref<128x128xf32, #tpu.memory_space<vmem>>, vector<128x128xf32>
    tpu.vector_store %arg15[%c0_81, %c0_82], %179 {strides = array<i32>} : memref<128x128xf32, #tpu.memory_space<vmem>>, vector<128x128xf32>,
    %c0_83 = arith.constant 0 : index
    %c0_84 = arith.constant 0 : index
    %181 = vector.load %arg10[%c0_83, %c0_84] : memref<128x128xbf16, #tpu.memory_space<vmem>>, vector<128x128xbf16>
    %cst_85 = arith.constant dense<0.000000e+00> : vector<128x128xf32>
    %182 = tpu.matmul %178, %181, %cst_85 {dimension_numbers = #tpu.dot_dimension_numbers<[1], [0], [0], [1], [0, 0, 1, 1], [], []>} : vector<128x128xbf16>, vector<128x128xbf16>, vector<128x128xf32> -> vector<128x128xf32>
    %c0_86 = arith.constant 0 : index
    %c0_87 = arith.constant 0 : index
    %183 = vector.load %arg11[%c0_86, %c0_87] : memref<1x128xf32, #tpu.memory_space<vmem>>, vector<1x128xf32>
    %184 = vector.broadcast %183 : vector<1x128xf32> to vector<128x128xf32>
    %185 = arith.addf %182, %184 : vector<128x128xf32>
    %cst_88 = arith.constant 0.000000e+00 : f32
    %186 = vector.broadcast %cst_88 : f32 to vector<128x128xf32>
    %187 = arith.maximumf %185, %186 : vector<128x128xf32>
    %188 = arith.truncf %187 : vector<128x128xf32> to vector<128x128xbf16>
    %c0_89 = arith.constant 0 : index
    %c0_90 = arith.constant 0 : index
    %189 = vector.load %arg15[%c0_89, %c0_90] : memref<128x128xf32, #tpu.memory_space<vmem>>, vector<128x128xf32>
    %c0_91 = arith.constant 0 : index
    %c0_92 = arith.constant 0 : index
    %190 = vector.load %arg12[%c0_91, %c0_92] : memref<128x128xbf16, #tpu.memory_space<vmem>>, vector<128x128xbf16>
    %cst_93 = arith.constant dense<0.000000e+00> : vector<128x128xf32>
    %191 = tpu.matmul %188, %190, %cst_93 {dimension_numbers = #tpu.dot_dimension_numbers<[1], [0], [0], [1], [0, 0, 1, 1], [], []>} : vector<128x128xbf16>, vector<128x128xbf16>, vector<128x128xf32> -> vector<128x128xf32>
    %192 = arith.addf %189, %191 : vector<128x128xf32>
    %c0_94 = arith.constant 0 : index
    %c0_95 = arith.constant 0 : index
    %193 = vector.load %arg15[%c0_94, %c0_95] : memref<128x128xf32, #tpu.memory_space<vmem>>, vector<128x128xf32>
    tpu.vector_store %arg15[%c0_94, %c0_95], %192 {strides = array<i32>} : memref<128x128xf32, #tpu.memory_space<vmem>>, vector<128x128xf32>,
    %c0_96 = arith.constant 0 : index
    %c0_97 = arith.constant 0 : index
    %194 = vector.load %arg15[%c0_96, %c0_97] : memref<128x128xf32, #tpu.memory_space<vmem>>, vector<128x128xf32>
    %195 = arith.addf %153, %194 : vector<128x128xf32>
    %c0_98 = arith.constant 0 : index
    %c0_99 = arith.constant 0 : index
    %196 = vector.load %arg13[%c0_98, %c0_99] : memref<1x128xf32, #tpu.memory_space<vmem>>, vector<1x128xf32>
    %197 = vector.broadcast %196 : vector<1x128xf32> to vector<128x128xf32>
    %198 = arith.addf %195, %197 : vector<128x128xf32>
    %199 = arith.truncf %198 : vector<128x128xf32> to vector<128x128xbf16>
    %c0_100 = arith.constant 0 : index
    %c0_101 = arith.constant 0 : index
    %c0_102 = arith.constant 0 : index
    %200 = vector.load %arg14[%c0_100, %c0_101, %c0_102] : memref<1x128x128xbf16, #tpu.memory_space<vmem>>, vector<1x128x128xbf16>
    %201 = vector.shape_cast %200 : vector<1x128x128xbf16> to vector<128x128xbf16>
    %202 = vector.shape_cast %199 : vector<128x128xbf16> to vector<1x128x128xbf16>
    tpu.vector_store %arg14[%c0_100, %c0_101, %c0_102], %202 {strides = array<i32>} : memref<1x128x128xbf16, #tpu.memory_space<vmem>>, vector<1x128x128xbf16>,
    return
  }
  func.func @transform_0(%arg0: i32) -> (i32, i32, i32) {
    %c0_i32 = arith.constant 0 : i32
    %c0_i32_0 = arith.constant 0 : i32
    %c0_i32_1 = arith.constant 0 : i32
    return %arg0, %c0_i32, %c0_i32_0 : i32, i32, i32
  }
  func.func @transform_1(%arg0: i32) -> (i32, i32, i32) {
    %c0_i32 = arith.constant 0 : i32
    %c0_i32_0 = arith.constant 0 : i32
    %c0_i32_1 = arith.constant 0 : i32
    return %arg0, %c0_i32, %c0_i32_0 : i32, i32, i32
  }
  func.func @transform_2(%arg0: i32) -> (i32, i32) {
    %c0_i32 = arith.constant 0 : i32
    %c0_i32_0 = arith.constant 0 : i32
    %c0_i32_1 = arith.constant 0 : i32
    return %c0_i32, %c0_i32_0 : i32, i32
  }
  func.func @transform_3(%arg0: i32) -> (i32, i32) {
    %c0_i32 = arith.constant 0 : i32
    %c0_i32_0 = arith.constant 0 : i32
    %c0_i32_1 = arith.constant 0 : i32
    return %c0_i32, %c0_i32_0 : i32, i32
  }
  func.func @transform_4(%arg0: i32) -> (i32, i32) {
    %c0_i32 = arith.constant 0 : i32
    %c0_i32_0 = arith.constant 0 : i32
    %c0_i32_1 = arith.constant 0 : i32
    return %c0_i32, %c0_i32_0 : i32, i32
  }
  func.func @transform_5(%arg0: i32) -> (i32, i32) {
    %c0_i32 = arith.constant 0 : i32
    %c0_i32_0 = arith.constant 0 : i32
    %c0_i32_1 = arith.constant 0 : i32
    return %c0_i32, %c0_i32_0 : i32, i32
  }
  func.func @transform_6(%arg0: i32) -> (i32, i32) {
    %c0_i32 = arith.constant 0 : i32
    %c0_i32_0 = arith.constant 0 : i32
    %c0_i32_1 = arith.constant 0 : i32
    return %c0_i32, %c0_i32_0 : i32, i32
  }
  func.func @transform_7(%arg0: i32) -> (i32, i32) {
    %c0_i32 = arith.constant 0 : i32
    %c0_i32_0 = arith.constant 0 : i32
    %c0_i32_1 = arith.constant 0 : i32
    return %c0_i32, %c0_i32_0 : i32, i32
  }
  func.func @transform_8(%arg0: i32) -> (i32, i32) {
    %c0_i32 = arith.constant 0 : i32
    %c0_i32_0 = arith.constant 0 : i32
    %c0_i32_1 = arith.constant 0 : i32
    return %c0_i32, %c0_i32_0 : i32, i32
  }
  func.func @transform_9(%arg0: i32) -> (i32, i32) {
    %c0_i32 = arith.constant 0 : i32
    %c0_i32_0 = arith.constant 0 : i32
    %c0_i32_1 = arith.constant 0 : i32
    return %c0_i32, %c0_i32_0 : i32, i32
  }
  func.func @transform_10(%arg0: i32) -> (i32, i32) {
    %c0_i32 = arith.constant 0 : i32
    %c0_i32_0 = arith.constant 0 : i32
    %c0_i32_1 = arith.constant 0 : i32
    return %c0_i32, %c0_i32_0 : i32, i32
  }
  func.func @transform_11(%arg0: i32) -> (i32, i32) {
    %c0_i32 = arith.constant 0 : i32
    %c0_i32_0 = arith.constant 0 : i32
    %c0_i32_1 = arith.constant 0 : i32
    return %c0_i32, %c0_i32_0 : i32, i32
  }
  func.func @transform_12(%arg0: i32) -> (i32, i32) {
    %c0_i32 = arith.constant 0 : i32
    %c0_i32_0 = arith.constant 0 : i32
    %c0_i32_1 = arith.constant 0 : i32
    return %c0_i32, %c0_i32_0 : i32, i32
  }
  func.func @transform_13(%arg0: i32) -> (i32, i32, i32) {
    %c0_i32 = arith.constant 0 : i32
    %c0_i32_0 = arith.constant 0 : i32
    %c0_i32_1 = arith.constant 0 : i32
    return %arg0, %c0_i32, %c0_i32_0 : i32, i32, i32
  }
}

</mosaic_0001>

<llo_original>
// kernel: tpu_custom_call.1
$region0: #{tpu_custom_call.1}
  #allocation0 [shape = 'u32[]', space=smem, size = 0x4, offset = 0x4, fixed_abs, tag = 'smem constant byte address 0x4 - core index']
  #allocation1 [shape = 'u32[144,128]{1,0:T(1,128)}', space=vmem, size = 0x12000, scoped, tag = 'internal scratch']
  #allocation2 [shape = 'f32[128,128]{1,0:T(8,128)}', space=vmem, size = 0x10000, scoped, tag = 'scratch operand']
  %s0 = inlined_call_operand.hbm [shape: bf16[2,128,128], index: 0, kind: input, shape index: {}, may-alias: {0,13}]
  %s1 = inlined_call_operand.vmem [shape: f32[2,1,128], index: 1, kind: input, shape index: {}]
  %s2 = inlined_call_operand.vmem [shape: f32[1,128], index: 2, kind: input, shape index: {}]
  %s3 = inlined_call_operand.vmem [shape: f32[1,128], index: 3, kind: input, shape index: {}]
  %s4 = inlined_call_operand.hbm [shape: bf16[128,1536], index: 4, kind: input, shape index: {}]
  %s5 = inlined_call_operand.vmem [shape: bf16[512,128], index: 5, kind: input, shape index: {}]
  %s6 = inlined_call_operand.vmem [shape: f32[1,128], index: 6, kind: input, shape index: {}]
  %s7 = inlined_call_operand.vmem [shape: f32[1,128], index: 7, kind: input, shape index: {}]
  %s8 = inlined_call_operand.vmem [shape: f32[1,128], index: 8, kind: input, shape index: {}]
  %s9 = inlined_call_operand.hbm [shape: bf16[128,128], index: 9, kind: input, shape index: {}]
  %s10 = inlined_call_operand.vmem [shape: f32[1,128], index: 10, kind: input, shape index: {}]
  %s11 = inlined_call_operand.hbm [shape: bf16[128,128], index: 11, kind: input, shape index: {}]
  %s12 = inlined_call_operand.vmem [shape: f32[1,128], index: 12, kind: input, shape index: {}]
  %s13 = inlined_call_operand.hbm [shape: bf16[2,128,128], index: 13, kind: output, shape index: {}, may-alias: {0,13}]
  %s14 = sld [smem:[#allocation0]]
  $region101: #{tpu_custom_call.1} parent=0
    _
  %s16 = ssub.s32 1, %s14
  %s17 = scalar_select 0, %s16, %s14
  $region1: #{tpu_custom_call.1} parent=0
    #allocation3 [shape = 'u8[65536]{0}', space=vmem, size = 0x10000, scoped, tag = 'input window, operand 0']
    #allocation4 [shape = 's32[2]{0}', space=sflag, size = 0x8, scoped, tag = 'scoped memory for tpu_custom_call.1']
    #allocation5 [shape = 's32[2]{0}', space=sflag, size = 0x8, scoped, tag = 'scoped memory for tpu_custom_call.1']
    #allocation6 [shape = 'u8[393216]{0}', space=vmem, size = 0x60000, scoped, tag = 'input window, operand 4, single buffered']
    #allocation7 [shape = 's32[1]{0}', space=sflag, size = 0x4, scoped, tag = 'scoped memory for tpu_custom_call.1']
    #allocation8 [shape = 'u8[32768]{0}', space=vmem, size = 0x8000, scoped, tag = 'input window, operand 9, single buffered']
    #allocation9 [shape = 'u8[32768]{0}', space=vmem, size = 0x8000, scoped, tag = 'input window, operand 11, single buffered']
    #allocation10 [shape = 's32[1]{0}', space=sflag, size = 0x4, scoped, tag = 'scoped memory for tpu_custom_call.1']
    #allocation11 [shape = 'u8[65536]{0}', space=vmem, size = 0x10000, scoped, tag = 'output window, operand 0']
    %18 = vsyncpa [#allocation4], 0
    %s19 = scalar_lea.sflag [#allocation4], 1
    %20 = vsyncpa %s19, 0
    %21 = vsyncpa [#allocation7], 0
    %22 = vsyncpa [#allocation10], 0
    %23 = vsyncpa [#allocation5], 0
    %s24 = scalar_lea.sflag [#allocation5], 1
    %25 = vsyncpa %s24, 0
    loop: start=0, step=1, limit=4
    $region2: #{tpu_custom_call.1} parent=1 // loop_pre_header
      _
    $region3: #{tpu_custom_call.1} parent=1 // loop_header
      %s27 = sphi 0, %s31
      %p28 = scmp.ge.s32.totalorder %s27, 4
      %s37 = sphi 0, %s39
      %s40 = sphi 0, %s37
      %s41 = sphi 0, %s40
      %s57 = sphi 0, %s41
      %s63 = sphi 0, %s65
      %s66 = sphi 0, %s63
      %s67 = sphi 0, %s66
      %s83 = sphi 0, %s67
      %s87 = sphi 0, %s87
      %s89 = sphi 0, %s87
      %s90 = sphi 0, %s89
      %s104 = sphi 0, %s90
      %s108 = sphi 0, %s108
      %s110 = sphi 0, %s108
      %s111 = sphi 0, %s110
      %s125 = sphi 0, %s111
      %s129 = sphi 0, %s129
      %s131 = sphi 0, %s129
      %s132 = sphi 0, %s131
      %s146 = sphi 0, %s132
      %s150 = sphi 0, %s150
      %s152 = sphi 0, %s150
      %s153 = sphi 0, %s152
      %s167 = sphi 0, %s153
      %s171 = sphi 0, %s171
      %s173 = sphi 0, %s171
      %s174 = sphi 0, %s173
      %s188 = sphi 0, %s174
      %s192 = sphi 0, %s192
      %s194 = sphi 0, %s192
      %s195 = sphi 0, %s194
      %s209 = sphi 0, %s195
      %s213 = sphi 0, %s213
      %s215 = sphi 0, %s213
      %s216 = sphi 0, %s215
      %s230 = sphi 0, %s216
      %s234 = sphi 0, %s234
      %s236 = sphi 0, %s234
      %s237 = sphi 0, %s236
      %s251 = sphi 0, %s237
      %s255 = sphi 0, %s255
      %s257 = sphi 0, %s255
      %s258 = sphi 0, %s257
      %s272 = sphi 0, %s258
      %s276 = sphi 0, %s276
      %s278 = sphi 0, %s276
      %s279 = sphi 0, %s278
      %s293 = sphi 0, %s279
      %s297 = sphi 0, %s297
      %s299 = sphi 0, %s297
      %s300 = sphi 0, %s299
      %s314 = sphi 0, %s300
      %s320 = sphi 0, %s322
      %s323 = sphi 0, %s320
      %s324 = sphi 0, %s323
      %s340 = sphi 0, %s324
    $region4: #{tpu_custom_call.1} parent=1 // loop_header_branch
      %30 = sbr.rel (%p28) target = $region8
    $region5: #{tpu_custom_call.1} parent=1 // loop_body
      %s32 = ssub.s32 %s27, 1
      %s33 = ssub.s32 %s27, 2
      %s34 = sadd.s32 %s27, 1
      %s35 = ssub.s32 %s27, %s34
      %p36 = scmp.eq.s32.totalorder %s35, 0
      %s38 = sadd.s32 %s37, 1
      %s39 = scalar_select %p36, %s37, %s38
      %p42 = pneg %p36
      %p43 = scmp.eq.s32.totalorder %s27, 1
      %p44 = por %p42, %p43
      %p45 = scmp.ne.s32.totalorder %s37, %s40
      %p46 = scmp.eq.s32.totalorder %s27, 0
      %p47 = por %p45, %p46
      %p48 = scmp.ne.s32.totalorder %s37, %s40
      %p49 = scmp.eq.s32.totalorder %s32, 1
      %p50 = por %p48, %p49
      %p51 = scmp.ne.s32.totalorder %s40, %s41
      %p52 = scmp.eq.s32.totalorder %s32, 0
      %p53 = por %p51, %p52
      %p54 = scmp.ne.s32.totalorder %s40, %s41
      %p55 = scmp.eq.s32.totalorder %s33, 1
      %p56 = por %p54, %p55
      %p58 = scmp.ne.s32.totalorder %s41, %s57
      %p59 = scmp.eq.s32.totalorder %s33, 0
      %p60 = por %p58, %p59
      %s61 = ssub.s32 %s27, %s34
      %p62 = scmp.eq.s32.totalorder %s61, 0
      %s64 = sadd.s32 %s63, 1
      %s65 = scalar_select %p62, %s63, %s64
      %p68 = pneg %p62
      %p69 = scmp.eq.s32.totalorder %s27, 1
      %p70 = por %p68, %p69
      %p71 = scmp.ne.s32.totalorder %s63, %s66
      %p72 = scmp.eq.s32.totalorder %s27, 0
      %p73 = por %p71, %p72
      %p74 = scmp.ne.s32.totalorder %s63, %s66
      %p75 = scmp.eq.s32.totalorder %s32, 1
      %p76 = por %p74, %p75
      %p77 = scmp.ne.s32.totalorder %s66, %s67
      %p78 = scmp.eq.s32.totalorder %s32, 0
      %p79 = por %p77, %p78
      %p80 = scmp.ne.s32.totalorder %s66, %s67
      %p81 = scmp.eq.s32.totalorder %s33, 1
      %p82 = por %p80, %p81
      %p84 = scmp.ne.s32.totalorder %s67, %s83
      %p85 = scmp.eq.s32.totalorder %s33, 0
      %p86 = por %p84, %p85
      %s88 = sadd.s32 %s87, 1
      %p91 = scmp.eq.s32.totalorder %s27, 1
      %p92 = scmp.ne.s32.totalorder %s87, %s89
      %p93 = scmp.eq.s32.totalorder %s27, 0
      %p94 = por %p92, %p93
      %p95 = scmp.ne.s32.totalorder %s87, %s89
      %p96 = scmp.eq.s32.totalorder %s32, 1
      %p97 = por %p95, %p96
      %p98 = scmp.ne.s32.totalorder %s89, %s90
      %p99 = scmp.eq.s32.totalorder %s32, 0
      %p100 = por %p98, %p99
      %p101 = scmp.ne.s32.totalorder %s89, %s90
      %p102 = scmp.eq.s32.totalorder %s33, 1
      %p103 = por %p101, %p102
      %p105 = scmp.ne.s32.totalorder %s90, %s104
      %p106 = scmp.eq.s32.totalorder %s33, 0
      %p107 = por %p105, %p106
      %s109 = sadd.s32 %s108, 1
      %p112 = scmp.eq.s32.totalorder %s27, 1
      %p113 = scmp.ne.s32.totalorder %s108, %s110
      %p114 = scmp.eq.s32.totalorder %s27, 0
      %p115 = por %p113, %p114
      %p116 = scmp.ne.s32.totalorder %s108, %s110
      %p117 = scmp.eq.s32.totalorder %s32, 1
      %p118 = por %p116, %p117
      %p119 = scmp.ne.s32.totalorder %s110, %s111
      %p120 = scmp.eq.s32.totalorder %s32, 0
      %p121 = por %p119, %p120
      %p122 = scmp.ne.s32.totalorder %s110, %s111
      %p123 = scmp.eq.s32.totalorder %s33, 1
      %p124 = por %p122, %p123
      %p126 = scmp.ne.s32.totalorder %s111, %s125
      %p127 = scmp.eq.s32.totalorder %s33, 0
      %p128 = por %p126, %p127
      %s130 = sadd.s32 %s129, 1
      %p133 = scmp.eq.s32.totalorder %s27, 1
      %p134 = scmp.ne.s32.totalorder %s129, %s131
      %p135 = scmp.eq.s32.totalorder %s27, 0
      %p136 = por %p134, %p135
      %p137 = scmp.ne.s32.totalorder %s129, %s131
      %p138 = scmp.eq.s32.totalorder %s32, 1
      %p139 = por %p137, %p138
      %p140 = scmp.ne.s32.totalorder %s131, %s132
      %p141 = scmp.eq.s32.totalorder %s32, 0
      %p142 = por %p140, %p141
      %p143 = scmp.ne.s32.totalorder %s131, %s132
      %p144 = scmp.eq.s32.totalorder %s33, 1
      %p145 = por %p143, %p144
      %p147 = scmp.ne.s32.totalorder %s132, %s146
      %p148 = scmp.eq.s32.totalorder %s33, 0
      %p149 = por %p147, %p148
      %s151 = sadd.s32 %s150, 1
      %p154 = scmp.eq.s32.totalorder %s27, 1
      %p155 = scmp.ne.s32.totalorder %s150, %s152
      %p156 = scmp.eq.s32.totalorder %s27, 0
      %p157 = por %p155, %p156
      %p158 = scmp.ne.s32.totalorder %s150, %s152
      %p159 = scmp.eq.s32.totalorder %s32, 1
      %p160 = por %p158, %p159
      %p161 = scmp.ne.s32.totalorder %s152, %s153
      %p162 = scmp.eq.s32.totalorder %s32, 0
      %p163 = por %p161, %p162
      %p164 = scmp.ne.s32.totalorder %s152, %s153
      %p165 = scmp.eq.s32.totalorder %s33, 1
      %p166 = por %p164, %p165
      %p168 = scmp.ne.s32.totalorder %s153, %s167
      %p169 = scmp.eq.s32.totalorder %s33, 0
      %p170 = por %p168, %p169
      %s172 = sadd.s32 %s171, 1
      %p175 = scmp.eq.s32.totalorder %s27, 1
      %p176 = scmp.ne.s32.totalorder %s171, %s173
      %p177 = scmp.eq.s32.totalorder %s27, 0
      %p178 = por %p176, %p177
      %p179 = scmp.ne.s32.totalorder %s171, %s173
      %p180 = scmp.eq.s32.totalorder %s32, 1
      %p181 = por %p179, %p180
      %p182 = scmp.ne.s32.totalorder %s173, %s174
      %p183 = scmp.eq.s32.totalorder %s32, 0
      %p184 = por %p182, %p183
      %p185 = scmp.ne.s32.totalorder %s173, %s174
      %p186 = scmp.eq.s32.totalorder %s33, 1
      %p187 = por %p185, %p186
      %p189 = scmp.ne.s32.totalorder %s174, %s188
      %p190 = scmp.eq.s32.totalorder %s33, 0
      %p191 = por %p189, %p190
      %s193 = sadd.s32 %s192, 1
      %p196 = scmp.eq.s32.totalorder %s27, 1
      %p197 = scmp.ne.s32.totalorder %s192, %s194
      %p198 = scmp.eq.s32.totalorder %s27, 0
      %p199 = por %p197, %p198
      %p200 = scmp.ne.s32.totalorder %s192, %s194
      %p201 = scmp.eq.s32.totalorder %s32, 1
      %p202 = por %p200, %p201
      %p203 = scmp.ne.s32.totalorder %s194, %s195
      %p204 = scmp.eq.s32.totalorder %s32, 0
      %p205 = por %p203, %p204
      %p206 = scmp.ne.s32.totalorder %s194, %s195
      %p207 = scmp.eq.s32.totalorder %s33, 1
      %p208 = por %p206, %p207
      %p210 = scmp.ne.s32.totalorder %s195, %s209
      %p211 = scmp.eq.s32.totalorder %s33, 0
      %p212 = por %p210, %p211
      %s214 = sadd.s32 %s213, 1
      %p217 = scmp.eq.s32.totalorder %s27, 1
      %p218 = scmp.ne.s32.totalorder %s213, %s215
      %p219 = scmp.eq.s32.totalorder %s27, 0
      %p220 = por %p218, %p219
      %p221 = scmp.ne.s32.totalorder %s213, %s215
      %p222 = scmp.eq.s32.totalorder %s32, 1
      %p223 = por %p221, %p222
      %p224 = scmp.ne.s32.totalorder %s215, %s216
      %p225 = scmp.eq.s32.totalorder %s32, 0
      %p226 = por %p224, %p225
      %p227 = scmp.ne.s32.totalorder %s215, %s216
      %p228 = scmp.eq.s32.totalorder %s33, 1
      %p229 = por %p227, %p228
      %p231 = scmp.ne.s32.totalorder %s216, %s230
      %p232 = scmp.eq.s32.totalorder %s33, 0
      %p233 = por %p231, %p232
      %s235 = sadd.s32 %s234, 1
      %p238 = scmp.eq.s32.totalorder %s27, 1
      %p239 = scmp.ne.s32.totalorder %s234, %s236
      %p240 = scmp.eq.s32.totalorder %s27, 0
      %p241 = por %p239, %p240
      %p242 = scmp.ne.s32.totalorder %s234, %s236
      %p243 = scmp.eq.s32.totalorder %s32, 1
      %p244 = por %p242, %p243
      %p245 = scmp.ne.s32.totalorder %s236, %s237
      %p246 = scmp.eq.s32.totalorder %s32, 0
      %p247 = por %p245, %p246
      %p248 = scmp.ne.s32.totalorder %s236, %s237
      %p249 = scmp.eq.s32.totalorder %s33, 1
      %p250 = por %p248, %p249
      %p252 = scmp.ne.s32.totalorder %s237, %s251
      %p253 = scmp.eq.s32.totalorder %s33, 0
      %p254 = por %p252, %p253
      %s256 = sadd.s32 %s255, 1
      %p259 = scmp.eq.s32.totalorder %s27, 1
      %p260 = scmp.ne.s32.totalorder %s255, %s257
      %p261 = scmp.eq.s32.totalorder %s27, 0
      %p262 = por %p260, %p261
      %p263 = scmp.ne.s32.totalorder %s255, %s257
      %p264 = scmp.eq.s32.totalorder %s32, 1
      %p265 = por %p263, %p264
      %p266 = scmp.ne.s32.totalorder %s257, %s258
      %p267 = scmp.eq.s32.totalorder %s32, 0
      %p268 = por %p266, %p267
      %p269 = scmp.ne.s32.totalorder %s257, %s258
      %p270 = scmp.eq.s32.totalorder %s33, 1
      %p271 = por %p269, %p270
      %p273 = scmp.ne.s32.totalorder %s258, %s272
      %p274 = scmp.eq.s32.totalorder %s33, 0
      %p275 = por %p273, %p274
      %s277 = sadd.s32 %s276, 1
      %p280 = scmp.eq.s32.totalorder %s27, 1
      %p281 = scmp.ne.s32.totalorder %s276, %s278
      %p282 = scmp.eq.s32.totalorder %s27, 0
      %p283 = por %p281, %p282
      %p284 = scmp.ne.s32.totalorder %s276, %s278
      %p285 = scmp.eq.s32.totalorder %s32, 1
      %p286 = por %p284, %p285
      %p287 = scmp.ne.s32.totalorder %s278, %s279
      %p288 = scmp.eq.s32.totalorder %s32, 0
      %p289 = por %p287, %p288
      %p290 = scmp.ne.s32.totalorder %s278, %s279
      %p291 = scmp.eq.s32.totalorder %s33, 1
      %p292 = por %p290, %p291
      %p294 = scmp.ne.s32.totalorder %s279, %s293
      %p295 = scmp.eq.s32.totalorder %s33, 0
      %p296 = por %p294, %p295
      %s298 = sadd.s32 %s297, 1
      %p301 = scmp.eq.s32.totalorder %s27, 1
      %p302 = scmp.ne.s32.totalorder %s297, %s299
      %p303 = scmp.eq.s32.totalorder %s27, 0
      %p304 = por %p302, %p303
      %p305 = scmp.ne.s32.totalorder %s297, %s299
      %p306 = scmp.eq.s32.totalorder %s32, 1
      %p307 = por %p305, %p306
      %p308 = scmp.ne.s32.totalorder %s299, %s300
      %p309 = scmp.eq.s32.totalorder %s32, 0
      %p310 = por %p308, %p309
      %p311 = scmp.ne.s32.totalorder %s299, %s300
      %p312 = scmp.eq.s32.totalorder %s33, 1
      %p313 = por %p311, %p312
      %p315 = scmp.ne.s32.totalorder %s300, %s314
      %p316 = scmp.eq.s32.totalorder %s33, 0
      %p317 = por %p315, %p316
      %s318 = ssub.s32 %s27, %s34
      %p319 = scmp.eq.s32.totalorder %s318, 0
      %s321 = sadd.s32 %s320, 1
      %s322 = scalar_select %p319, %s320, %s321
      %p325 = pneg %p319
      %p326 = scmp.eq.s32.totalorder %s27, 1
      %p327 = por %p325, %p326
      %p328 = scmp.ne.s32.totalorder %s320, %s323
      %p329 = scmp.eq.s32.totalorder %s27, 0
      %p330 = por %p328, %p329
      %p331 = scmp.ne.s32.totalorder %s320, %s323
      %p332 = scmp.eq.s32.totalorder %s32, 1
      %p333 = por %p331, %p332
      %p334 = scmp.ne.s32.totalorder %s323, %s324
      %p335 = scmp.eq.s32.totalorder %s32, 0
      %p336 = por %p334, %p335
      %p337 = scmp.ne.s32.totalorder %s323, %s324
      %p338 = scmp.eq.s32.totalorder %s33, 1
      %p339 = por %p337, %p338
      %p341 = scmp.ne.s32.totalorder %s324, %s340
      %p342 = scmp.eq.s32.totalorder %s33, 0
      %p343 = por %p341, %p342
      %p344 = scmp.le.s32.totalorder 1, %s27
      %p345 = scmp.lt.s32.totalorder %s27, 3
      %p346 = pnand %p344, %p345
      %p347 = pneg %p346
      // Predicated region
      $region9: #{tpu_custom_call.1} parent=5 // pred_check
        _
      $region10: #{tpu_custom_call.1} parent=5 // pred_check_branch
        %349 = sbr.rel (%p346) target = $region12
      $region11: #{tpu_custom_call.1} parent=5 // pred_region
        %s350 = ssub.s32 %s27, 1
        // Predicated region
        $region13: #{tpu_custom_call.1} parent=11 // pred_check
          %p351 = pneg %p100
        $region14: #{tpu_custom_call.1} parent=11 // pred_check_branch
          %353 = sbr.rel (%p351) target = $region16
        $region15: #{tpu_custom_call.1} parent=11 // pred_region
          _
        $region16: #{tpu_custom_call.1} parent=11 // pred_fallthru
          _
        // Predicated region
        $region17: #{tpu_custom_call.1} parent=11 // pred_check
          %p354 = pneg %p121
        $region18: #{tpu_custom_call.1} parent=11 // pred_check_branch
          %356 = sbr.rel (%p354) target = $region20
        $region19: #{tpu_custom_call.1} parent=11 // pred_region
          _
        $region20: #{tpu_custom_call.1} parent=11 // pred_fallthru
          _
        // Predicated region
        $region21: #{tpu_custom_call.1} parent=11 // pred_check
          %p357 = pneg %p142
        $region22: #{tpu_custom_call.1} parent=11 // pred_check_branch
          %359 = sbr.rel (%p357) target = $region24
        $region23: #{tpu_custom_call.1} parent=11 // pred_region
          %s361 = ssub.s32 12288, 12288
          %362 = vsyncadd [#allocation7], %s361
          %s363 = sshll.u32 [#allocation6], 4
          %s364 = int_to_ptr.vmem [resolvable:$true] %s363
          %369 = dma.hbm_to_vmem [thread:$0]  %s4, 12288, %s364, [#allocation7], 768, 768, 48
        $region24: #{tpu_custom_call.1} parent=11 // pred_fallthru
          _
        // Predicated region
        $region25: #{tpu_custom_call.1} parent=11 // pred_check
          %p370 = pneg %p163
        $region26: #{tpu_custom_call.1} parent=11 // pred_check_branch
          %372 = sbr.rel (%p370) target = $region28
        $region27: #{tpu_custom_call.1} parent=11 // pred_region
          _
        $region28: #{tpu_custom_call.1} parent=11 // pred_fallthru
          _
        // Predicated region
        $region29: #{tpu_custom_call.1} parent=11 // pred_check
          %p373 = pneg %p184
        $region30: #{tpu_custom_call.1} parent=11 // pred_check_branch
          %375 = sbr.rel (%p373) target = $region32
        $region31: #{tpu_custom_call.1} parent=11 // pred_region
          _
        $region32: #{tpu_custom_call.1} parent=11 // pred_fallthru
          _
        // Predicated region
        $region33: #{tpu_custom_call.1} parent=11 // pred_check
          %p376 = pneg %p205
        $region34: #{tpu_custom_call.1} parent=11 // pred_check_branch
          %378 = sbr.rel (%p376) target = $region36
        $region35: #{tpu_custom_call.1} parent=11 // pred_region
          _
        $region36: #{tpu_custom_call.1} parent=11 // pred_fallthru
          _
        // Predicated region
        $region37: #{tpu_custom_call.1} parent=11 // pred_check
          %p379 = pneg %p226
        $region38: #{tpu_custom_call.1} parent=11 // pred_check_branch
          %381 = sbr.rel (%p379) target = $region40
        $region39: #{tpu_custom_call.1} parent=11 // pred_region
          _
        $region40: #{tpu_custom_call.1} parent=11 // pred_fallthru
          _
        // Predicated region
        $region41: #{tpu_custom_call.1} parent=11 // pred_check
          %p382 = pneg %p247
        $region42: #{tpu_custom_call.1} parent=11 // pred_check_branch
          %384 = sbr.rel (%p382) target = $region44
        $region43: #{tpu_custom_call.1} parent=11 // pred_region
          %s386 = ssub.s32 1024, 1024
          %387 = vsyncadd [#allocation7], %s386
          %s388 = sshll.u32 [#allocation8], 4
          %s389 = int_to_ptr.vmem [resolvable:$true] %s388
          %394 = dma.hbm_to_vmem [thread:$0]  %s9, 1024, %s389, [#allocation7], 64, 64, 4
        $region44: #{tpu_custom_call.1} parent=11 // pred_fallthru
          _
        // Predicated region
        $region45: #{tpu_custom_call.1} parent=11 // pred_check
          %p395 = pneg %p268
        $region46: #{tpu_custom_call.1} parent=11 // pred_check_branch
          %397 = sbr.rel (%p395) target = $region48
        $region47: #{tpu_custom_call.1} parent=11 // pred_region
          _
        $region48: #{tpu_custom_call.1} parent=11 // pred_fallthru
          _
        // Predicated region
        $region49: #{tpu_custom_call.1} parent=11 // pred_check
          %p398 = pneg %p289
        $region50: #{tpu_custom_call.1} parent=11 // pred_check_branch
          %400 = sbr.rel (%p398) target = $region52
        $region51: #{tpu_custom_call.1} parent=11 // pred_region
          %s402 = ssub.s32 1024, 1024
          %403 = vsyncadd [#allocation10], %s402
          %s404 = sshll.u32 [#allocation9], 4
          %s405 = int_to_ptr.vmem [resolvable:$true] %s404
          %410 = dma.hbm_to_vmem [thread:$0]  %s11, 1024, %s405, [#allocation10], 64, 64, 4
        $region52: #{tpu_custom_call.1} parent=11 // pred_fallthru
          _
        // Predicated region
        $region53: #{tpu_custom_call.1} parent=11 // pred_check
          %p411 = pneg %p310
        $region54: #{tpu_custom_call.1} parent=11 // pred_check_branch
          %413 = sbr.rel (%p411) target = $region56
        $region55: #{tpu_custom_call.1} parent=11 // pred_region
          _
        $region56: #{tpu_custom_call.1} parent=11 // pred_fallthru
          _
      $region12: #{tpu_custom_call.1} parent=5 // pred_fallthru
        _
      %p414 = scmp.lt.s32.totalorder %s27, 2
      // Predicated region
      $region57: #{tpu_custom_call.1} parent=5 // pred_check
        %p415 = pneg %p414
      $region58: #{tpu_custom_call.1} parent=5 // pred_check_branch
        %417 = sbr.rel (%p415) target = $region60
      $region59: #{tpu_custom_call.1} parent=5 // pred_region
        // Predicated region
        $region61: #{tpu_custom_call.1} parent=59 // pred_check
          %p418 = pneg %p47
        $region62: #{tpu_custom_call.1} parent=59 // pred_check_branch
          %420 = sbr.rel (%p418) target = $region64
        $region63: #{tpu_custom_call.1} parent=59 // pred_region
          %s421 = sand.u32 %s37, 1
          %s422 = scalar_lea.sflag [#allocation4], %s421
          %s423 = sand.u32 %s37, 1
          %s424 = smul.addr %s423, 64
          %s425 = scalar_lea.vmem [#allocation3], %s424
          %s427 = ssub.s32 1024, 1024
          %428 = vsyncadd %s422, %s427
          %s429 = smul.addr %s27, 16
          %s430 = smul.addr %s429, 64
          %s431 = scalar_lea.hbm %s0, %s430
          %s432 = sshll.u32 %s425, 4
          %s433 = int_to_ptr.vmem [resolvable:$true] %s432
          %438 = dma.hbm_to_vmem [thread:$0]  %s431, 1024, %s433, %s422, 64, 64, 4
        $region64: #{tpu_custom_call.1} parent=59 // pred_fallthru
          _
        // Predicated region
        $region65: #{tpu_custom_call.1} parent=59 // pred_check
          %p439 = pneg %p73
        $region66: #{tpu_custom_call.1} parent=59 // pred_check_branch
          %441 = sbr.rel (%p439) target = $region68
        $region67: #{tpu_custom_call.1} parent=59 // pred_region
          %p442 = scmp.lt.s32.totalorder %s27, 1
          %s443 = scalar_select %p442, %s27, 1
          %s444 = scalar_lea.vmem %s1, %s443
        $region68: #{tpu_custom_call.1} parent=59 // pred_fallthru
          _
      $region60: #{tpu_custom_call.1} parent=5 // pred_fallthru
        _
      %p445 = scmp.le.s32.totalorder 1, %s27
      %p446 = scmp.lt.s32.totalorder %s27, 3
      %p447 = pnand %p445, %p446
      %p448 = pneg %p447
      // Predicated region
      $region69: #{tpu_custom_call.1} parent=5 // pred_check
        _
      $region70: #{tpu_custom_call.1} parent=5 // pred_check_branch
        %450 = sbr.rel (%p447) target = $region72
      $region71: #{tpu_custom_call.1} parent=5 // pred_region
        %s451 = ssub.s32 %s27, 1
        %s452 = sand.u32 %s40, 1
        %s453 = scalar_lea.sflag [#allocation4], %s452
        %s454 = sand.u32 %s40, 1
        %s455 = smul.addr %s454, 64
        %s456 = scalar_lea.vmem [#allocation3], %s455
        // Predicated region
        $region73: #{tpu_custom_call.1} parent=71 // pred_check
          %p457 = pneg %p53
        $region74: #{tpu_custom_call.1} parent=71 // pred_check_branch
          %459 = sbr.rel (%p457) target = $region76
        $region75: #{tpu_custom_call.1} parent=71 // pred_region
          %460 = dma.done %s453, 1024
        $region76: #{tpu_custom_call.1} parent=71 // pred_fallthru
          _
        // Predicated region
        $region77: #{tpu_custom_call.1} parent=71 // pred_check
          %p461 = pneg %p142
        $region78: #{tpu_custom_call.1} parent=71 // pred_check_branch
          %463 = sbr.rel (%p461) target = $region80
        $region79: #{tpu_custom_call.1} parent=71 // pred_region
          %464 = dma.done [#allocation7], 12288
        $region80: #{tpu_custom_call.1} parent=71 // pred_fallthru
          _
        // Predicated region
        $region81: #{tpu_custom_call.1} parent=71 // pred_check
          %p465 = pneg %p247
        $region82: #{tpu_custom_call.1} parent=71 // pred_check_branch
          %467 = sbr.rel (%p465) target = $region84
        $region83: #{tpu_custom_call.1} parent=71 // pred_region
          %468 = dma.done [#allocation7], 1024
        $region84: #{tpu_custom_call.1} parent=71 // pred_fallthru
          _
        // Predicated region
        $region85: #{tpu_custom_call.1} parent=71 // pred_check
          %p469 = pneg %p289
        $region86: #{tpu_custom_call.1} parent=71 // pred_check_branch
          %471 = sbr.rel (%p469) target = $region88
        $region87: #{tpu_custom_call.1} parent=71 // pred_region
          %472 = dma.done [#allocation10], 1024
        $region88: #{tpu_custom_call.1} parent=71 // pred_fallthru
          _
        %s473 = sand.u32 %s40, 1
        %s474 = scalar_lea.sflag [#allocation4], %s473
        %s475 = sand.u32 %s40, 1
        %s476 = smul.addr %s475, 64
        %s477 = scalar_lea.vmem [#allocation3], %s476
        %p478 = pneg %p53
        %p479 = pneg %p50
        %p480 = scmp.lt.s32.totalorder %s32, 1
        %s481 = scalar_select %p480, %s32, 1
        %s482 = scalar_lea.vmem %s1, %s481
        %p483 = pneg %p79
        %p484 = pneg %p76
        %p485 = pneg %p100
        %p486 = pneg %p97
        %p487 = pneg %p121
        %p488 = pneg %p118
        %p489 = pneg %p142
        %p490 = pneg %p139
        %p491 = pneg %p163
        %p492 = pneg %p160
        %p493 = pneg %p184
        %p494 = pneg %p181
        %p495 = pneg %p205
        %p496 = pneg %p202
        %p497 = pneg %p226
        %p498 = pneg %p223
        %p499 = pneg %p247
        %p500 = pneg %p244
        %p501 = pneg %p268
        %p502 = pneg %p265
        %p503 = pneg %p289
        %p504 = pneg %p286
        %p505 = pneg %p310
        %p506 = pneg %p307
        %p507 = pneg %p336
        %p508 = pneg %p333
        %s509 = sand.u32 %s323, 1
        %s510 = scalar_lea.sflag [#allocation5], %s509
        %s511 = sand.u32 %s323, 1
        %s512 = smul.addr %s511, 64
        %s513 = scalar_lea.vmem [#allocation11], %s512
        %p514 = scmp.lt.s32.totalorder %s32, 1
        %s515 = scalar_select %p514, %s32, 1
        %s516 = scalar_lea.vmem %s1, %s515
        %v518 = vld [vmem:[%s456] sm:$0xf]
        %v519 = vld [vmem:[%s456 + $0x4] sm:$0xf]
        %v520 = vld [vmem:[%s456 + $0x8] sm:$0xf]
        %v521 = vld [vmem:[%s456 + $0xc] sm:$0xf]
        %v522 = vld [vmem:[%s456 + $0x10] sm:$0xf]
        %v523 = vld [vmem:[%s456 + $0x14] sm:$0xf]
        %v524 = vld [vmem:[%s456 + $0x18] sm:$0xf]
        %v525 = vld [vmem:[%s456 + $0x1c] sm:$0xf]
        %v526 = vld [vmem:[%s456 + $0x20] sm:$0xf]
        %v527 = vld [vmem:[%s456 + $0x24] sm:$0xf]
        %v528 = vld [vmem:[%s456 + $0x28] sm:$0xf]
        %v529 = vld [vmem:[%s456 + $0x2c] sm:$0xf]
        %v530 = vld [vmem:[%s456 + $0x30] sm:$0xf]
        %v531 = vld [vmem:[%s456 + $0x34] sm:$0xf]
        %v532 = vld [vmem:[%s456 + $0x38] sm:$0xf]
        %v533 = vld [vmem:[%s456 + $0x3c] sm:$0xf]
        %v534 = vunpack.c.l.bf16 %v518
        %v535 = vunpack.c.l.bf16 %v519
        %v536 = vunpack.c.l.bf16 %v520
        %v537 = vunpack.c.l.bf16 %v521
        %v538 = vunpack.c.l.bf16 %v522
        %v539 = vunpack.c.l.bf16 %v523
        %v540 = vunpack.c.l.bf16 %v524
        %v541 = vunpack.c.l.bf16 %v525
        %v542 = vunpack.c.l.bf16 %v526
        %v543 = vunpack.c.l.bf16 %v527
        %v544 = vunpack.c.l.bf16 %v528
        %v545 = vunpack.c.l.bf16 %v529
        %v546 = vunpack.c.l.bf16 %v530
        %v547 = vunpack.c.l.bf16 %v531
        %v548 = vunpack.c.l.bf16 %v532
        %v549 = vunpack.c.l.bf16 %v533
        %v550 = vld [vmem:[%s516] sm:$0x1]
        %v551 = vlaneseq
        %v552 = vand.u32 %v551, 127
        %vm553 = vcmp.lt.s32.totalorder %v552, 32
        %v554 = vsel %vm553, 1, 0
        %v555 = vcvt.s32.f32 %v554
        %vm556 = vcmp.gt.f32.partialorder %v550, 0.5
        %v557 = vsel %vm556, 0.0, -1e+30
        %v558 = vld [vmem:[%s2] sm:$0x1]
        %v559 = vld [vmem:[%s3] sm:$0x1]
        %560 = vadd.xlane.f32.xlu0 %v534
        %v561 = vpop.xlane.xlu0 %560
        %562 = vadd.xlane.f32.xlu0 %v535
        %v563 = vpop.xlane.xlu0 %562
        %564 = vadd.xlane.f32.xlu0 %v536
        %v565 = vpop.xlane.xlu0 %564
        %566 = vadd.xlane.f32.xlu0 %v537
        %v567 = vpop.xlane.xlu0 %566
        %568 = vadd.xlane.f32.xlu0 %v538
        %v569 = vpop.xlane.xlu0 %568
        %570 = vadd.xlane.f32.xlu0 %v539
        %v571 = vpop.xlane.xlu0 %570
        %572 = vadd.xlane.f32.xlu0 %v540
        %v573 = vpop.xlane.xlu0 %572
        %574 = vadd.xlane.f32.xlu0 %v541
        %v575 = vpop.xlane.xlu0 %574
        %576 = vadd.xlane.f32.xlu0 %v542
        %v577 = vpop.xlane.xlu0 %576
        %578 = vadd.xlane.f32.xlu0 %v543
        %v579 = vpop.xlane.xlu0 %578
        %580 = vadd.xlane.f32.xlu0 %v544
        %v581 = vpop.xlane.xlu0 %580
        %582 = vadd.xlane.f32.xlu0 %v545
        %v583 = vpop.xlane.xlu0 %582
        %584 = vadd.xlane.f32.xlu0 %v546
        %v585 = vpop.xlane.xlu0 %584
        %586 = vadd.xlane.f32.xlu0 %v547
        %v587 = vpop.xlane.xlu0 %586
        %588 = vadd.xlane.f32.xlu0 %v548
        %v589 = vpop.xlane.xlu0 %588
        %590 = vadd.xlane.f32.xlu0 %v549
        %v591 = vpop.xlane.xlu0 %590
        %v592 = vrcp.pop 32.0
        %v593 = vmul.f32 %v561, %v592
        %v594 = vmul.f32 %v563, %v592
        %v595 = vmul.f32 %v565, %v592
        %v596 = vmul.f32 %v567, %v592
        %v597 = vmul.f32 %v569, %v592
        %v598 = vmul.f32 %v571, %v592
        %v599 = vmul.f32 %v573, %v592
        %v600 = vmul.f32 %v575, %v592
        %v601 = vmul.f32 %v577, %v592
        %v602 = vmul.f32 %v579, %v592
        %v603 = vmul.f32 %v581, %v592
        %v604 = vmul.f32 %v583, %v592
        %v605 = vmul.f32 %v585, %v592
        %v606 = vmul.f32 %v587, %v592
        %v607 = vmul.f32 %v589, %v592
        %v608 = vmul.f32 %v591, %v592
        %v609 = vsub.f32 %v534, %v593
        %v610 = vsub.f32 %v535, %v594
        %v611 = vsub.f32 %v536, %v595
        %v612 = vsub.f32 %v537, %v596
        %v613 = vsub.f32 %v538, %v597
        %v614 = vsub.f32 %v539, %v598
        %v615 = vsub.f32 %v540, %v599
        %v616 = vsub.f32 %v541, %v600
        %v617 = vsub.f32 %v542, %v601
        %v618 = vsub.f32 %v543, %v602
        %v619 = vsub.f32 %v544, %v603
        %v620 = vsub.f32 %v545, %v604
        %v621 = vsub.f32 %v546, %v605
        %v622 = vsub.f32 %v547, %v606
        %v623 = vsub.f32 %v548, %v607
        %v624 = vsub.f32 %v549, %v608
        %v625 = vmul.f32 %v609, %v555
        %v626 = vmul.f32 %v610, %v555
        %v627 = vmul.f32 %v611, %v555
        %v628 = vmul.f32 %v612, %v555
        %v629 = vmul.f32 %v613, %v555
        %v630 = vmul.f32 %v614, %v555
        %v631 = vmul.f32 %v615, %v555
        %v632 = vmul.f32 %v616, %v555
        %v633 = vmul.f32 %v617, %v555
        %v634 = vmul.f32 %v618, %v555
        %v635 = vmul.f32 %v619, %v555
        %v636 = vmul.f32 %v620, %v555
        %v637 = vmul.f32 %v621, %v555
        %v638 = vmul.f32 %v622, %v555
        %v639 = vmul.f32 %v623, %v555
        %v640 = vmul.f32 %v624, %v555
        %v641 = vmul.f32 %v625, %v625
        %v642 = vmul.f32 %v626, %v626
        %v643 = vmul.f32 %v627, %v627
        %v644 = vmul.f32 %v628, %v628
        %v645 = vmul.f32 %v629, %v629
        %v646 = vmul.f32 %v630, %v630
        %v647 = vmul.f32 %v631, %v631
        %v648 = vmul.f32 %v632, %v632
        %v649 = vmul.f32 %v633, %v633
        %v650 = vmul.f32 %v634, %v634
        %v651 = vmul.f32 %v635, %v635
        %v652 = vmul.f32 %v636, %v636
        %v653 = vmul.f32 %v637, %v637
        %v654 = vmul.f32 %v638, %v638
        %v655 = vmul.f32 %v639, %v639
        %v656 = vmul.f32 %v640, %v640
        %657 = vadd.xlane.f32.xlu0 %v641
        %v658 = vpop.xlane.xlu0 %657
        %659 = vadd.xlane.f32.xlu0 %v642
        %v660 = vpop.xlane.xlu0 %659
        %661 = vadd.xlane.f32.xlu0 %v643
        %v662 = vpop.xlane.xlu0 %661
        %663 = vadd.xlane.f32.xlu0 %v644
        %v664 = vpop.xlane.xlu0 %663
        %665 = vadd.xlane.f32.xlu0 %v645
        %v666 = vpop.xlane.xlu0 %665
        %667 = vadd.xlane.f32.xlu0 %v646
        %v668 = vpop.xlane.xlu0 %667
        %669 = vadd.xlane.f32.xlu0 %v647
        %v670 = vpop.xlane.xlu0 %669
        %671 = vadd.xlane.f32.xlu0 %v648
        %v672 = vpop.xlane.xlu0 %671
        %673 = vadd.xlane.f32.xlu0 %v649
        %v674 = vpop.xlane.xlu0 %673
        %675 = vadd.xlane.f32.xlu0 %v650
        %v676 = vpop.xlane.xlu0 %675
        %677 = vadd.xlane.f32.xlu0 %v651
        %v678 = vpop.xlane.xlu0 %677
        %679 = vadd.xlane.f32.xlu0 %v652
        %v680 = vpop.xlane.xlu0 %679
        %681 = vadd.xlane.f32.xlu0 %v653
        %v682 = vpop.xlane.xlu0 %681
        %683 = vadd.xlane.f32.xlu0 %v654
        %v684 = vpop.xlane.xlu0 %683
        %685 = vadd.xlane.f32.xlu0 %v655
        %v686 = vpop.xlane.xlu0 %685
        %687 = vadd.xlane.f32.xlu0 %v656
        %v688 = vpop.xlane.xlu0 %687
        %v689 = vmul.f32 %v658, %v592
        %v690 = vmul.f32 %v660, %v592
        %v691 = vmul.f32 %v662, %v592
        %v692 = vmul.f32 %v664, %v592
        %v693 = vmul.f32 %v666, %v592
        %v694 = vmul.f32 %v668, %v592
        %v695 = vmul.f32 %v670, %v592
        %v696 = vmul.f32 %v672, %v592
        %v697 = vmul.f32 %v674, %v592
        %v698 = vmul.f32 %v676, %v592
        %v699 = vmul.f32 %v678, %v592
        %v700 = vmul.f32 %v680, %v592
        %v701 = vmul.f32 %v682, %v592
        %v702 = vmul.f32 %v684, %v592
        %v703 = vmul.f32 %v686, %v592
        %v704 = vmul.f32 %v688, %v592
        %v705 = vadd.f32 %v689, 1e-05
        %v706 = vadd.f32 %v690, 1e-05
        %v707 = vadd.f32 %v691, 1e-05
        %v708 = vadd.f32 %v692, 1e-05
        %v709 = vadd.f32 %v693, 1e-05
        %v710 = vadd.f32 %v694, 1e-05
        %v711 = vadd.f32 %v695, 1e-05
        %v712 = vadd.f32 %v696, 1e-05
        %v713 = vadd.f32 %v697, 1e-05
        %v714 = vadd.f32 %v698, 1e-05
        %v715 = vadd.f32 %v699, 1e-05
        %v716 = vadd.f32 %v700, 1e-05
        %v717 = vadd.f32 %v701, 1e-05
        %v718 = vadd.f32 %v702, 1e-05
        %v719 = vadd.f32 %v703, 1e-05
        %v720 = vadd.f32 %v704, 1e-05
        %v721 = vrsqrt.pop %v705
        %v722 = vrsqrt.pop %v706
        %v723 = vrsqrt.pop %v707
        %v724 = vrsqrt.pop %v708
        %v725 = vrsqrt.pop %v709
        %v726 = vrsqrt.pop %v710
        %v727 = vrsqrt.pop %v711
        %v728 = vrsqrt.pop %v712
        %v729 = vrsqrt.pop %v713
        %v730 = vrsqrt.pop %v714
        %v731 = vrsqrt.pop %v715
        %v732 = vrsqrt.pop %v716
        %v733 = vrsqrt.pop %v717
        %v734 = vrsqrt.pop %v718
        %v735 = vrsqrt.pop %v719
        %v736 = vrsqrt.pop %v720
        %v737 = vmul.f32 %v625, %v721
        %v738 = vmul.f32 %v626, %v722
        %v739 = vmul.f32 %v627, %v723
        %v740 = vmul.f32 %v628, %v724
        %v741 = vmul.f32 %v629, %v725
        %v742 = vmul.f32 %v630, %v726
        %v743 = vmul.f32 %v631, %v727
        %v744 = vmul.f32 %v632, %v728
        %v745 = vmul.f32 %v633, %v729
        %v746 = vmul.f32 %v634, %v730
        %v747 = vmul.f32 %v635, %v731
        %v748 = vmul.f32 %v636, %v732
        %v749 = vmul.f32 %v637, %v733
        %v750 = vmul.f32 %v638, %v734
        %v751 = vmul.f32 %v639, %v735
        %v752 = vmul.f32 %v640, %v736
        %v754 = vlaneseq
        %v755 = vshrl.u32 %v754, 7
        %v756 = vsub.s32 0, %v755
        %v757 = vrot.slane %v558, %v756
        %v759 = vmul.f32 %v737, %v757
        %v760 = vmul.f32 %v738, %v757
        %v761 = vmul.f32 %v739, %v757
        %v762 = vmul.f32 %v740, %v757
        %v763 = vmul.f32 %v741, %v757
        %v764 = vmul.f32 %v742, %v757
        %v765 = vmul.f32 %v743, %v757
        %v766 = vmul.f32 %v744, %v757
        %v767 = vmul.f32 %v745, %v757
        %v768 = vmul.f32 %v746, %v757
        %v769 = vmul.f32 %v747, %v757
        %v770 = vmul.f32 %v748, %v757
        %v771 = vmul.f32 %v749, %v757
        %v772 = vmul.f32 %v750, %v757
        %v773 = vmul.f32 %v751, %v757
        %v774 = vmul.f32 %v752, %v757
        %v776 = vlaneseq
        %v777 = vshrl.u32 %v776, 7
        %v778 = vsub.s32 0, %v777
        %v779 = vrot.slane %v559, %v778
        %v781 = vadd.f32 %v759, %v779
        %v782 = vadd.f32 %v760, %v779
        %v783 = vadd.f32 %v761, %v779
        %v784 = vadd.f32 %v762, %v779
        %v785 = vadd.f32 %v763, %v779
        %v786 = vadd.f32 %v764, %v779
        %v787 = vadd.f32 %v765, %v779
        %v788 = vadd.f32 %v766, %v779
        %v789 = vadd.f32 %v767, %v779
        %v790 = vadd.f32 %v768, %v779
        %v791 = vadd.f32 %v769, %v779
        %v792 = vadd.f32 %v770, %v779
        %v793 = vadd.f32 %v771, %v779
        %v794 = vadd.f32 %v772, %v779
        %v795 = vadd.f32 %v773, %v779
        %v796 = vadd.f32 %v774, %v779
        %v797 = vpack.c.bf16 %v782, %v781
        %v798 = vpack.c.bf16 %v784, %v783
        %v799 = vpack.c.bf16 %v786, %v785
        %v800 = vpack.c.bf16 %v788, %v787
        %v801 = vpack.c.bf16 %v790, %v789
        %v802 = vpack.c.bf16 %v792, %v791
        %v803 = vpack.c.bf16 %v794, %v793
        %v804 = vpack.c.bf16 %v796, %v795
        %v805 = vld [vmem:[#allocation6] sm:$0xff]
        %v806 = vld [vmem:[#allocation6 + $0x8] sm:$0xff]
        %v807 = vld [vmem:[#allocation6 + $0x10] sm:$0xff]
        %v808 = vld [vmem:[#allocation6 + $0x18] sm:$0xff]
        %v809 = vld [vmem:[#allocation6 + $0x20] sm:$0xff]
        %v810 = vld [vmem:[#allocation6 + $0x28] sm:$0xff]
        %v811 = vld [vmem:[#allocation6 + $0x30] sm:$0xff]
        %v812 = vld [vmem:[#allocation6 + $0x38] sm:$0xff]
        %v813 = vld [vmem:[#allocation6 + $0x40] sm:$0xff]
        %v814 = vld [vmem:[#allocation6 + $0x48] sm:$0xff]
        %v815 = vld [vmem:[#allocation6 + $0x50] sm:$0xff]
        %v816 = vld [vmem:[#allocation6 + $0x58] sm:$0xff]
        %v817 = vld [vmem:[#allocation6 + $0x60] sm:$0xff]
        %v818 = vld [vmem:[#allocation6 + $0x68] sm:$0xff]
        %v819 = vld [vmem:[#allocation6 + $0x70] sm:$0xff]
        %v820 = vld [vmem:[#allocation6 + $0x78] sm:$0xff]
        %v821 = vld [vmem:[#allocation6 + $0x80] sm:$0xff]
        %v822 = vld [vmem:[#allocation6 + $0x88] sm:$0xff]
        %v823 = vld [vmem:[#allocation6 + $0x90] sm:$0xff]
        %v824 = vld [vmem:[#allocation6 + $0x98] sm:$0xff]
        %v825 = vld [vmem:[#allocation6 + $0xa0] sm:$0xff]
        %v826 = vld [vmem:[#allocation6 + $0xa8] sm:$0xff]
        %v827 = vld [vmem:[#allocation6 + $0xb0] sm:$0xff]
        %v828 = vld [vmem:[#allocation6 + $0xb8] sm:$0xff]
        %v829 = vld [vmem:[#allocation6 + $0xc0] sm:$0xff]
        %v830 = vld [vmem:[#allocation6 + $0xc8] sm:$0xff]
        %v831 = vld [vmem:[#allocation6 + $0xd0] sm:$0xff]
        %v832 = vld [vmem:[#allocation6 + $0xd8] sm:$0xff]
        %v833 = vld [vmem:[#allocation6 + $0xe0] sm:$0xff]
        %v834 = vld [vmem:[#allocation6 + $0xe8] sm:$0xff]
        %v835 = vld [vmem:[#allocation6 + $0xf0] sm:$0xff]
        %v836 = vld [vmem:[#allocation6 + $0xf8] sm:$0xff]
        %v837 = vld [vmem:[#allocation6 + $0x100] sm:$0xff]
        %v838 = vld [vmem:[#allocation6 + $0x108] sm:$0xff]
        %v839 = vld [vmem:[#allocation6 + $0x110] sm:$0xff]
        %v840 = vld [vmem:[#allocation6 + $0x118] sm:$0xff]
        %v841 = vld [vmem:[#allocation6 + $0x120] sm:$0xff]
        %v842 = vld [vmem:[#allocation6 + $0x128] sm:$0xff]
        %v843 = vld [vmem:[#allocation6 + $0x130] sm:$0xff]
        %v844 = vld [vmem:[#allocation6 + $0x138] sm:$0xff]
        %v845 = vld [vmem:[#allocation6 + $0x140] sm:$0xff]
        %v846 = vld [vmem:[#allocation6 + $0x148] sm:$0xff]
        %v847 = vld [vmem:[#allocation6 + $0x150] sm:$0xff]
        %v848 = vld [vmem:[#allocation6 + $0x158] sm:$0xff]
        %v849 = vld [vmem:[#allocation6 + $0x160] sm:$0xff]
        %v850 = vld [vmem:[#allocation6 + $0x168] sm:$0xff]
        %v851 = vld [vmem:[#allocation6 + $0x170] sm:$0xff]
        %v852 = vld [vmem:[#allocation6 + $0x178] sm:$0xff]
        %v853 = vld [vmem:[#allocation6 + $0x180] sm:$0xff]
        %v854 = vld [vmem:[#allocation6 + $0x188] sm:$0xff]
        %v855 = vld [vmem:[#allocation6 + $0x190] sm:$0xff]
        %v856 = vld [vmem:[#allocation6 + $0x198] sm:$0xff]
        %v857 = vld [vmem:[#allocation6 + $0x1a0] sm:$0xff]
        %v858 = vld [vmem:[#allocation6 + $0x1a8] sm:$0xff]
        %v859 = vld [vmem:[#allocation6 + $0x1b0] sm:$0xff]
        %v860 = vld [vmem:[#allocation6 + $0x1b8] sm:$0xff]
        %v861 = vld [vmem:[#allocation6 + $0x1c0] sm:$0xff]
        %v862 = vld [vmem:[#allocation6 + $0x1c8] sm:$0xff]
        %v863 = vld [vmem:[#allocation6 + $0x1d0] sm:$0xff]
        %v864 = vld [vmem:[#allocation6 + $0x1d8] sm:$0xff]
        %v865 = vld [vmem:[#allocation6 + $0x1e0] sm:$0xff]
        %v866 = vld [vmem:[#allocation6 + $0x1e8] sm:$0xff]
        %v867 = vld [vmem:[#allocation6 + $0x1f0] sm:$0xff]
        %v868 = vld [vmem:[#allocation6 + $0x1f8] sm:$0xff]
        %v869 = vld [vmem:[#allocation6 + $0x200] sm:$0xff]
        %v870 = vld [vmem:[#allocation6 + $0x208] sm:$0xff]
        %v871 = vld [vmem:[#allocation6 + $0x210] sm:$0xff]
        %v872 = vld [vmem:[#allocation6 + $0x218] sm:$0xff]
        %v873 = vld [vmem:[#allocation6 + $0x220] sm:$0xff]
        %v874 = vld [vmem:[#allocation6 + $0x228] sm:$0xff]
        %v875 = vld [vmem:[#allocation6 + $0x230] sm:$0xff]
        %v876 = vld [vmem:[#allocation6 + $0x238] sm:$0xff]
        %v877 = vld [vmem:[#allocation6 + $0x240] sm:$0xff]
        %v878 = vld [vmem:[#allocation6 + $0x248] sm:$0xff]
        %v879 = vld [vmem:[#allocation6 + $0x250] sm:$0xff]
        %v880 = vld [vmem:[#allocation6 + $0x258] sm:$0xff]
        %v881 = vld [vmem:[#allocation6 + $0x260] sm:$0xff]
        %v882 = vld [vmem:[#allocation6 + $0x268] sm:$0xff]
        %v883 = vld [vmem:[#allocation6 + $0x270] sm:$0xff]
        %v884 = vld [vmem:[#allocation6 + $0x278] sm:$0xff]
        %v885 = vld [vmem:[#allocation6 + $0x280] sm:$0xff]
        %v886 = vld [vmem:[#allocation6 + $0x288] sm:$0xff]
        %v887 = vld [vmem:[#allocation6 + $0x290] sm:$0xff]
        %v888 = vld [vmem:[#allocation6 + $0x298] sm:$0xff]
        %v889 = vld [vmem:[#allocation6 + $0x2a0] sm:$0xff]
        %v890 = vld [vmem:[#allocation6 + $0x2a8] sm:$0xff]
        %v891 = vld [vmem:[#allocation6 + $0x2b0] sm:$0xff]
        %v892 = vld [vmem:[#allocation6 + $0x2b8] sm:$0xff]
        %v893 = vld [vmem:[#allocation6 + $0x2c0] sm:$0xff]
        %v894 = vld [vmem:[#allocation6 + $0x2c8] sm:$0xff]
        %v895 = vld [vmem:[#allocation6 + $0x2d0] sm:$0xff]
        %v896 = vld [vmem:[#allocation6 + $0x2d8] sm:$0xff]
        %v897 = vld [vmem:[#allocation6 + $0x2e0] sm:$0xff]
        %v898 = vld [vmem:[#allocation6 + $0x2e8] sm:$0xff]
        %v899 = vld [vmem:[#allocation6 + $0x2f0] sm:$0xff]
        %v900 = vld [vmem:[#allocation6 + $0x2f8] sm:$0xff]
        %v997 = vunpack.c.l.b16 %v805
        %v998 = vunpack.c.h.b16 %v805
        %v999 = vunpack.c.l.b16 %v806
        %v1000 = vunpack.c.h.b16 %v806
        %v1001 = vunpack.c.l.b16 %v807
        %v1002 = vunpack.c.h.b16 %v807
        %v1003 = vunpack.c.l.b16 %v808
        %v1004 = vunpack.c.h.b16 %v808
        %v1005 = vunpack.c.l.b16 %v809
        %v1006 = vunpack.c.h.b16 %v809
        %v1007 = vunpack.c.l.b16 %v810
        %v1008 = vunpack.c.h.b16 %v810
        %v1009 = vunpack.c.l.b16 %v811
        %v1010 = vunpack.c.h.b16 %v811
        %v1011 = vunpack.c.l.b16 %v812
        %v1012 = vunpack.c.h.b16 %v812
        %v1013 = vunpack.c.l.b16 %v813
        %v1014 = vunpack.c.h.b16 %v813
        %v1015 = vunpack.c.l.b16 %v814
        %v1016 = vunpack.c.h.b16 %v814
        %v1017 = vunpack.c.l.b16 %v815
        %v1018 = vunpack.c.h.b16 %v815
        %v1019 = vunpack.c.l.b16 %v816
        %v1020 = vunpack.c.h.b16 %v816
        %v1021 = vunpack.c.l.b16 %v817
        %v1022 = vunpack.c.h.b16 %v817
        %v1023 = vunpack.c.l.b16 %v818
        %v1024 = vunpack.c.h.b16 %v818
        %v1025 = vunpack.c.l.b16 %v819
        %v1026 = vunpack.c.h.b16 %v819
        %v1027 = vunpack.c.l.b16 %v820
        %v1028 = vunpack.c.h.b16 %v820
        %v1029 = vunpack.c.l.b16 %v821
        %v1030 = vunpack.c.h.b16 %v821
        %v1031 = vunpack.c.l.b16 %v822
        %v1032 = vunpack.c.h.b16 %v822
        %v1033 = vunpack.c.l.b16 %v823
        %v1034 = vunpack.c.h.b16 %v823
        %v1035 = vunpack.c.l.b16 %v824
        %v1036 = vunpack.c.h.b16 %v824
        %v1037 = vunpack.c.l.b16 %v825
        %v1038 = vunpack.c.h.b16 %v825
        %v1039 = vunpack.c.l.b16 %v826
        %v1040 = vunpack.c.h.b16 %v826
        %v1041 = vunpack.c.l.b16 %v827
        %v1042 = vunpack.c.h.b16 %v827
        %v1043 = vunpack.c.l.b16 %v828
        %v1044 = vunpack.c.h.b16 %v828
        %v1045 = vunpack.c.l.b16 %v829
        %v1046 = vunpack.c.h.b16 %v829
        %v1047 = vunpack.c.l.b16 %v830
        %v1048 = vunpack.c.h.b16 %v830
        %v1049 = vunpack.c.l.b16 %v831
        %v1050 = vunpack.c.h.b16 %v831
        %v1051 = vunpack.c.l.b16 %v832
        %v1052 = vunpack.c.h.b16 %v832
        %v1053 = vunpack.c.l.b16 %v833
        %v1054 = vunpack.c.h.b16 %v833
        %v1055 = vunpack.c.l.b16 %v834
        %v1056 = vunpack.c.h.b16 %v834
        %v1057 = vunpack.c.l.b16 %v835
        %v1058 = vunpack.c.h.b16 %v835
        %v1059 = vunpack.c.l.b16 %v836
        %v1060 = vunpack.c.h.b16 %v836
        %v1061 = vunpack.c.l.b16 %v837
        %v1062 = vunpack.c.h.b16 %v837
        %v1063 = vunpack.c.l.b16 %v838
        %v1064 = vunpack.c.h.b16 %v838
        %v1065 = vunpack.c.l.b16 %v839
        %v1066 = vunpack.c.h.b16 %v839
        %v1067 = vunpack.c.l.b16 %v840
        %v1068 = vunpack.c.h.b16 %v840
        %v1069 = vunpack.c.l.b16 %v841
        %v1070 = vunpack.c.h.b16 %v841
        %v1071 = vunpack.c.l.b16 %v842
        %v1072 = vunpack.c.h.b16 %v842
        %v1073 = vunpack.c.l.b16 %v843
        %v1074 = vunpack.c.h.b16 %v843
        %v1075 = vunpack.c.l.b16 %v844
        %v1076 = vunpack.c.h.b16 %v844
        %v1077 = vunpack.c.l.b16 %v845
        %v1078 = vunpack.c.h.b16 %v845
        %v1079 = vunpack.c.l.b16 %v846
        %v1080 = vunpack.c.h.b16 %v846
        %v1081 = vunpack.c.l.b16 %v847
        %v1082 = vunpack.c.h.b16 %v847
        %v1083 = vunpack.c.l.b16 %v848
        %v1084 = vunpack.c.h.b16 %v848
        %v1085 = vunpack.c.l.b16 %v849
        %v1086 = vunpack.c.h.b16 %v849
        %v1087 = vunpack.c.l.b16 %v850
        %v1088 = vunpack.c.h.b16 %v850
        %v1089 = vunpack.c.l.b16 %v851
        %v1090 = vunpack.c.h.b16 %v851
        %v1091 = vunpack.c.l.b16 %v852
        %v1092 = vunpack.c.h.b16 %v852
        %v1093 = vunpack.c.l.b16 %v853
        %v1094 = vunpack.c.h.b16 %v853
        %v1095 = vunpack.c.l.b16 %v854
        %v1096 = vunpack.c.h.b16 %v854
        %v1097 = vunpack.c.l.b16 %v855
        %v1098 = vunpack.c.h.b16 %v855
        %v1099 = vunpack.c.l.b16 %v856
        %v1100 = vunpack.c.h.b16 %v856
        %v1101 = vunpack.c.l.b16 %v857
        %v1102 = vunpack.c.h.b16 %v857
        %v1103 = vunpack.c.l.b16 %v858
        %v1104 = vunpack.c.h.b16 %v858
        %v1105 = vunpack.c.l.b16 %v859
        %v1106 = vunpack.c.h.b16 %v859
        %v1107 = vunpack.c.l.b16 %v860
        %v1108 = vunpack.c.h.b16 %v860
        %v1109 = vunpack.c.l.b16 %v861
        %v1110 = vunpack.c.h.b16 %v861
        %v1111 = vunpack.c.l.b16 %v862
        %v1112 = vunpack.c.h.b16 %v862
        %v1113 = vunpack.c.l.b16 %v863
        %v1114 = vunpack.c.h.b16 %v863
        %v1115 = vunpack.c.l.b16 %v864
        %v1116 = vunpack.c.h.b16 %v864
        %v1117 = vunpack.c.l.b16 %v865
        %v1118 = vunpack.c.h.b16 %v865
        %v1119 = vunpack.c.l.b16 %v866
        %v1120 = vunpack.c.h.b16 %v866
        %v1121 = vunpack.c.l.b16 %v867
        %v1122 = vunpack.c.h.b16 %v867
        %v1123 = vunpack.c.l.b16 %v868
        %v1124 = vunpack.c.h.b16 %v868
        %v1125 = vunpack.c.l.b16 %v869
        %v1126 = vunpack.c.h.b16 %v869
        %v1127 = vunpack.c.l.b16 %v870
        %v1128 = vunpack.c.h.b16 %v870
        %v1129 = vunpack.c.l.b16 %v871
        %v1130 = vunpack.c.h.b16 %v871
        %v1131 = vunpack.c.l.b16 %v872
        %v1132 = vunpack.c.h.b16 %v872
        %v1133 = vunpack.c.l.b16 %v873
        %v1134 = vunpack.c.h.b16 %v873
        %v1135 = vunpack.c.l.b16 %v874
        %v1136 = vunpack.c.h.b16 %v874
        %v1137 = vunpack.c.l.b16 %v875
        %v1138 = vunpack.c.h.b16 %v875
        %v1139 = vunpack.c.l.b16 %v876
        %v1140 = vunpack.c.h.b16 %v876
        %v1141 = vunpack.c.l.b16 %v877
        %v1142 = vunpack.c.h.b16 %v877
        %v1143 = vunpack.c.l.b16 %v878
        %v1144 = vunpack.c.h.b16 %v878
        %v1145 = vunpack.c.l.b16 %v879
        %v1146 = vunpack.c.h.b16 %v879
        %v1147 = vunpack.c.l.b16 %v880
        %v1148 = vunpack.c.h.b16 %v880
        %v1149 = vunpack.c.l.b16 %v881
        %v1150 = vunpack.c.h.b16 %v881
        %v1151 = vunpack.c.l.b16 %v882
        %v1152 = vunpack.c.h.b16 %v882
        %v1153 = vunpack.c.l.b16 %v883
        %v1154 = vunpack.c.h.b16 %v883
        %v1155 = vunpack.c.l.b16 %v884
        %v1156 = vunpack.c.h.b16 %v884
        %v1157 = vunpack.c.l.b16 %v885
        %v1158 = vunpack.c.h.b16 %v885
        %v1159 = vunpack.c.l.b16 %v886
        %v1160 = vunpack.c.h.b16 %v886
        %v1161 = vunpack.c.l.b16 %v887
        %v1162 = vunpack.c.h.b16 %v887
        %v1163 = vunpack.c.l.b16 %v888
        %v1164 = vunpack.c.h.b16 %v888
        %v1165 = vunpack.c.l.b16 %v889
        %v1166 = vunpack.c.h.b16 %v889
        %v1167 = vunpack.c.l.b16 %v890
        %v1168 = vunpack.c.h.b16 %v890
        %v1169 = vunpack.c.l.b16 %v891
        %v1170 = vunpack.c.h.b16 %v891
        %v1171 = vunpack.c.l.b16 %v892
        %v1172 = vunpack.c.h.b16 %v892
        %v1173 = vunpack.c.l.b16 %v893
        %v1174 = vunpack.c.h.b16 %v893
        %v1175 = vunpack.c.l.b16 %v894
        %v1176 = vunpack.c.h.b16 %v894
        %v1177 = vunpack.c.l.b16 %v895
        %v1178 = vunpack.c.h.b16 %v895
        %v1179 = vunpack.c.l.b16 %v896
        %v1180 = vunpack.c.h.b16 %v896
        %v1181 = vunpack.c.l.b16 %v897
        %v1182 = vunpack.c.h.b16 %v897
        %v1183 = vunpack.c.l.b16 %v898
        %v1184 = vunpack.c.h.b16 %v898
        %v1185 = vunpack.c.l.b16 %v899
        %v1186 = vunpack.c.h.b16 %v899
        %v1187 = vunpack.c.l.b16 %v900
        %v1188 = vunpack.c.h.b16 %v900
        %v1189 = vpack.c.b16 %v1009, %v997
        %v1190 = vpack.c.b16 %v1010, %v998
        %v1191 = vpack.c.b16 %v1011, %v999
        %v1192 = vpack.c.b16 %v1012, %v1000
        %v1193 = vpack.c.b16 %v1013, %v1001
        %v1194 = vpack.c.b16 %v1014, %v1002
        %v1195 = vpack.c.b16 %v1015, %v1003
        %v1196 = vpack.c.b16 %v1016, %v1004
        %v1197 = vpack.c.b16 %v1017, %v1005
        %v1198 = vpack.c.b16 %v1018, %v1006
        %v1199 = vpack.c.b16 %v1019, %v1007
        %v1200 = vpack.c.b16 %v1020, %v1008
        %v1201 = vpack.c.b16 %v1033, %v1021
        %v1202 = vpack.c.b16 %v1034, %v1022
        %v1203 = vpack.c.b16 %v1035, %v1023
        %v1204 = vpack.c.b16 %v1036, %v1024
        %v1205 = vpack.c.b16 %v1037, %v1025
        %v1206 = vpack.c.b16 %v1038, %v1026
        %v1207 = vpack.c.b16 %v1039, %v1027
        %v1208 = vpack.c.b16 %v1040, %v1028
        %v1209 = vpack.c.b16 %v1041, %v1029
        %v1210 = vpack.c.b16 %v1042, %v1030
        %v1211 = vpack.c.b16 %v1043, %v1031
        %v1212 = vpack.c.b16 %v1044, %v1032
        %v1213 = vpack.c.b16 %v1057, %v1045
        %v1214 = vpack.c.b16 %v1058, %v1046
        %v1215 = vpack.c.b16 %v1059, %v1047
        %v1216 = vpack.c.b16 %v1060, %v1048
        %v1217 = vpack.c.b16 %v1061, %v1049
        %v1218 = vpack.c.b16 %v1062, %v1050
        %v1219 = vpack.c.b16 %v1063, %v1051
        %v1220 = vpack.c.b16 %v1064, %v1052
        %v1221 = vpack.c.b16 %v1065, %v1053
        %v1222 = vpack.c.b16 %v1066, %v1054
        %v1223 = vpack.c.b16 %v1067, %v1055
        %v1224 = vpack.c.b16 %v1068, %v1056
        %v1225 = vpack.c.b16 %v1081, %v1069
        %v1226 = vpack.c.b16 %v1082, %v1070
        %v1227 = vpack.c.b16 %v1083, %v1071
        %v1228 = vpack.c.b16 %v1084, %v1072
        %v1229 = vpack.c.b16 %v1085, %v1073
        %v1230 = vpack.c.b16 %v1086, %v1074
        %v1231 = vpack.c.b16 %v1087, %v1075
        %v1232 = vpack.c.b16 %v1088, %v1076
        %v1233 = vpack.c.b16 %v1089, %v1077
        %v1234 = vpack.c.b16 %v1090, %v1078
        %v1235 = vpack.c.b16 %v1091, %v1079
        %v1236 = vpack.c.b16 %v1092, %v1080
        %v1237 = vpack.c.b16 %v1105, %v1093
        %v1238 = vpack.c.b16 %v1106, %v1094
        %v1239 = vpack.c.b16 %v1107, %v1095
        %v1240 = vpack.c.b16 %v1108, %v1096
        %v1241 = vpack.c.b16 %v1109, %v1097
        %v1242 = vpack.c.b16 %v1110, %v1098
        %v1243 = vpack.c.b16 %v1111, %v1099
        %v1244 = vpack.c.b16 %v1112, %v1100
        %v1245 = vpack.c.b16 %v1113, %v1101
        %v1246 = vpack.c.b16 %v1114, %v1102
        %v1247 = vpack.c.b16 %v1115, %v1103
        %v1248 = vpack.c.b16 %v1116, %v1104
        %v1249 = vpack.c.b16 %v1129, %v1117
        %v1250 = vpack.c.b16 %v1130, %v1118
        %v1251 = vpack.c.b16 %v1131, %v1119
        %v1252 = vpack.c.b16 %v1132, %v1120
        %v1253 = vpack.c.b16 %v1133, %v1121
        %v1254 = vpack.c.b16 %v1134, %v1122
        %v1255 = vpack.c.b16 %v1135, %v1123
        %v1256 = vpack.c.b16 %v1136, %v1124
        %v1257 = vpack.c.b16 %v1137, %v1125
        %v1258 = vpack.c.b16 %v1138, %v1126
        %v1259 = vpack.c.b16 %v1139, %v1127
        %v1260 = vpack.c.b16 %v1140, %v1128
        %v1261 = vpack.c.b16 %v1153, %v1141
        %v1262 = vpack.c.b16 %v1154, %v1142
        %v1263 = vpack.c.b16 %v1155, %v1143
        %v1264 = vpack.c.b16 %v1156, %v1144
        %v1265 = vpack.c.b16 %v1157, %v1145
        %v1266 = vpack.c.b16 %v1158, %v1146
        %v1267 = vpack.c.b16 %v1159, %v1147
        %v1268 = vpack.c.b16 %v1160, %v1148
        %v1269 = vpack.c.b16 %v1161, %v1149
        %v1270 = vpack.c.b16 %v1162, %v1150
        %v1271 = vpack.c.b16 %v1163, %v1151
        %v1272 = vpack.c.b16 %v1164, %v1152
        %v1273 = vpack.c.b16 %v1177, %v1165
        %v1274 = vpack.c.b16 %v1178, %v1166
        %v1275 = vpack.c.b16 %v1179, %v1167
        %v1276 = vpack.c.b16 %v1180, %v1168
        %v1277 = vpack.c.b16 %v1181, %v1169
        %v1278 = vpack.c.b16 %v1182, %v1170
        %v1279 = vpack.c.b16 %v1183, %v1171
        %v1280 = vpack.c.b16 %v1184, %v1172
        %v1281 = vpack.c.b16 %v1185, %v1173
        %v1282 = vpack.c.b16 %v1186, %v1174
        %v1283 = vpack.c.b16 %v1187, %v1175
        %v1284 = vpack.c.b16 %v1188, %v1176
        %1381 = vmatprep.subr.bf16.mxu0 %v1190
        %1382 = vmatpush1.bf16.msra.mxu0 %v1189
        %1383 = vmatprep.subr.bf16.mxu0 %v1202
        %1384 = vmatpush1.bf16.msra.mxu0 %v1201
        %1385 = vmatprep.subr.bf16.mxu0 %v1214
        %1386 = vmatpush1.bf16.msra.mxu0 %v1213
        %1387 = vmatprep.subr.bf16.mxu0 %v1226
        %1388 = vmatpush1.bf16.msra.mxu0 %v1225
        %1389 = vmatprep.subr.bf16.mxu0 %v1238
        %1390 = vmatpush1.bf16.msra.mxu0 %v1237
        %1391 = vmatprep.subr.bf16.mxu0 %v1250
        %1392 = vmatpush1.bf16.msra.mxu0 %v1249
        %1393 = vmatprep.subr.bf16.mxu0 %v1262
        %1394 = vmatpush1.bf16.msra.mxu0 %v1261
        %1395 = vmatprep.subr.bf16.mxu0 %v1274
        %1396 = vmatpush1.bf16.msra.mxu0 %v1273
        %1397 = vmatprep.subr.bf16.mxu0 0
        %1398 = vmatpush1.bf16.msra.mxu0 0
        %1399 = vmatprep.subr.bf16.mxu0 0
        %1400 = vmatpush1.bf16.msra.mxu0 0
        %1401 = vmatprep.subr.bf16.mxu0 0
        %1402 = vmatpush1.bf16.msra.mxu0 0
        %1403 = vmatprep.subr.bf16.mxu0 0
        %1404 = vmatpush1.bf16.msra.mxu0 0
        %1405 = vmatprep.subr.bf16.mxu0 0
        %1406 = vmatpush1.bf16.msra.mxu0 0
        %1407 = vmatprep.subr.bf16.mxu0 0
        %1408 = vmatpush1.bf16.msra.mxu0 0
        %1409 = vmatprep.subr.bf16.mxu0 0
        %1410 = vmatpush1.bf16.msra.mxu0 0
        %1411 = vmatprep.subr.bf16.mxu0 0
        %1412 = vmatpush1.bf16.msra.mxu0 0
        %1413 = vmatprep.mubr.bf16.mxu0 0
        %1414 = vmatmul.mubr.bf16.gmra.mrb[0].mxu0 %v797
        %v1415 = vpop.f32.mrb[0].mxu0
        %v1416 = vadd.f32 0.0, %v1415
        %v1417 = vpop.f32.mrb[0].mxu0
        %v1418 = vadd.f32 0.0, %v1417
        %v1419 = vpop.f32.mrb[0].mxu0
        %v1420 = vadd.f32 0.0, %v1419
        %v1421 = vpop.f32.mrb[0].mxu0
        %v1422 = vadd.f32 0.0, %v1421
        %1423 = vmatprep.mubr.bf16.mxu0 0
        %1424 = vmatmul.mubr.bf16.gmra.mrb[0].mxu0 %v798
        %v1425 = vpop.f32.mrb[0].mxu0
        %v1426 = vadd.f32 0.0, %v1425
        %v1427 = vpop.f32.mrb[0].mxu0
        %v1428 = vadd.f32 0.0, %v1427
        %v1429 = vpop.f32.mrb[0].mxu0
        %v1430 = vadd.f32 0.0, %v1429
        %v1431 = vpop.f32.mrb[0].mxu0
        %v1432 = vadd.f32 0.0, %v1431
        %1433 = vmatprep.mubr.bf16.mxu0 0
        %1434 = vmatmul.mubr.bf16.gmra.mrb[0].mxu0 %v799
        %v1435 = vpop.f32.mrb[0].mxu0
        %v1436 = vadd.f32 0.0, %v1435
        %v1437 = vpop.f32.mrb[0].mxu0
        %v1438 = vadd.f32 0.0, %v1437
        %v1439 = vpop.f32.mrb[0].mxu0
        %v1440 = vadd.f32 0.0, %v1439
        %v1441 = vpop.f32.mrb[0].mxu0
        %v1442 = vadd.f32 0.0, %v1441
        %1443 = vmatprep.mubr.bf16.mxu0 0
        %1444 = vmatmul.mubr.bf16.gmra.mrb[0].mxu0 %v800
        %v1445 = vpop.f32.mrb[0].mxu0
        %v1446 = vadd.f32 0.0, %v1445
        %v1447 = vpop.f32.mrb[0].mxu0
        %v1448 = vadd.f32 0.0, %v1447
        %v1449 = vpop.f32.mrb[0].mxu0
        %v1450 = vadd.f32 0.0, %v1449
        %v1451 = vpop.f32.mrb[0].mxu0
        %v1452 = vadd.f32 0.0, %v1451
        %1453 = vmatprep.mubr.bf16.mxu0 0
        %1454 = vmatmul.mubr.bf16.gmra.mrb[0].mxu0 %v801
        %v1455 = vpop.f32.mrb[0].mxu0
        %v1456 = vadd.f32 0.0, %v1455
        %v1457 = vpop.f32.mrb[0].mxu0
        %v1458 = vadd.f32 0.0, %v1457
        %v1459 = vpop.f32.mrb[0].mxu0
        %v1460 = vadd.f32 0.0, %v1459
        %v1461 = vpop.f32.mrb[0].mxu0
        %v1462 = vadd.f32 0.0, %v1461
        %1463 = vmatprep.mubr.bf16.mxu0 0
        %1464 = vmatmul.mubr.bf16.gmra.mrb[0].mxu0 %v802
        %v1465 = vpop.f32.mrb[0].mxu0
        %v1466 = vadd.f32 0.0, %v1465
        %v1467 = vpop.f32.mrb[0].mxu0
        %v1468 = vadd.f32 0.0, %v1467
        %v1469 = vpop.f32.mrb[0].mxu0
        %v1470 = vadd.f32 0.0, %v1469
        %v1471 = vpop.f32.mrb[0].mxu0
        %v1472 = vadd.f32 0.0, %v1471
        %1473 = vmatprep.mubr.bf16.mxu0 0
        %1474 = vmatmul.mubr.bf16.gmra.mrb[0].mxu0 %v803
        %v1475 = vpop.f32.mrb[0].mxu0
        %v1476 = vadd.f32 0.0, %v1475
        %v1477 = vpop.f32.mrb[0].mxu0
        %v1478 = vadd.f32 0.0, %v1477
        %v1479 = vpop.f32.mrb[0].mxu0
        %v1480 = vadd.f32 0.0, %v1479
        %v1481 = vpop.f32.mrb[0].mxu0
        %v1482 = vadd.f32 0.0, %v1481
        %1483 = vmatprep.mubr.bf16.mxu0 0
        %1484 = vmatmul.mubr.bf16.gmra.mrb[0].mxu0 %v804
        %v1485 = vpop.f32.mrb[0].mxu0
        %v1486 = vadd.f32 0.0, %v1485
        %v1487 = vpop.f32.mrb[0].mxu0
        %v1488 = vadd.f32 0.0, %v1487
        %v1489 = vpop.f32.mrb[0].mxu0
        %v1490 = vadd.f32 0.0, %v1489
        %v1491 = vpop.f32.mrb[0].mxu0
        %v1492 = vadd.f32 0.0, %v1491
        %1493 = vdwg.mxu0
        %1494 = vmatprep.subr.bf16.mxu0 %v1192
        %1495 = vmatpush1.bf16.msra.mxu0 %v1191
        %1496 = vmatprep.subr.bf16.mxu0 %v1204
        %1497 = vmatpush1.bf16.msra.mxu0 %v1203
        %1498 = vmatprep.subr.bf16.mxu0 %v1216
        %1499 = vmatpush1.bf16.msra.mxu0 %v1215
        %1500 = vmatprep.subr.bf16.mxu0 %v1228
        %1501 = vmatpush1.bf16.msra.mxu0 %v1227
        %1502 = vmatprep.subr.bf16.mxu0 %v1240
        %1503 = vmatpush1.bf16.msra.mxu0 %v1239
        %1504 = vmatprep.subr.bf16.mxu0 %v1252
        %1505 = vmatpush1.bf16.msra.mxu0 %v1251
        %1506 = vmatprep.subr.bf16.mxu0 %v1264
        %1507 = vmatpush1.bf16.msra.mxu0 %v1263
        %1508 = vmatprep.subr.bf16.mxu0 %v1276
        %1509 = vmatpush1.bf16.msra.mxu0 %v1275
        %1510 = vmatprep.subr.bf16.mxu0 0
        %1511 = vmatpush1.bf16.msra.mxu0 0
        %1512 = vmatprep.subr.bf16.mxu0 0
        %1513 = vmatpush1.bf16.msra.mxu0 0
        %1514 = vmatprep.subr.bf16.mxu0 0
        %1515 = vmatpush1.bf16.msra.mxu0 0
        %1516 = vmatprep.subr.bf16.mxu0 0
        %1517 = vmatpush1.bf16.msra.mxu0 0
        %1518 = vmatprep.subr.bf16.mxu0 0
        %1519 = vmatpush1.bf16.msra.mxu0 0
        %1520 = vmatprep.subr.bf16.mxu0 0
        %1521 = vmatpush1.bf16.msra.mxu0 0
        %1522 = vmatprep.subr.bf16.mxu0 0
        %1523 = vmatpush1.bf16.msra.mxu0 0
        %1524 = vmatprep.subr.bf16.mxu0 0
        %1525 = vmatpush1.bf16.msra.mxu0 0
        %1526 = vmatprep.mubr.bf16.mxu0 0
        %1527 = vmatmul.mubr.bf16.gmra.mrb[0].mxu0 %v797
        %v1528 = vpop.f32.mrb[0].mxu0
        %v1529 = vadd.f32 0.0, %v1528
        %v1530 = vpop.f32.mrb[0].mxu0
        %v1531 = vadd.f32 0.0, %v1530
        %v1532 = vpop.f32.mrb[0].mxu0
        %v1533 = vadd.f32 0.0, %v1532
        %v1534 = vpop.f32.mrb[0].mxu0
        %v1535 = vadd.f32 0.0, %v1534
        %1536 = vmatprep.mubr.bf16.mxu0 0
        %1537 = vmatmul.mubr.bf16.gmra.mrb[0].mxu0 %v798
        %v1538 = vpop.f32.mrb[0].mxu0
        %v1539 = vadd.f32 0.0, %v1538
        %v1540 = vpop.f32.mrb[0].mxu0
        %v1541 = vadd.f32 0.0, %v1540
        %v1542 = vpop.f32.mrb[0].mxu0
        %v1543 = vadd.f32 0.0, %v1542
        %v1544 = vpop.f32.mrb[0].mxu0
        %v1545 = vadd.f32 0.0, %v1544
        %1546 = vmatprep.mubr.bf16.mxu0 0
        %1547 = vmatmul.mubr.bf16.gmra.mrb[0].mxu0 %v799
        %v1548 = vpop.f32.mrb[0].mxu0
        %v1549 = vadd.f32 0.0, %v1548
        %v1550 = vpop.f32.mrb[0].mxu0
        %v1551 = vadd.f32 0.0, %v1550
        %v1552 = vpop.f32.mrb[0].mxu0
        %v1553 = vadd.f32 0.0, %v1552
        %v1554 = vpop.f32.mrb[0].mxu0
        %v1555 = vadd.f32 0.0, %v1554
        %1556 = vmatprep.mubr.bf16.mxu0 0
        %1557 = vmatmul.mubr.bf16.gmra.mrb[0].mxu0 %v800
        %v1558 = vpop.f32.mrb[0].mxu0
        %v1559 = vadd.f32 0.0, %v1558
        %v1560 = vpop.f32.mrb[0].mxu0
        %v1561 = vadd.f32 0.0, %v1560
        %v1562 = vpop.f32.mrb[0].mxu0
        %v1563 = vadd.f32 0.0, %v1562
        %v1564 = vpop.f32.mrb[0].mxu0
        %v1565 = vadd.f32 0.0, %v1564
        %1566 = vmatprep.mubr.bf16.mxu0 0
        %1567 = vmatmul.mubr.bf16.gmra.mrb[0].mxu0 %v801
        %v1568 = vpop.f32.mrb[0].mxu0
        %v1569 = vadd.f32 0.0, %v1568
        %v1570 = vpop.f32.mrb[0].mxu0
        %v1571 = vadd.f32 0.0, %v1570
        %v1572 = vpop.f32.mrb[0].mxu0
        %v1573 = vadd.f32 0.0, %v1572
        %v1574 = vpop.f32.mrb[0].mxu0
        %v1575 = vadd.f32 0.0, %v1574
        %1576 = vmatprep.mubr.bf16.mxu0 0
        %1577 = vmatmul.mubr.bf16.gmra.mrb[0].mxu0 %v802
        %v1578 = vpop.f32.mrb[0].mxu0
        %v1579 = vadd.f32 0.0, %v1578
        %v1580 = vpop.f32.mrb[0].mxu0
        %v1581 = vadd.f32 0.0, %v1580
        %v1582 = vpop.f32.mrb[0].mxu0
        %v1583 = vadd.f32 0.0, %v1582
        %v1584 = vpop.f32.mrb[0].mxu0
        %v1585 = vadd.f32 0.0, %v1584
        %1586 = vmatprep.mubr.bf16.mxu0 0
        %1587 = vmatmul.mubr.bf16.gmra.mrb[0].mxu0 %v803
        %v1588 = vpop.f32.mrb[0].mxu0
        %v1589 = vadd.f32 0.0, %v1588
        %v1590 = vpop.f32.mrb[0].mxu0
        %v1591 = vadd.f32 0.0, %v1590
        %v1592 = vpop.f32.mrb[0].mxu0
        %v1593 = vadd.f32 0.0, %v1592
        %v1594 = vpop.f32.mrb[0].mxu0
        %v1595 = vadd.f32 0.0, %v1594
        %1596 = vmatprep.mubr.bf16.mxu0 0
        %1597 = vmatmul.mubr.bf16.gmra.mrb[0].mxu0 %v804
        %v1598 = vpop.f32.mrb[0].mxu0
        %v1599 = vadd.f32 0.0, %v1598
        %v1600 = vpop.f32.mrb[0].mxu0
        %v1601 = vadd.f32 0.0, %v1600
        %v1602 = vpop.f32.mrb[0].mxu0
        %v1603 = vadd.f32 0.0, %v1602
        %v1604 = vpop.f32.mrb[0].mxu0
        %v1605 = vadd.f32 0.0, %v1604
        %1606 = vdwg.mxu0
        %1607 = vmatprep.subr.bf16.mxu0 %v1194
        %1608 = vmatpush1.bf16.msra.mxu0 %v1193
        %1609 = vmatprep.subr.bf16.mxu0 %v1206
        %1610 = vmatpush1.bf16.msra.mxu0 %v1205
        %1611 = vmatprep.subr.bf16.mxu0 %v1218
        %1612 = vmatpush1.bf16.msra.mxu0 %v1217
        %1613 = vmatprep.subr.bf16.mxu0 %v1230
        %1614 = vmatpush1.bf16.msra.mxu0 %v1229
        %1615 = vmatprep.subr.bf16.mxu0 %v1242
        %1616 = vmatpush1.bf16.msra.mxu0 %v1241
        %1617 = vmatprep.subr.bf16.mxu0 %v1254
        %1618 = vmatpush1.bf16.msra.mxu0 %v1253
        %1619 = vmatprep.subr.bf16.mxu0 %v1266
        %1620 = vmatpush1.bf16.msra.mxu0 %v1265
        %1621 = vmatprep.subr.bf16.mxu0 %v1278
        %1622 = vmatpush1.bf16.msra.mxu0 %v1277
        %1623 = vmatprep.subr.bf16.mxu0 0
        %1624 = vmatpush1.bf16.msra.mxu0 0
        %1625 = vmatprep.subr.bf16.mxu0 0
        %1626 = vmatpush1.bf16.msra.mxu0 0
        %1627 = vmatprep.subr.bf16.mxu0 0
        %1628 = vmatpush1.bf16.msra.mxu0 0
        %1629 = vmatprep.subr.bf16.mxu0 0
        %1630 = vmatpush1.bf16.msra.mxu0 0
        %1631 = vmatprep.subr.bf16.mxu0 0
        %1632 = vmatpush1.bf16.msra.mxu0 0
        %1633 = vmatprep.subr.bf16.mxu0 0
        %1634 = vmatpush1.bf16.msra.mxu0 0
        %1635 = vmatprep.subr.bf16.mxu0 0
        %1636 = vmatpush1.bf16.msra.mxu0 0
        %1637 = vmatprep.subr.bf16.mxu0 0
        %1638 = vmatpush1.bf16.msra.mxu0 0
        %1639 = vmatprep.mubr.bf16.mxu0 0
        %1640 = vmatmul.mubr.bf16.gmra.mrb[0].mxu0 %v797
        %v1641 = vpop.f32.mrb[0].mxu0
        %v1642 = vadd.f32 0.0, %v1641
        %v1643 = vpop.f32.mrb[0].mxu0
        %v1644 = vadd.f32 0.0, %v1643
        %v1645 = vpop.f32.mrb[0].mxu0
        %v1646 = vadd.f32 0.0, %v1645
        %v1647 = vpop.f32.mrb[0].mxu0
        %v1648 = vadd.f32 0.0, %v1647
        %1649 = vmatprep.mubr.bf16.mxu0 0
        %1650 = vmatmul.mubr.bf16.gmra.mrb[0].mxu0 %v798
        %v1651 = vpop.f32.mrb[0].mxu0
        %v1652 = vadd.f32 0.0, %v1651
        %v1653 = vpop.f32.mrb[0].mxu0
        %v1654 = vadd.f32 0.0, %v1653
        %v1655 = vpop.f32.mrb[0].mxu0
        %v1656 = vadd.f32 0.0, %v1655
        %v1657 = vpop.f32.mrb[0].mxu0
        %v1658 = vadd.f32 0.0, %v1657
        %1659 = vmatprep.mubr.bf16.mxu0 0
        %1660 = vmatmul.mubr.bf16.gmra.mrb[0].mxu0 %v799
        %v1661 = vpop.f32.mrb[0].mxu0
        %v1662 = vadd.f32 0.0, %v1661
        %v1663 = vpop.f32.mrb[0].mxu0
        %v1664 = vadd.f32 0.0, %v1663
        %v1665 = vpop.f32.mrb[0].mxu0
        %v1666 = vadd.f32 0.0, %v1665
        %v1667 = vpop.f32.mrb[0].mxu0
        %v1668 = vadd.f32 0.0, %v1667
        %1669 = vmatprep.mubr.bf16.mxu0 0
        %1670 = vmatmul.mubr.bf16.gmra.mrb[0].mxu0 %v800
        %v1671 = vpop.f32.mrb[0].mxu0
        %v1672 = vadd.f32 0.0, %v1671
        %v1673 = vpop.f32.mrb[0].mxu0
        %v1674 = vadd.f32 0.0, %v1673
        %v1675 = vpop.f32.mrb[0].mxu0
        %v1676 = vadd.f32 0.0, %v1675
        %v1677 = vpop.f32.mrb[0].mxu0
        %v1678 = vadd.f32 0.0, %v1677
        %1679 = vmatprep.mubr.bf16.mxu0 0
        %1680 = vmatmul.mubr.bf16.gmra.mrb[0].mxu0 %v801
        %v1681 = vpop.f32.mrb[0].mxu0
        %v1682 = vadd.f32 0.0, %v1681
        %v1683 = vpop.f32.mrb[0].mxu0
        %v1684 = vadd.f32 0.0, %v1683
        %v1685 = vpop.f32.mrb[0].mxu0
        %v1686 = vadd.f32 0.0, %v1685
        %v1687 = vpop.f32.mrb[0].mxu0
        %v1688 = vadd.f32 0.0, %v1687
        %1689 = vmatprep.mubr.bf16.mxu0 0
        %1690 = vmatmul.mubr.bf16.gmra.mrb[0].mxu0 %v802
        %v1691 = vpop.f32.mrb[0].mxu0
        %v1692 = vadd.f32 0.0, %v1691
        %v1693 = vpop.f32.mrb[0].mxu0
        %v1694 = vadd.f32 0.0, %v1693
        %v1695 = vpop.f32.mrb[0].mxu0
        %v1696 = vadd.f32 0.0, %v1695
        %v1697 = vpop.f32.mrb[0].mxu0
        %v1698 = vadd.f32 0.0, %v1697
        %1699 = vmatprep.mubr.bf16.mxu0 0
        %1700 = vmatmul.mubr.bf16.gmra.mrb[0].mxu0 %v803
        %v1701 = vpop.f32.mrb[0].mxu0
        %v1702 = vadd.f32 0.0, %v1701
        %v1703 = vpop.f32.mrb[0].mxu0
        %v1704 = vadd.f32 0.0, %v1703
        %v1705 = vpop.f32.mrb[0].mxu0
        %v1706 = vadd.f32 0.0, %v1705
        %v1707 = vpop.f32.mrb[0].mxu0
        %v1708 = vadd.f32 0.0, %v1707
        %1709 = vmatprep.mubr.bf16.mxu0 0
        %1710 = vmatmul.mubr.bf16.gmra.mrb[0].mxu0 %v804
        %v1711 = vpop.f32.mrb[0].mxu0
        %v1712 = vadd.f32 0.0, %v1711
        %v1713 = vpop.f32.mrb[0].mxu0
        %v1714 = vadd.f32 0.0, %v1713
        %v1715 = vpop.f32.mrb[0].mxu0
        %v1716 = vadd.f32 0.0, %v1715
        %v1717 = vpop.f32.mrb[0].mxu0
        %v1718 = vadd.f32 0.0, %v1717
        %1719 = vdwg.mxu0
        %1720 = vmatprep.subr.bf16.mxu0 %v1196
        %1721 = vmatpush1.bf16.msra.mxu0 %v1195
        %1722 = vmatprep.subr.bf16.mxu0 %v1208
        %1723 = vmatpush1.bf16.msra.mxu0 %v1207
        %1724 = vmatprep.subr.bf16.mxu0 %v1220
        %1725 = vmatpush1.bf16.msra.mxu0 %v1219
        %1726 = vmatprep.subr.bf16.mxu0 %v1232
        %1727 = vmatpush1.bf16.msra.mxu0 %v1231
        %1728 = vmatprep.subr.bf16.mxu0 %v1244
        %1729 = vmatpush1.bf16.msra.mxu0 %v1243
        %1730 = vmatprep.subr.bf16.mxu0 %v1256
        %1731 = vmatpush1.bf16.msra.mxu0 %v1255
        %1732 = vmatprep.subr.bf16.mxu0 %v1268
        %1733 = vmatpush1.bf16.msra.mxu0 %v1267
        %1734 = vmatprep.subr.bf16.mxu0 %v1280
        %1735 = vmatpush1.bf16.msra.mxu0 %v1279
        %1736 = vmatprep.subr.bf16.mxu0 0
        %1737 = vmatpush1.bf16.msra.mxu0 0
        %1738 = vmatprep.subr.bf16.mxu0 0
        %1739 = vmatpush1.bf16.msra.mxu0 0
        %1740 = vmatprep.subr.bf16.mxu0 0
        %1741 = vmatpush1.bf16.msra.mxu0 0
        %1742 = vmatprep.subr.bf16.mxu0 0
        %1743 = vmatpush1.bf16.msra.mxu0 0
        %1744 = vmatprep.subr.bf16.mxu0 0
        %1745 = vmatpush1.bf16.msra.mxu0 0
        %1746 = vmatprep.subr.bf16.mxu0 0
        %1747 = vmatpush1.bf16.msra.mxu0 0
        %1748 = vmatprep.subr.bf16.mxu0 0
        %1749 = vmatpush1.bf16.msra.mxu0 0
        %1750 = vmatprep.subr.bf16.mxu0 0
        %1751 = vmatpush1.bf16.msra.mxu0 0
        %1752 = vmatprep.mubr.bf16.mxu0 0
        %1753 = vmatmul.mubr.bf16.gmra.mrb[0].mxu0 %v797
        %v1754 = vpop.f32.mrb[0].mxu0
        %v1755 = vadd.f32 0.0, %v1754
        %v1756 = vpop.f32.mrb[0].mxu0
        %v1757 = vadd.f32 0.0, %v1756
        %v1758 = vpop.f32.mrb[0].mxu0
        %v1759 = vadd.f32 0.0, %v1758
        %v1760 = vpop.f32.mrb[0].mxu0
        %v1761 = vadd.f32 0.0, %v1760
        %1762 = vmatprep.mubr.bf16.mxu0 0
        %1763 = vmatmul.mubr.bf16.gmra.mrb[0].mxu0 %v798
        %v1764 = vpop.f32.mrb[0].mxu0
        %v1765 = vadd.f32 0.0, %v1764
        %v1766 = vpop.f32.mrb[0].mxu0
        %v1767 = vadd.f32 0.0, %v1766
        %v1768 = vpop.f32.mrb[0].mxu0
        %v1769 = vadd.f32 0.0, %v1768
        %v1770 = vpop.f32.mrb[0].mxu0
        %v1771 = vadd.f32 0.0, %v1770
        %1772 = vmatprep.mubr.bf16.mxu0 0
        %1773 = vmatmul.mubr.bf16.gmra.mrb[0].mxu0 %v799
        %v1774 = vpop.f32.mrb[0].mxu0
        %v1775 = vadd.f32 0.0, %v1774
        %v1776 = vpop.f32.mrb[0].mxu0
        %v1777 = vadd.f32 0.0, %v1776
        %v1778 = vpop.f32.mrb[0].mxu0
        %v1779 = vadd.f32 0.0, %v1778
        %v1780 = vpop.f32.mrb[0].mxu0
        %v1781 = vadd.f32 0.0, %v1780
        %1782 = vmatprep.mubr.bf16.mxu0 0
        %1783 = vmatmul.mubr.bf16.gmra.mrb[0].mxu0 %v800
        %v1784 = vpop.f32.mrb[0].mxu0
        %v1785 = vadd.f32 0.0, %v1784
        %v1786 = vpop.f32.mrb[0].mxu0
        %v1787 = vadd.f32 0.0, %v1786
        %v1788 = vpop.f32.mrb[0].mxu0
        %v1789 = vadd.f32 0.0, %v1788
        %v1790 = vpop.f32.mrb[0].mxu0
        %v1791 = vadd.f32 0.0, %v1790
        %1792 = vmatprep.mubr.bf16.mxu0 0
        %1793 = vmatmul.mubr.bf16.gmra.mrb[0].mxu0 %v801
        %v1794 = vpop.f32.mrb[0].mxu0
        %v1795 = vadd.f32 0.0, %v1794
        %v1796 = vpop.f32.mrb[0].mxu0
        %v1797 = vadd.f32 0.0, %v1796
        %v1798 = vpop.f32.mrb[0].mxu0
        %v1799 = vadd.f32 0.0, %v1798
        %v1800 = vpop.f32.mrb[0].mxu0
        %v1801 = vadd.f32 0.0, %v1800
        %1802 = vmatprep.mubr.bf16.mxu0 0
        %1803 = vmatmul.mubr.bf16.gmra.mrb[0].mxu0 %v802
        %v1804 = vpop.f32.mrb[0].mxu0
        %v1805 = vadd.f32 0.0, %v1804
        %v1806 = vpop.f32.mrb[0].mxu0
        %v1807 = vadd.f32 0.0, %v1806
        %v1808 = vpop.f32.mrb[0].mxu0
        %v1809 = vadd.f32 0.0, %v1808
        %v1810 = vpop.f32.mrb[0].mxu0
        %v1811 = vadd.f32 0.0, %v1810
        %1812 = vmatprep.mubr.bf16.mxu0 0
        %1813 = vmatmul.mubr.bf16.gmra.mrb[0].mxu0 %v803
        %v1814 = vpop.f32.mrb[0].mxu0
        %v1815 = vadd.f32 0.0, %v1814
        %v1816 = vpop.f32.mrb[0].mxu0
        %v1817 = vadd.f32 0.0, %v1816
        %v1818 = vpop.f32.mrb[0].mxu0
        %v1819 = vadd.f32 0.0, %v1818
        %v1820 = vpop.f32.mrb[0].mxu0
        %v1821 = vadd.f32 0.0, %v1820
        %1822 = vmatprep.mubr.bf16.mxu0 0
        %1823 = vmatmul.mubr.bf16.gmra.mrb[0].mxu0 %v804
        %v1824 = vpop.f32.mrb[0].mxu0
        %v1825 = vadd.f32 0.0, %v1824
        %v1826 = vpop.f32.mrb[0].mxu0
        %v1827 = vadd.f32 0.0, %v1826
        %v1828 = vpop.f32.mrb[0].mxu0
        %v1829 = vadd.f32 0.0, %v1828
        %v1830 = vpop.f32.mrb[0].mxu0
        %v1831 = vadd.f32 0.0, %v1830
        %1832 = vdwg.mxu0
        %1833 = vmatprep.subr.bf16.mxu0 %v1198
        %1834 = vmatpush1.bf16.msra.mxu0 %v1197
        %1835 = vmatprep.subr.bf16.mxu0 %v1210
        %1836 = vmatpush1.bf16.msra.mxu0 %v1209
        %1837 = vmatprep.subr.bf16.mxu0 %v1222
        %1838 = vmatpush1.bf16.msra.mxu0 %v1221
        %1839 = vmatprep.subr.bf16.mxu0 %v1234
        %1840 = vmatpush1.bf16.msra.mxu0 %v1233
        %1841 = vmatprep.subr.bf16.mxu0 %v1246
        %1842 = vmatpush1.bf16.msra.mxu0 %v1245
        %1843 = vmatprep.subr.bf16.mxu0 %v1258
        %1844 = vmatpush1.bf16.msra.mxu0 %v1257
        %1845 = vmatprep.subr.bf16.mxu0 %v1270
        %1846 = vmatpush1.bf16.msra.mxu0 %v1269
        %1847 = vmatprep.subr.bf16.mxu0 %v1282
        %1848 = vmatpush1.bf16.msra.mxu0 %v1281
        %1849 = vmatprep.subr.bf16.mxu0 0
        %1850 = vmatpush1.bf16.msra.mxu0 0
        %1851 = vmatprep.subr.bf16.mxu0 0
        %1852 = vmatpush1.bf16.msra.mxu0 0
        %1853 = vmatprep.subr.bf16.mxu0 0
        %1854 = vmatpush1.bf16.msra.mxu0 0
        %1855 = vmatprep.subr.bf16.mxu0 0
        %1856 = vmatpush1.bf16.msra.mxu0 0
        %1857 = vmatprep.subr.bf16.mxu0 0
        %1858 = vmatpush1.bf16.msra.mxu0 0
        %1859 = vmatprep.subr.bf16.mxu0 0
        %1860 = vmatpush1.bf16.msra.mxu0 0
        %1861 = vmatprep.subr.bf16.mxu0 0
        %1862 = vmatpush1.bf16.msra.mxu0 0
        %1863 = vmatprep.subr.bf16.mxu0 0
        %1864 = vmatpush1.bf16.msra.mxu0 0
        %1865 = vmatprep.mubr.bf16.mxu0 0
        %1866 = vmatmul.mubr.bf16.gmra.mrb[0].mxu0 %v797
        %v1867 = vpop.f32.mrb[0].mxu0
        %v1868 = vadd.f32 0.0, %v1867
        %v1869 = vpop.f32.mrb[0].mxu0
        %v1870 = vadd.f32 0.0, %v1869
        %v1871 = vpop.f32.mrb[0].mxu0
        %v1872 = vadd.f32 0.0, %v1871
        %v1873 = vpop.f32.mrb[0].mxu0
        %v1874 = vadd.f32 0.0, %v1873
        %1875 = vmatprep.mubr.bf16.mxu0 0
        %1876 = vmatmul.mubr.bf16.gmra.mrb[0].mxu0 %v798
        %v1877 = vpop.f32.mrb[0].mxu0
        %v1878 = vadd.f32 0.0, %v1877
        %v1879 = vpop.f32.mrb[0].mxu0
        %v1880 = vadd.f32 0.0, %v1879
        %v1881 = vpop.f32.mrb[0].mxu0
        %v1882 = vadd.f32 0.0, %v1881
        %v1883 = vpop.f32.mrb[0].mxu0
        %v1884 = vadd.f32 0.0, %v1883
        %1885 = vmatprep.mubr.bf16.mxu0 0
        %1886 = vmatmul.mubr.bf16.gmra.mrb[0].mxu0 %v799
        %v1887 = vpop.f32.mrb[0].mxu0
        %v1888 = vadd.f32 0.0, %v1887
        %v1889 = vpop.f32.mrb[0].mxu0
        %v1890 = vadd.f32 0.0, %v1889
        %v1891 = vpop.f32.mrb[0].mxu0
        %v1892 = vadd.f32 0.0, %v1891
        %v1893 = vpop.f32.mrb[0].mxu0
        %v1894 = vadd.f32 0.0, %v1893
        %1895 = vmatprep.mubr.bf16.mxu0 0
        %1896 = vmatmul.mubr.bf16.gmra.mrb[0].mxu0 %v800
        %v1897 = vpop.f32.mrb[0].mxu0
        %v1898 = vadd.f32 0.0, %v1897
        %v1899 = vpop.f32.mrb[0].mxu0
        %v1900 = vadd.f32 0.0, %v1899
        %v1901 = vpop.f32.mrb[0].mxu0
        %v1902 = vadd.f32 0.0, %v1901
        %v1903 = vpop.f32.mrb[0].mxu0
        %v1904 = vadd.f32 0.0, %v1903
        %1905 = vmatprep.mubr.bf16.mxu0 0
        %1906 = vmatmul.mubr.bf16.gmra.mrb[0].mxu0 %v801
        %v1907 = vpop.f32.mrb[0].mxu0
        %v1908 = vadd.f32 0.0, %v1907
        %v1909 = vpop.f32.mrb[0].mxu0
        %v1910 = vadd.f32 0.0, %v1909
        %v1911 = vpop.f32.mrb[0].mxu0
        %v1912 = vadd.f32 0.0, %v1911
        %v1913 = vpop.f32.mrb[0].mxu0
        %v1914 = vadd.f32 0.0, %v1913
        %1915 = vmatprep.mubr.bf16.mxu0 0
        %1916 = vmatmul.mubr.bf16.gmra.mrb[0].mxu0 %v802
        %v1917 = vpop.f32.mrb[0].mxu0
        %v1918 = vadd.f32 0.0, %v1917
        %v1919 = vpop.f32.mrb[0].mxu0
        %v1920 = vadd.f32 0.0, %v1919
        %v1921 = vpop.f32.mrb[0].mxu0
        %v1922 = vadd.f32 0.0, %v1921
        %v1923 = vpop.f32.mrb[0].mxu0
        %v1924 = vadd.f32 0.0, %v1923
        %1925 = vmatprep.mubr.bf16.mxu0 0
        %1926 = vmatmul.mubr.bf16.gmra.mrb[0].mxu0 %v803
        %v1927 = vpop.f32.mrb[0].mxu0
        %v1928 = vadd.f32 0.0, %v1927
        %v1929 = vpop.f32.mrb[0].mxu0
        %v1930 = vadd.f32 0.0, %v1929
        %v1931 = vpop.f32.mrb[0].mxu0
        %v1932 = vadd.f32 0.0, %v1931
        %v1933 = vpop.f32.mrb[0].mxu0
        %v1934 = vadd.f32 0.0, %v1933
        %1935 = vmatprep.mubr.bf16.mxu0 0
        %1936 = vmatmul.mubr.bf16.gmra.mrb[0].mxu0 %v804
        %v1937 = vpop.f32.mrb[0].mxu0
        %v1938 = vadd.f32 0.0, %v1937
        %v1939 = vpop.f32.mrb[0].mxu0
        %v1940 = vadd.f32 0.0, %v1939
        %v1941 = vpop.f32.mrb[0].mxu0
        %v1942 = vadd.f32 0.0, %v1941
        %v1943 = vpop.f32.mrb[0].mxu0
        %v1944 = vadd.f32 0.0, %v1943
        %1945 = vdwg.mxu0
        %1946 = vmatprep.subr.bf16.mxu0 %v1200
        %1947 = vmatpush1.bf16.msra.mxu0 %v1199
        %1948 = vmatprep.subr.bf16.mxu0 %v1212
        %1949 = vmatpush1.bf16.msra.mxu0 %v1211
        %1950 = vmatprep.subr.bf16.mxu0 %v1224
        %1951 = vmatpush1.bf16.msra.mxu0 %v1223
        %1952 = vmatprep.subr.bf16.mxu0 %v1236
        %1953 = vmatpush1.bf16.msra.mxu0 %v1235
        %1954 = vmatprep.subr.bf16.mxu0 %v1248
        %1955 = vmatpush1.bf16.msra.mxu0 %v1247
        %1956 = vmatprep.subr.bf16.mxu0 %v1260
        %1957 = vmatpush1.bf16.msra.mxu0 %v1259
        %1958 = vmatprep.subr.bf16.mxu0 %v1272
        %1959 = vmatpush1.bf16.msra.mxu0 %v1271
        %1960 = vmatprep.subr.bf16.mxu0 %v1284
        %1961 = vmatpush1.bf16.msra.mxu0 %v1283
        %1962 = vmatprep.subr.bf16.mxu0 0
        %1963 = vmatpush1.bf16.msra.mxu0 0
        %1964 = vmatprep.subr.bf16.mxu0 0
        %1965 = vmatpush1.bf16.msra.mxu0 0
        %1966 = vmatprep.subr.bf16.mxu0 0
        %1967 = vmatpush1.bf16.msra.mxu0 0
        %1968 = vmatprep.subr.bf16.mxu0 0
        %1969 = vmatpush1.bf16.msra.mxu0 0
        %1970 = vmatprep.subr.bf16.mxu0 0
        %1971 = vmatpush1.bf16.msra.mxu0 0
        %1972 = vmatprep.subr.bf16.mxu0 0
        %1973 = vmatpush1.bf16.msra.mxu0 0
        %1974 = vmatprep.subr.bf16.mxu0 0
        %1975 = vmatpush1.bf16.msra.mxu0 0
        %1976 = vmatprep.subr.bf16.mxu0 0
        %1977 = vmatpush1.bf16.msra.mxu0 0
        %1978 = vmatprep.mubr.bf16.mxu0 0
        %1979 = vmatmul.mubr.bf16.gmra.mrb[0].mxu0 %v797
        %v1980 = vpop.f32.mrb[0].mxu0
        %v1981 = vadd.f32 0.0, %v1980
        %v1982 = vpop.f32.mrb[0].mxu0
        %v1983 = vadd.f32 0.0, %v1982
        %v1984 = vpop.f32.mrb[0].mxu0
        %v1985 = vadd.f32 0.0, %v1984
        %v1986 = vpop.f32.mrb[0].mxu0
        %v1987 = vadd.f32 0.0, %v1986
        %1988 = vmatprep.mubr.bf16.mxu0 0
        %1989 = vmatmul.mubr.bf16.gmra.mrb[0].mxu0 %v798
        %v1990 = vpop.f32.mrb[0].mxu0
        %v1991 = vadd.f32 0.0, %v1990
        %v1992 = vpop.f32.mrb[0].mxu0
        %v1993 = vadd.f32 0.0, %v1992
        %v1994 = vpop.f32.mrb[0].mxu0
        %v1995 = vadd.f32 0.0, %v1994
        %v1996 = vpop.f32.mrb[0].mxu0
        %v1997 = vadd.f32 0.0, %v1996
        %1998 = vmatprep.mubr.bf16.mxu0 0
        %1999 = vmatmul.mubr.bf16.gmra.mrb[0].mxu0 %v799
        %v2000 = vpop.f32.mrb[0].mxu0
        %v2001 = vadd.f32 0.0, %v2000
        %v2002 = vpop.f32.mrb[0].mxu0
        %v2003 = vadd.f32 0.0, %v2002
        %v2004 = vpop.f32.mrb[0].mxu0
        %v2005 = vadd.f32 0.0, %v2004
        %v2006 = vpop.f32.mrb[0].mxu0
        %v2007 = vadd.f32 0.0, %v2006
        %2008 = vmatprep.mubr.bf16.mxu0 0
        %2009 = vmatmul.mubr.bf16.gmra.mrb[0].mxu0 %v800
        %v2010 = vpop.f32.mrb[0].mxu0
        %v2011 = vadd.f32 0.0, %v2010
        %v2012 = vpop.f32.mrb[0].mxu0
        %v2013 = vadd.f32 0.0, %v2012
        %v2014 = vpop.f32.mrb[0].mxu0
        %v2015 = vadd.f32 0.0, %v2014
        %v2016 = vpop.f32.mrb[0].mxu0
        %v2017 = vadd.f32 0.0, %v2016
        %2018 = vmatprep.mubr.bf16.mxu0 0
        %2019 = vmatmul.mubr.bf16.gmra.mrb[0].mxu0 %v801
        %v2020 = vpop.f32.mrb[0].mxu0
        %v2021 = vadd.f32 0.0, %v2020
        %v2022 = vpop.f32.mrb[0].mxu0
        %v2023 = vadd.f32 0.0, %v2022
        %v2024 = vpop.f32.mrb[0].mxu0
        %v2025 = vadd.f32 0.0, %v2024
        %v2026 = vpop.f32.mrb[0].mxu0
        %v2027 = vadd.f32 0.0, %v2026
        %2028 = vmatprep.mubr.bf16.mxu0 0
        %2029 = vmatmul.mubr.bf16.gmra.mrb[0].mxu0 %v802
        %v2030 = vpop.f32.mrb[0].mxu0
        %v2031 = vadd.f32 0.0, %v2030
        %v2032 = vpop.f32.mrb[0].mxu0
        %v2033 = vadd.f32 0.0, %v2032
        %v2034 = vpop.f32.mrb[0].mxu0
        %v2035 = vadd.f32 0.0, %v2034
        %v2036 = vpop.f32.mrb[0].mxu0
        %v2037 = vadd.f32 0.0, %v2036
        %2038 = vmatprep.mubr.bf16.mxu0 0
        %2039 = vmatmul.mubr.bf16.gmra.mrb[0].mxu0 %v803
        %v2040 = vpop.f32.mrb[0].mxu0
        %v2041 = vadd.f32 0.0, %v2040
        %v2042 = vpop.f32.mrb[0].mxu0
        %v2043 = vadd.f32 0.0, %v2042
        %v2044 = vpop.f32.mrb[0].mxu0
        %v2045 = vadd.f32 0.0, %v2044
        %v2046 = vpop.f32.mrb[0].mxu0
        %v2047 = vadd.f32 0.0, %v2046
        %2048 = vmatprep.mubr.bf16.mxu0 0
        %2049 = vmatmul.mubr.bf16.gmra.mrb[0].mxu0 %v804
        %v2050 = vpop.f32.mrb[0].mxu0
        %v2051 = vadd.f32 0.0, %v2050
        %v2052 = vpop.f32.mrb[0].mxu0
        %v2053 = vadd.f32 0.0, %v2052
        %v2054 = vpop.f32.mrb[0].mxu0
        %v2055 = vadd.f32 0.0, %v2054
        %v2056 = vpop.f32.mrb[0].mxu0
        %v2057 = vadd.f32 0.0, %v2056
        %2058 = vdwg.mxu0
        %v2059 = vpack.c.bf16 %v1420, %v1416
        %v2060 = vpack.c.bf16 %v1422, %v1418
        %v2061 = vpack.c.bf16 %v1533, %v1529
        %v2062 = vpack.c.bf16 %v1535, %v1531
        %v2063 = vpack.c.bf16 %v1646, %v1642
        %v2064 = vpack.c.bf16 %v1648, %v1644
        %v2065 = vpack.c.bf16 %v1759, %v1755
        %v2066 = vpack.c.bf16 %v1761, %v1757
        %v2067 = vpack.c.bf16 %v1872, %v1868
        %v2068 = vpack.c.bf16 %v1874, %v1870
        %v2069 = vpack.c.bf16 %v1985, %v1981
        %v2070 = vpack.c.bf16 %v1987, %v1983
        %v2071 = vpack.c.bf16 %v1430, %v1426
        %v2072 = vpack.c.bf16 %v1432, %v1428
        %v2073 = vpack.c.bf16 %v1543, %v1539
        %v2074 = vpack.c.bf16 %v1545, %v1541
        %v2075 = vpack.c.bf16 %v1656, %v1652
        %v2076 = vpack.c.bf16 %v1658, %v1654
        %v2077 = vpack.c.bf16 %v1769, %v1765
        %v2078 = vpack.c.bf16 %v1771, %v1767
        %v2079 = vpack.c.bf16 %v1882, %v1878
        %v2080 = vpack.c.bf16 %v1884, %v1880
        %v2081 = vpack.c.bf16 %v1995, %v1991
        %v2082 = vpack.c.bf16 %v1997, %v1993
        %v2083 = vpack.c.bf16 %v1440, %v1436
        %v2084 = vpack.c.bf16 %v1442, %v1438
        %v2085 = vpack.c.bf16 %v1553, %v1549
        %v2086 = vpack.c.bf16 %v1555, %v1551
        %v2087 = vpack.c.bf16 %v1666, %v1662
        %v2088 = vpack.c.bf16 %v1668, %v1664
        %v2089 = vpack.c.bf16 %v1779, %v1775
        %v2090 = vpack.c.bf16 %v1781, %v1777
        %v2091 = vpack.c.bf16 %v1892, %v1888
        %v2092 = vpack.c.bf16 %v1894, %v1890
        %v2093 = vpack.c.bf16 %v2005, %v2001
        %v2094 = vpack.c.bf16 %v2007, %v2003
        %v2095 = vpack.c.bf16 %v1450, %v1446
        %v2096 = vpack.c.bf16 %v1452, %v1448
        %v2097 = vpack.c.bf16 %v1563, %v1559
        %v2098 = vpack.c.bf16 %v1565, %v1561
        %v2099 = vpack.c.bf16 %v1676, %v1672
        %v2100 = vpack.c.bf16 %v1678, %v1674
        %v2101 = vpack.c.bf16 %v1789, %v1785
        %v2102 = vpack.c.bf16 %v1791, %v1787
        %v2103 = vpack.c.bf16 %v1902, %v1898
        %v2104 = vpack.c.bf16 %v1904, %v1900
        %v2105 = vpack.c.bf16 %v2015, %v2011
        %v2106 = vpack.c.bf16 %v2017, %v2013
        %v2107 = vpack.c.bf16 %v1460, %v1456
        %v2108 = vpack.c.bf16 %v1462, %v1458
        %v2109 = vpack.c.bf16 %v1573, %v1569
        %v2110 = vpack.c.bf16 %v1575, %v1571
        %v2111 = vpack.c.bf16 %v1686, %v1682
        %v2112 = vpack.c.bf16 %v1688, %v1684
        %v2113 = vpack.c.bf16 %v1799, %v1795
        %v2114 = vpack.c.bf16 %v1801, %v1797
        %v2115 = vpack.c.bf16 %v1912, %v1908
        %v2116 = vpack.c.bf16 %v1914, %v1910
        %v2117 = vpack.c.bf16 %v2025, %v2021
        %v2118 = vpack.c.bf16 %v2027, %v2023
        %v2119 = vpack.c.bf16 %v1470, %v1466
        %v2120 = vpack.c.bf16 %v1472, %v1468
        %v2121 = vpack.c.bf16 %v1583, %v1579
        %v2122 = vpack.c.bf16 %v1585, %v1581
        %v2123 = vpack.c.bf16 %v1696, %v1692
        %v2124 = vpack.c.bf16 %v1698, %v1694
        %v2125 = vpack.c.bf16 %v1809, %v1805
        %v2126 = vpack.c.bf16 %v1811, %v1807
        %v2127 = vpack.c.bf16 %v1922, %v1918
        %v2128 = vpack.c.bf16 %v1924, %v1920
        %v2129 = vpack.c.bf16 %v2035, %v2031
        %v2130 = vpack.c.bf16 %v2037, %v2033
        %v2131 = vpack.c.bf16 %v1480, %v1476
        %v2132 = vpack.c.bf16 %v1482, %v1478
        %v2133 = vpack.c.bf16 %v1593, %v1589
        %v2134 = vpack.c.bf16 %v1595, %v1591
        %v2135 = vpack.c.bf16 %v1706, %v1702
        %v2136 = vpack.c.bf16 %v1708, %v1704
        %v2137 = vpack.c.bf16 %v1819, %v1815
        %v2138 = vpack.c.bf16 %v1821, %v1817
        %v2139 = vpack.c.bf16 %v1932, %v1928
        %v2140 = vpack.c.bf16 %v1934, %v1930
        %v2141 = vpack.c.bf16 %v2045, %v2041
        %v2142 = vpack.c.bf16 %v2047, %v2043
        %v2143 = vpack.c.bf16 %v1490, %v1486
        %v2144 = vpack.c.bf16 %v1492, %v1488
        %v2145 = vpack.c.bf16 %v1603, %v1599
        %v2146 = vpack.c.bf16 %v1605, %v1601
        %v2147 = vpack.c.bf16 %v1716, %v1712
        %v2148 = vpack.c.bf16 %v1718, %v1714
        %v2149 = vpack.c.bf16 %v1829, %v1825
        %v2150 = vpack.c.bf16 %v1831, %v1827
        %v2151 = vpack.c.bf16 %v1942, %v1938
        %v2152 = vpack.c.bf16 %v1944, %v1940
        %v2153 = vpack.c.bf16 %v2055, %v2051
        %v2154 = vpack.c.bf16 %v2057, %v2053
        %2155 = vst [vmem:[#allocation2] sm:$0xff] 0.0
        %2156 = vst [vmem:[#allocation2 + $0x8] sm:$0xff] 0.0
        %2157 = vst [vmem:[#allocation2 + $0x10] sm:$0xff] 0.0
        %2158 = vst [vmem:[#allocation2 + $0x18] sm:$0xff] 0.0
        %2159 = vst [vmem:[#allocation2 + $0x20] sm:$0xff] 0.0
        %2160 = vst [vmem:[#allocation2 + $0x28] sm:$0xff] 0.0
        %2161 = vst [vmem:[#allocation2 + $0x30] sm:$0xff] 0.0
        %2162 = vst [vmem:[#allocation2 + $0x38] sm:$0xff] 0.0
        %2163 = vst [vmem:[#allocation2 + $0x40] sm:$0xff] 0.0
        %2164 = vst [vmem:[#allocation2 + $0x48] sm:$0xff] 0.0
        %2165 = vst [vmem:[#allocation2 + $0x50] sm:$0xff] 0.0
        %2166 = vst [vmem:[#allocation2 + $0x58] sm:$0xff] 0.0
        %2167 = vst [vmem:[#allocation2 + $0x60] sm:$0xff] 0.0
        %2168 = vst [vmem:[#allocation2 + $0x68] sm:$0xff] 0.0
        %2169 = vst [vmem:[#allocation2 + $0x70] sm:$0xff] 0.0
        %2170 = vst [vmem:[#allocation2 + $0x78] sm:$0xff] 0.0
        %2171 = vmatprep.subr.bf16.mxu0 0
        %2172 = vmatpush1.bf16.xpose.msra.mxu0 %v2063
        %2173 = vmatprep.subr.bf16.mxu0 0
        %2174 = vmatpush1.bf16.xpose.msra.mxu0 %v2075
        %2175 = vmatprep.subr.bf16.mxu0 0
        %2176 = vmatpush1.bf16.xpose.msra.mxu0 %v2087
        %2177 = vmatprep.subr.bf16.mxu0 0
        %2178 = vmatpush1.bf16.xpose.msra.mxu0 %v2099
        %2179 = vmatprep.subr.bf16.mxu0 0
        %2180 = vmatpush1.bf16.xpose.msra.mxu0 %v2111
        %2181 = vmatprep.subr.bf16.mxu0 0
        %2182 = vmatpush1.bf16.xpose.msra.mxu0 %v2123
        %2183 = vmatprep.subr.bf16.mxu0 0
        %2184 = vmatpush1.bf16.xpose.msra.mxu0 %v2135
        %2185 = vmatprep.subr.bf16.mxu0 0
        %2186 = vmatpush1.bf16.xpose.msra.mxu0 %v2147
        %2187 = vmatprep.subr.bf16.mxu0 0
        %2188 = vmatpush1.bf16.xpose.msra.mxu0 0
        %2189 = vmatprep.subr.bf16.mxu0 0
        %2190 = vmatpush1.bf16.xpose.msra.mxu0 0
        %2191 = vmatprep.subr.bf16.mxu0 0
        %2192 = vmatpush1.bf16.xpose.msra.mxu0 0
        %2193 = vmatprep.subr.bf16.mxu0 0
        %2194 = vmatpush1.bf16.xpose.msra.mxu0 0
        %2195 = vmatprep.subr.bf16.mxu0 0
        %2196 = vmatpush1.bf16.xpose.msra.mxu0 0
        %2197 = vmatprep.subr.bf16.mxu0 0
        %2198 = vmatpush1.bf16.xpose.msra.mxu0 0
        %2199 = vmatprep.subr.bf16.mxu0 0
        %2200 = vmatpush1.bf16.xpose.msra.mxu0 0
        %2201 = vmatprep.subr.bf16.mxu0 0
        %2202 = vmatpush1.bf16.xpose.msra.mxu0 0
        %2203 = vmatprep.mubr.bf16.mxu0 0
        %2204 = vmatmul.mubr.bf16.gmra.mrb[0].mxu0 %v2059
        %v2205 = vpop.f32.mrb[0].mxu0
        %v2206 = vadd.f32 0.0, %v2205
        %v2207 = vpop.f32.mrb[0].mxu0
        %v2208 = vpop.f32.mrb[0].mxu0
        %v2209 = vadd.f32 0.0, %v2208
        %v2210 = vpop.f32.mrb[0].mxu0
        %2211 = vmatprep.mubr.bf16.mxu0 0
        %2212 = vmatmul.mubr.bf16.gmra.mrb[0].mxu0 %v2071
        %v2213 = vpop.f32.mrb[0].mxu0
        %v2214 = vadd.f32 0.0, %v2213
        %v2215 = vpop.f32.mrb[0].mxu0
        %v2216 = vpop.f32.mrb[0].mxu0
        %v2217 = vadd.f32 0.0, %v2216
        %v2218 = vpop.f32.mrb[0].mxu0
        %2219 = vmatprep.mubr.bf16.mxu0 0
        %2220 = vmatmul.mubr.bf16.gmra.mrb[0].mxu0 %v2083
        %v2221 = vpop.f32.mrb[0].mxu0
        %v2222 = vadd.f32 0.0, %v2221
        %v2223 = vpop.f32.mrb[0].mxu0
        %v2224 = vpop.f32.mrb[0].mxu0
        %v2225 = vadd.f32 0.0, %v2224
        %v2226 = vpop.f32.mrb[0].mxu0
        %2227 = vmatprep.mubr.bf16.mxu0 0
        %2228 = vmatmul.mubr.bf16.gmra.mrb[0].mxu0 %v2095
        %v2229 = vpop.f32.mrb[0].mxu0
        %v2230 = vadd.f32 0.0, %v2229
        %v2231 = vpop.f32.mrb[0].mxu0
        %v2232 = vpop.f32.mrb[0].mxu0
        %v2233 = vadd.f32 0.0, %v2232
        %v2234 = vpop.f32.mrb[0].mxu0
        %2235 = vmatprep.mubr.bf16.mxu0 0
        %2236 = vmatmul.mubr.bf16.gmra.mrb[0].mxu0 %v2107
        %v2237 = vpop.f32.mrb[0].mxu0
        %v2238 = vadd.f32 0.0, %v2237
        %v2239 = vpop.f32.mrb[0].mxu0
        %v2240 = vpop.f32.mrb[0].mxu0
        %v2241 = vadd.f32 0.0, %v2240
        %v2242 = vpop.f32.mrb[0].mxu0
        %2243 = vmatprep.mubr.bf16.mxu0 0
        %2244 = vmatmul.mubr.bf16.gmra.mrb[0].mxu0 %v2119
        %v2245 = vpop.f32.mrb[0].mxu0
        %v2246 = vadd.f32 0.0, %v2245
        %v2247 = vpop.f32.mrb[0].mxu0
        %v2248 = vpop.f32.mrb[0].mxu0
        %v2249 = vadd.f32 0.0, %v2248
        %v2250 = vpop.f32.mrb[0].mxu0
        %2251 = vmatprep.mubr.bf16.mxu0 0
        %2252 = vmatmul.mubr.bf16.gmra.mrb[0].mxu0 %v2131
        %v2253 = vpop.f32.mrb[0].mxu0
        %v2254 = vadd.f32 0.0, %v2253
        %v2255 = vpop.f32.mrb[0].mxu0
        %v2256 = vpop.f32.mrb[0].mxu0
        %v2257 = vadd.f32 0.0, %v2256
        %v2258 = vpop.f32.mrb[0].mxu0
        %2259 = vmatprep.mubr.bf16.mxu0 0
        %2260 = vmatmul.mubr.bf16.gmra.mrb[0].mxu0 %v2143
        %v2261 = vpop.f32.mrb[0].mxu0
        %v2262 = vadd.f32 0.0, %v2261
        %v2263 = vpop.f32.mrb[0].mxu0
        %v2264 = vpop.f32.mrb[0].mxu0
        %v2265 = vadd.f32 0.0, %v2264
        %v2266 = vpop.f32.mrb[0].mxu0
        %2267 = vdwg.mxu0
        %v2268 = vmul.f32 %v2206, 0.17677669
        %v2269 = vmul.f32 %v2209, 0.17677669
        %v2270 = vmul.f32 %v2214, 0.17677669
        %v2271 = vmul.f32 %v2217, 0.17677669
        %v2272 = vmul.f32 %v2222, 0.17677669
        %v2273 = vmul.f32 %v2225, 0.17677669
        %v2274 = vmul.f32 %v2230, 0.17677669
        %v2275 = vmul.f32 %v2233, 0.17677669
        %v2276 = vmul.f32 %v2238, 0.17677669
        %v2277 = vmul.f32 %v2241, 0.17677669
        %v2278 = vmul.f32 %v2246, 0.17677669
        %v2279 = vmul.f32 %v2249, 0.17677669
        %v2280 = vmul.f32 %v2254, 0.17677669
        %v2281 = vmul.f32 %v2257, 0.17677669
        %v2282 = vmul.f32 %v2262, 0.17677669
        %v2283 = vmul.f32 %v2265, 0.17677669
        %v2285 = vlaneseq
        %v2286 = vshrl.u32 %v2285, 7
        %v2287 = vsub.s32 0, %v2286
        %v2288 = vrot.slane %v557, %v2287
        %v2290 = vadd.f32 %v2268, %v2288
        %v2291 = vadd.f32 %v2269, %v2288
        %v2292 = vadd.f32 %v2270, %v2288
        %v2293 = vadd.f32 %v2271, %v2288
        %v2294 = vadd.f32 %v2272, %v2288
        %v2295 = vadd.f32 %v2273, %v2288
        %v2296 = vadd.f32 %v2274, %v2288
        %v2297 = vadd.f32 %v2275, %v2288
        %v2298 = vadd.f32 %v2276, %v2288
        %v2299 = vadd.f32 %v2277, %v2288
        %v2300 = vadd.f32 %v2278, %v2288
        %v2301 = vadd.f32 %v2279, %v2288
        %v2302 = vadd.f32 %v2280, %v2288
        %v2303 = vadd.f32 %v2281, %v2288
        %v2304 = vadd.f32 %v2282, %v2288
        %v2305 = vadd.f32 %v2283, %v2288
        %2306 = vmax.xlane.f32.xlu0 %v2290
        %v2307 = vpop.xlane.xlu0 %2306
        %2308 = vmax.xlane.f32.xlu0 %v2291
        %v2309 = vpop.xlane.xlu0 %2308
        %2310 = vmax.xlane.f32.xlu0 %v2292
        %v2311 = vpop.xlane.xlu0 %2310
        %2312 = vmax.xlane.f32.xlu0 %v2293
        %v2313 = vpop.xlane.xlu0 %2312
        %2314 = vmax.xlane.f32.xlu0 %v2294
        %v2315 = vpop.xlane.xlu0 %2314
        %2316 = vmax.xlane.f32.xlu0 %v2295
        %v2317 = vpop.xlane.xlu0 %2316
        %2318 = vmax.xlane.f32.xlu0 %v2296
        %v2319 = vpop.xlane.xlu0 %2318
        %2320 = vmax.xlane.f32.xlu0 %v2297
        %v2321 = vpop.xlane.xlu0 %2320
        %2322 = vmax.xlane.f32.xlu0 %v2298
        %v2323 = vpop.xlane.xlu0 %2322
        %2324 = vmax.xlane.f32.xlu0 %v2299
        %v2325 = vpop.xlane.xlu0 %2324
        %2326 = vmax.xlane.f32.xlu0 %v2300
        %v2327 = vpop.xlane.xlu0 %2326
        %2328 = vmax.xlane.f32.xlu0 %v2301
        %v2329 = vpop.xlane.xlu0 %2328
        %2330 = vmax.xlane.f32.xlu0 %v2302
        %v2331 = vpop.xlane.xlu0 %2330
        %2332 = vmax.xlane.f32.xlu0 %v2303
        %v2333 = vpop.xlane.xlu0 %2332
        %2334 = vmax.xlane.f32.xlu0 %v2304
        %v2335 = vpop.xlane.xlu0 %2334
        %2336 = vmax.xlane.f32.xlu0 %v2305
        %v2337 = vpop.xlane.xlu0 %2336
        %v2338 = vsub.f32 %v2290, %v2307
        %v2339 = vsub.f32 %v2291, %v2309
        %v2340 = vsub.f32 %v2292, %v2311
        %v2341 = vsub.f32 %v2293, %v2313
        %v2342 = vsub.f32 %v2294, %v2315
        %v2343 = vsub.f32 %v2295, %v2317
        %v2344 = vsub.f32 %v2296, %v2319
        %v2345 = vsub.f32 %v2297, %v2321
        %v2346 = vsub.f32 %v2298, %v2323
        %v2347 = vsub.f32 %v2299, %v2325
        %v2348 = vsub.f32 %v2300, %v2327
        %v2349 = vsub.f32 %v2301, %v2329
        %v2350 = vsub.f32 %v2302, %v2331
        %v2351 = vsub.f32 %v2303, %v2333
        %v2352 = vsub.f32 %v2304, %v2335
        %v2353 = vsub.f32 %v2305, %v2337
        %v2354 = vmul.f32 %v2338, 1.442695
        %v2355 = vpow.pop %v2354
        %v2356 = vmul.f32 %v2339, 1.442695
        %v2357 = vpow.pop %v2356
        %v2358 = vmul.f32 %v2340, 1.442695
        %v2359 = vpow.pop %v2358
        %v2360 = vmul.f32 %v2341, 1.442695
        %v2361 = vpow.pop %v2360
        %v2362 = vmul.f32 %v2342, 1.442695
        %v2363 = vpow.pop %v2362
        %v2364 = vmul.f32 %v2343, 1.442695
        %v2365 = vpow.pop %v2364
        %v2366 = vmul.f32 %v2344, 1.442695
        %v2367 = vpow.pop %v2366
        %v2368 = vmul.f32 %v2345, 1.442695
        %v2369 = vpow.pop %v2368
        %v2370 = vmul.f32 %v2346, 1.442695
        %v2371 = vpow.pop %v2370
        %v2372 = vmul.f32 %v2347, 1.442695
        %v2373 = vpow.pop %v2372
        %v2374 = vmul.f32 %v2348, 1.442695
        %v2375 = vpow.pop %v2374
        %v2376 = vmul.f32 %v2349, 1.442695
        %v2377 = vpow.pop %v2376
        %v2378 = vmul.f32 %v2350, 1.442695
        %v2379 = vpow.pop %v2378
        %v2380 = vmul.f32 %v2351, 1.442695
        %v2381 = vpow.pop %v2380
        %v2382 = vmul.f32 %v2352, 1.442695
        %v2383 = vpow.pop %v2382
        %v2384 = vmul.f32 %v2353, 1.442695
        %v2385 = vpow.pop %v2384
        %2386 = vadd.xlane.f32.xlu0 %v2355
        %v2387 = vpop.xlane.xlu0 %2386
        %2388 = vadd.xlane.f32.xlu0 %v2357
        %v2389 = vpop.xlane.xlu0 %2388
        %2390 = vadd.xlane.f32.xlu0 %v2359
        %v2391 = vpop.xlane.xlu0 %2390
        %2392 = vadd.xlane.f32.xlu0 %v2361
        %v2393 = vpop.xlane.xlu0 %2392
        %2394 = vadd.xlane.f32.xlu0 %v2363
        %v2395 = vpop.xlane.xlu0 %2394
        %2396 = vadd.xlane.f32.xlu0 %v2365
        %v2397 = vpop.xlane.xlu0 %2396
        %2398 = vadd.xlane.f32.xlu0 %v2367
        %v2399 = vpop.xlane.xlu0 %2398
        %2400 = vadd.xlane.f32.xlu0 %v2369
        %v2401 = vpop.xlane.xlu0 %2400
        %2402 = vadd.xlane.f32.xlu0 %v2371
        %v2403 = vpop.xlane.xlu0 %2402
        %2404 = vadd.xlane.f32.xlu0 %v2373
        %v2405 = vpop.xlane.xlu0 %2404
        %2406 = vadd.xlane.f32.xlu0 %v2375
        %v2407 = vpop.xlane.xlu0 %2406
        %2408 = vadd.xlane.f32.xlu0 %v2377
        %v2409 = vpop.xlane.xlu0 %2408
        %2410 = vadd.xlane.f32.xlu0 %v2379
        %v2411 = vpop.xlane.xlu0 %2410
        %2412 = vadd.xlane.f32.xlu0 %v2381
        %v2413 = vpop.xlane.xlu0 %2412
        %2414 = vadd.xlane.f32.xlu0 %v2383
        %v2415 = vpop.xlane.xlu0 %2414
        %2416 = vadd.xlane.f32.xlu0 %v2385
        %v2417 = vpop.xlane.xlu0 %2416
        %v2418 = vrcp.pop %v2387
        %v2419 = vrcp.pop %v2389
        %v2420 = vrcp.pop %v2391
        %v2421 = vrcp.pop %v2393
        %v2422 = vrcp.pop %v2395
        %v2423 = vrcp.pop %v2397
        %v2424 = vrcp.pop %v2399
        %v2425 = vrcp.pop %v2401
        %v2426 = vrcp.pop %v2403
        %v2427 = vrcp.pop %v2405
        %v2428 = vrcp.pop %v2407
        %v2429 = vrcp.pop %v2409
        %v2430 = vrcp.pop %v2411
        %v2431 = vrcp.pop %v2413
        %v2432 = vrcp.pop %v2415
        %v2433 = vrcp.pop %v2417
        %v2434 = vmul.f32 %v2355, %v2418
        %v2435 = vmul.f32 %v2357, %v2419
        %v2436 = vmul.f32 %v2359, %v2420
        %v2437 = vmul.f32 %v2361, %v2421
        %v2438 = vmul.f32 %v2363, %v2422
        %v2439 = vmul.f32 %v2365, %v2423
        %v2440 = vmul.f32 %v2367, %v2424
        %v2441 = vmul.f32 %v2369, %v2425
        %v2442 = vmul.f32 %v2371, %v2426
        %v2443 = vmul.f32 %v2373, %v2427
        %v2444 = vmul.f32 %v2375, %v2428
        %v2445 = vmul.f32 %v2377, %v2429
        %v2446 = vmul.f32 %v2379, %v2430
        %v2447 = vmul.f32 %v2381, %v2431
        %v2448 = vmul.f32 %v2383, %v2432
        %v2449 = vmul.f32 %v2385, %v2433
        %v2450 = vpack.c.bf16 %v2435, %v2434
        %v2451 = vpack.c.bf16 %v2437, %v2436
        %v2452 = vpack.c.bf16 %v2439, %v2438
        %v2453 = vpack.c.bf16 %v2441, %v2440
        %v2454 = vpack.c.bf16 %v2443, %v2442
        %v2455 = vpack.c.bf16 %v2445, %v2444
        %v2456 = vpack.c.bf16 %v2447, %v2446
        %v2457 = vpack.c.bf16 %v2449, %v2448
        %2458 = vmatprep.subr.bf16.mxu0 0
        %2459 = vmatpush1.bf16.msra.mxu0 %v2067
        %2460 = vmatprep.subr.bf16.mxu0 0
        %2461 = vmatpush1.bf16.msra.mxu0 %v2079
        %2462 = vmatprep.subr.bf16.mxu0 0
        %2463 = vmatpush1.bf16.msra.mxu0 %v2091
        %2464 = vmatprep.subr.bf16.mxu0 0
        %2465 = vmatpush1.bf16.msra.mxu0 %v2103
        %2466 = vmatprep.subr.bf16.mxu0 0
        %2467 = vmatpush1.bf16.msra.mxu0 %v2115
        %2468 = vmatprep.subr.bf16.mxu0 0
        %2469 = vmatpush1.bf16.msra.mxu0 %v2127
        %2470 = vmatprep.subr.bf16.mxu0 0
        %2471 = vmatpush1.bf16.msra.mxu0 %v2139
        %2472 = vmatprep.subr.bf16.mxu0 0
        %2473 = vmatpush1.bf16.msra.mxu0 %v2151
        %2474 = vmatprep.subr.bf16.mxu0 0
        %2475 = vmatpush1.bf16.msra.mxu0 0
        %2476 = vmatprep.subr.bf16.mxu0 0
        %2477 = vmatpush1.bf16.msra.mxu0 0
        %2478 = vmatprep.subr.bf16.mxu0 0
        %2479 = vmatpush1.bf16.msra.mxu0 0
        %2480 = vmatprep.subr.bf16.mxu0 0
        %2481 = vmatpush1.bf16.msra.mxu0 0
        %2482 = vmatprep.subr.bf16.mxu0 0
        %2483 = vmatpush1.bf16.msra.mxu0 0
        %2484 = vmatprep.subr.bf16.mxu0 0
        %2485 = vmatpush1.bf16.msra.mxu0 0
        %2486 = vmatprep.subr.bf16.mxu0 0
        %2487 = vmatpush1.bf16.msra.mxu0 0
        %2488 = vmatprep.subr.bf16.mxu0 0
        %2489 = vmatpush1.bf16.msra.mxu0 0
        %2490 = vmatprep.mubr.bf16.mxu0 0
        %2491 = vmatmul.mubr.bf16.gmra.mrb[0].mxu0 %v2450
        %v2492 = vpop.f32.mrb[0].mxu0
        %v2493 = vadd.f32 0.0, %v2492
        %v2494 = vpop.f32.mrb[0].mxu0
        %v2495 = vpop.f32.mrb[0].mxu0
        %v2496 = vadd.f32 0.0, %v2495
        %v2497 = vpop.f32.mrb[0].mxu0
        %2498 = vmatprep.mubr.bf16.mxu0 0
        %2499 = vmatmul.mubr.bf16.gmra.mrb[0].mxu0 %v2451
        %v2500 = vpop.f32.mrb[0].mxu0
        %v2501 = vadd.f32 0.0, %v2500
        %v2502 = vpop.f32.mrb[0].mxu0
        %v2503 = vpop.f32.mrb[0].mxu0
        %v2504 = vadd.f32 0.0, %v2503
        %v2505 = vpop.f32.mrb[0].mxu0
        %2506 = vmatprep.mubr.bf16.mxu0 0
        %2507 = vmatmul.mubr.bf16.gmra.mrb[0].mxu0 %v2452
        %v2508 = vpop.f32.mrb[0].mxu0
        %v2509 = vadd.f32 0.0, %v2508
        %v2510 = vpop.f32.mrb[0].mxu0
        %v2511 = vpop.f32.mrb[0].mxu0
        %v2512 = vadd.f32 0.0, %v2511
        %v2513 = vpop.f32.mrb[0].mxu0
        %2514 = vmatprep.mubr.bf16.mxu0 0
        %2515 = vmatmul.mubr.bf16.gmra.mrb[0].mxu0 %v2453
        %v2516 = vpop.f32.mrb[0].mxu0
        %v2517 = vadd.f32 0.0, %v2516
        %v2518 = vpop.f32.mrb[0].mxu0
        %v2519 = vpop.f32.mrb[0].mxu0
        %v2520 = vadd.f32 0.0, %v2519
        %v2521 = vpop.f32.mrb[0].mxu0
        %2522 = vmatprep.mubr.bf16.mxu0 0
        %2523 = vmatmul.mubr.bf16.gmra.mrb[0].mxu0 %v2454
        %v2524 = vpop.f32.mrb[0].mxu0
        %v2525 = vadd.f32 0.0, %v2524
        %v2526 = vpop.f32.mrb[0].mxu0
        %v2527 = vpop.f32.mrb[0].mxu0
        %v2528 = vadd.f32 0.0, %v2527
        %v2529 = vpop.f32.mrb[0].mxu0
        %2530 = vmatprep.mubr.bf16.mxu0 0
        %2531 = vmatmul.mubr.bf16.gmra.mrb[0].mxu0 %v2455
        %v2532 = vpop.f32.mrb[0].mxu0
        %v2533 = vadd.f32 0.0, %v2532
        %v2534 = vpop.f32.mrb[0].mxu0
        %v2535 = vpop.f32.mrb[0].mxu0
        %v2536 = vadd.f32 0.0, %v2535
        %v2537 = vpop.f32.mrb[0].mxu0
        %2538 = vmatprep.mubr.bf16.mxu0 0
        %2539 = vmatmul.mubr.bf16.gmra.mrb[0].mxu0 %v2456
        %v2540 = vpop.f32.mrb[0].mxu0
        %v2541 = vadd.f32 0.0, %v2540
        %v2542 = vpop.f32.mrb[0].mxu0
        %v2543 = vpop.f32.mrb[0].mxu0
        %v2544 = vadd.f32 0.0, %v2543
        %v2545 = vpop.f32.mrb[0].mxu0
        %2546 = vmatprep.mubr.bf16.mxu0 0
        %2547 = vmatmul.mubr.bf16.gmra.mrb[0].mxu0 %v2457
        %v2548 = vpop.f32.mrb[0].mxu0
        %v2549 = vadd.f32 0.0, %v2548
        %v2550 = vpop.f32.mrb[0].mxu0
        %v2551 = vpop.f32.mrb[0].mxu0
        %v2552 = vadd.f32 0.0, %v2551
        %v2553 = vpop.f32.mrb[0].mxu0
        %2554 = vdwg.mxu0
        %v2555 = vpack.c.bf16 %v2496, %v2493
        %v2556 = vpack.c.bf16 %v2504, %v2501
        %v2557 = vpack.c.bf16 %v2512, %v2509
        %v2558 = vpack.c.bf16 %v2520, %v2517
        %v2559 = vpack.c.bf16 %v2528, %v2525
        %v2560 = vpack.c.bf16 %v2536, %v2533
        %v2561 = vpack.c.bf16 %v2544, %v2541
        %v2562 = vpack.c.bf16 %v2552, %v2549
        %v2563 = vld [vmem:[#allocation2] sm:$0xff]
        %v2564 = vld [vmem:[#allocation2 + $0x8] sm:$0xff]
        %v2565 = vld [vmem:[#allocation2 + $0x10] sm:$0xff]
        %v2566 = vld [vmem:[#allocation2 + $0x18] sm:$0xff]
        %v2567 = vld [vmem:[#allocation2 + $0x20] sm:$0xff]
        %v2568 = vld [vmem:[#allocation2 + $0x28] sm:$0xff]
        %v2569 = vld [vmem:[#allocation2 + $0x30] sm:$0xff]
        %v2570 = vld [vmem:[#allocation2 + $0x38] sm:$0xff]
        %v2571 = vld [vmem:[#allocation2 + $0x40] sm:$0xff]
        %v2572 = vld [vmem:[#allocation2 + $0x48] sm:$0xff]
        %v2573 = vld [vmem:[#allocation2 + $0x50] sm:$0xff]
        %v2574 = vld [vmem:[#allocation2 + $0x58] sm:$0xff]
        %v2575 = vld [vmem:[#allocation2 + $0x60] sm:$0xff]
        %v2576 = vld [vmem:[#allocation2 + $0x68] sm:$0xff]
        %v2577 = vld [vmem:[#allocation2 + $0x70] sm:$0xff]
        %v2578 = vld [vmem:[#allocation2 + $0x78] sm:$0xff]
        %v2579 = vld [vmem:[%s5] sm:$0xf]
        %v2580 = vld [vmem:[%s5 + $0x4] sm:$0xf]
        %v2581 = vld [vmem:[%s5 + $0x8] sm:$0xf]
        %v2582 = vld [vmem:[%s5 + $0xc] sm:$0xf]
        %v2583 = vld [vmem:[%s5 + $0x10] sm:$0xf]
        %v2584 = vld [vmem:[%s5 + $0x14] sm:$0xf]
        %v2585 = vld [vmem:[%s5 + $0x18] sm:$0xf]
        %v2586 = vld [vmem:[%s5 + $0x1c] sm:$0xf]
        %v2587 = vld [vmem:[%s5 + $0x20] sm:$0xf]
        %v2588 = vld [vmem:[%s5 + $0x24] sm:$0xf]
        %v2589 = vld [vmem:[%s5 + $0x28] sm:$0xf]
        %v2590 = vld [vmem:[%s5 + $0x2c] sm:$0xf]
        %v2591 = vld [vmem:[%s5 + $0x30] sm:$0xf]
        %v2592 = vld [vmem:[%s5 + $0x34] sm:$0xf]
        %v2593 = vld [vmem:[%s5 + $0x38] sm:$0xf]
        %v2594 = vld [vmem:[%s5 + $0x3c] sm:$0xf]
        %v2611 = vunpack.c.l.b16 %v2579
        %v2612 = vunpack.c.l.b16 %v2580
        %v2613 = vunpack.c.l.b16 %v2581
        %v2614 = vunpack.c.l.b16 %v2582
        %v2615 = vunpack.c.l.b16 %v2583
        %v2616 = vunpack.c.l.b16 %v2584
        %v2617 = vunpack.c.l.b16 %v2585
        %v2618 = vunpack.c.l.b16 %v2586
        %v2619 = vunpack.c.l.b16 %v2587
        %v2620 = vunpack.c.l.b16 %v2588
        %v2621 = vunpack.c.l.b16 %v2589
        %v2622 = vunpack.c.l.b16 %v2590
        %v2623 = vunpack.c.l.b16 %v2591
        %v2624 = vunpack.c.l.b16 %v2592
        %v2625 = vunpack.c.l.b16 %v2593
        %v2626 = vunpack.c.l.b16 %v2594
        %v2627 = vpack.c.b16 %v2612, %v2611
        %v2628 = vpack.c.b16 %v2614, %v2613
        %v2629 = vpack.c.b16 %v2616, %v2615
        %v2630 = vpack.c.b16 %v2618, %v2617
        %v2631 = vpack.c.b16 %v2620, %v2619
        %v2632 = vpack.c.b16 %v2622, %v2621
        %v2633 = vpack.c.b16 %v2624, %v2623
        %v2634 = vpack.c.b16 %v2626, %v2625
        %2643 = vmatprep.subr.bf16.mxu0 0
        %2644 = vmatpush1.bf16.msra.mxu0 %v2627
        %2645 = vmatprep.subr.bf16.mxu0 0
        %2646 = vmatpush1.bf16.msra.mxu0 %v2628
        %2647 = vmatprep.subr.bf16.mxu0 0
        %2648 = vmatpush1.bf16.msra.mxu0 %v2629
        %2649 = vmatprep.subr.bf16.mxu0 0
        %2650 = vmatpush1.bf16.msra.mxu0 %v2630
        %2651 = vmatprep.subr.bf16.mxu0 0
        %2652 = vmatpush1.bf16.msra.mxu0 %v2631
        %2653 = vmatprep.subr.bf16.mxu0 0
        %2654 = vmatpush1.bf16.msra.mxu0 %v2632
        %2655 = vmatprep.subr.bf16.mxu0 0
        %2656 = vmatpush1.bf16.msra.mxu0 %v2633
        %2657 = vmatprep.subr.bf16.mxu0 0
        %2658 = vmatpush1.bf16.msra.mxu0 %v2634
        %2659 = vmatprep.subr.bf16.mxu0 0
        %2660 = vmatpush1.bf16.msra.mxu0 0
        %2661 = vmatprep.subr.bf16.mxu0 0
        %2662 = vmatpush1.bf16.msra.mxu0 0
        %2663 = vmatprep.subr.bf16.mxu0 0
        %2664 = vmatpush1.bf16.msra.mxu0 0
        %2665 = vmatprep.subr.bf16.mxu0 0
        %2666 = vmatpush1.bf16.msra.mxu0 0
        %2667 = vmatprep.subr.bf16.mxu0 0
        %2668 = vmatpush1.bf16.msra.mxu0 0
        %2669 = vmatprep.subr.bf16.mxu0 0
        %2670 = vmatpush1.bf16.msra.mxu0 0
        %2671 = vmatprep.subr.bf16.mxu0 0
        %2672 = vmatpush1.bf16.msra.mxu0 0
        %2673 = vmatprep.subr.bf16.mxu0 0
        %2674 = vmatpush1.bf16.msra.mxu0 0
        %2675 = vmatprep.mubr.bf16.mxu0 0
        %2676 = vmatmul.mubr.bf16.gmra.mrb[0].mxu0 %v2555
        %v2677 = vpop.f32.mrb[0].mxu0
        %v2678 = vadd.f32 0.0, %v2677
        %v2679 = vpop.f32.mrb[0].mxu0
        %v2680 = vpop.f32.mrb[0].mxu0
        %v2681 = vadd.f32 0.0, %v2680
        %v2682 = vpop.f32.mrb[0].mxu0
        %2683 = vmatprep.mubr.bf16.mxu0 0
        %2684 = vmatmul.mubr.bf16.gmra.mrb[0].mxu0 %v2556
        %v2685 = vpop.f32.mrb[0].mxu0
        %v2686 = vadd.f32 0.0, %v2685
        %v2687 = vpop.f32.mrb[0].mxu0
        %v2688 = vpop.f32.mrb[0].mxu0
        %v2689 = vadd.f32 0.0, %v2688
        %v2690 = vpop.f32.mrb[0].mxu0
        %2691 = vmatprep.mubr.bf16.mxu0 0
        %2692 = vmatmul.mubr.bf16.gmra.mrb[0].mxu0 %v2557
        %v2693 = vpop.f32.mrb[0].mxu0
        %v2694 = vadd.f32 0.0, %v2693
        %v2695 = vpop.f32.mrb[0].mxu0
        %v2696 = vpop.f32.mrb[0].mxu0
        %v2697 = vadd.f32 0.0, %v2696
        %v2698 = vpop.f32.mrb[0].mxu0
        %2699 = vmatprep.mubr.bf16.mxu0 0
        %2700 = vmatmul.mubr.bf16.gmra.mrb[0].mxu0 %v2558
        %v2701 = vpop.f32.mrb[0].mxu0
        %v2702 = vadd.f32 0.0, %v2701
        %v2703 = vpop.f32.mrb[0].mxu0
        %v2704 = vpop.f32.mrb[0].mxu0
        %v2705 = vadd.f32 0.0, %v2704
        %v2706 = vpop.f32.mrb[0].mxu0
        %2707 = vmatprep.mubr.bf16.mxu0 0
        %2708 = vmatmul.mubr.bf16.gmra.mrb[0].mxu0 %v2559
        %v2709 = vpop.f32.mrb[0].mxu0
        %v2710 = vadd.f32 0.0, %v2709
        %v2711 = vpop.f32.mrb[0].mxu0
        %v2712 = vpop.f32.mrb[0].mxu0
        %v2713 = vadd.f32 0.0, %v2712
        %v2714 = vpop.f32.mrb[0].mxu0
        %2715 = vmatprep.mubr.bf16.mxu0 0
        %2716 = vmatmul.mubr.bf16.gmra.mrb[0].mxu0 %v2560
        %v2717 = vpop.f32.mrb[0].mxu0
        %v2718 = vadd.f32 0.0, %v2717
        %v2719 = vpop.f32.mrb[0].mxu0
        %v2720 = vpop.f32.mrb[0].mxu0
        %v2721 = vadd.f32 0.0, %v2720
        %v2722 = vpop.f32.mrb[0].mxu0
        %2723 = vmatprep.mubr.bf16.mxu0 0
        %2724 = vmatmul.mubr.bf16.gmra.mrb[0].mxu0 %v2561
        %v2725 = vpop.f32.mrb[0].mxu0
        %v2726 = vadd.f32 0.0, %v2725
        %v2727 = vpop.f32.mrb[0].mxu0
        %v2728 = vpop.f32.mrb[0].mxu0
        %v2729 = vadd.f32 0.0, %v2728
        %v2730 = vpop.f32.mrb[0].mxu0
        %2731 = vmatprep.mubr.bf16.mxu0 0
        %2732 = vmatmul.mubr.bf16.gmra.mrb[0].mxu0 %v2562
        %v2733 = vpop.f32.mrb[0].mxu0
        %v2734 = vadd.f32 0.0, %v2733
        %v2735 = vpop.f32.mrb[0].mxu0
        %v2736 = vpop.f32.mrb[0].mxu0
        %v2737 = vadd.f32 0.0, %v2736
        %v2738 = vpop.f32.mrb[0].mxu0
        %2739 = vdwg.mxu0
        %v2740 = vadd.f32 %v2563, %v2678
        %v2741 = vadd.f32 %v2564, %v2681
        %v2742 = vadd.f32 %v2565, %v2686
        %v2743 = vadd.f32 %v2566, %v2689
        %v2744 = vadd.f32 %v2567, %v2694
        %v2745 = vadd.f32 %v2568, %v2697
        %v2746 = vadd.f32 %v2569, %v2702
        %v2747 = vadd.f32 %v2570, %v2705
        %v2748 = vadd.f32 %v2571, %v2710
        %v2749 = vadd.f32 %v2572, %v2713
        %v2750 = vadd.f32 %v2573, %v2718
        %v2751 = vadd.f32 %v2574, %v2721
        %v2752 = vadd.f32 %v2575, %v2726
        %v2753 = vadd.f32 %v2576, %v2729
        %v2754 = vadd.f32 %v2577, %v2734
        %v2755 = vadd.f32 %v2578, %v2737
        %2756 = vst [vmem:[#allocation2] sm:$0xff] %v2740
        %2757 = vst [vmem:[#allocation2 + $0x8] sm:$0xff] %v2741
        %2758 = vst [vmem:[#allocation2 + $0x10] sm:$0xff] %v2742
        %2759 = vst [vmem:[#allocation2 + $0x18] sm:$0xff] %v2743
        %2760 = vst [vmem:[#allocation2 + $0x20] sm:$0xff] %v2744
        %2761 = vst [vmem:[#allocation2 + $0x28] sm:$0xff] %v2745
        %2762 = vst [vmem:[#allocation2 + $0x30] sm:$0xff] %v2746
        %2763 = vst [vmem:[#allocation2 + $0x38] sm:$0xff] %v2747
        %2764 = vst [vmem:[#allocation2 + $0x40] sm:$0xff] %v2748
        %2765 = vst [vmem:[#allocation2 + $0x48] sm:$0xff] %v2749
        %2766 = vst [vmem:[#allocation2 + $0x50] sm:$0xff] %v2750
        %2767 = vst [vmem:[#allocation2 + $0x58] sm:$0xff] %v2751
        %2768 = vst [vmem:[#allocation2 + $0x60] sm:$0xff] %v2752
        %2769 = vst [vmem:[#allocation2 + $0x68] sm:$0xff] %v2753
        %2770 = vst [vmem:[#allocation2 + $0x70] sm:$0xff] %v2754
        %2771 = vst [vmem:[#allocation2 + $0x78] sm:$0xff] %v2755
        %2772 = vmatprep.subr.bf16.mxu0 0
        %2773 = vmatpush1.bf16.xpose.msra.mxu0 %v2064
        %2774 = vmatprep.subr.bf16.mxu0 0
        %2775 = vmatpush1.bf16.xpose.msra.mxu0 %v2076
        %2776 = vmatprep.subr.bf16.mxu0 0
        %2777 = vmatpush1.bf16.xpose.msra.mxu0 %v2088
        %2778 = vmatprep.subr.bf16.mxu0 0
        %2779 = vmatpush1.bf16.xpose.msra.mxu0 %v2100
        %2780 = vmatprep.subr.bf16.mxu0 0
        %2781 = vmatpush1.bf16.xpose.msra.mxu0 %v2112
        %2782 = vmatprep.subr.bf16.mxu0 0
        %2783 = vmatpush1.bf16.xpose.msra.mxu0 %v2124
        %2784 = vmatprep.subr.bf16.mxu0 0
        %2785 = vmatpush1.bf16.xpose.msra.mxu0 %v2136
        %2786 = vmatprep.subr.bf16.mxu0 0
        %2787 = vmatpush1.bf16.xpose.msra.mxu0 %v2148
        %2788 = vmatprep.subr.bf16.mxu0 0
        %2789 = vmatpush1.bf16.xpose.msra.mxu0 0
        %2790 = vmatprep.subr.bf16.mxu0 0
        %2791 = vmatpush1.bf16.xpose.msra.mxu0 0
        %2792 = vmatprep.subr.bf16.mxu0 0
        %2793 = vmatpush1.bf16.xpose.msra.mxu0 0
        %2794 = vmatprep.subr.bf16.mxu0 0
        %2795 = vmatpush1.bf16.xpose.msra.mxu0 0
        %2796 = vmatprep.subr.bf16.mxu0 0
        %2797 = vmatpush1.bf16.xpose.msra.mxu0 0
        %2798 = vmatprep.subr.bf16.mxu0 0
        %2799 = vmatpush1.bf16.xpose.msra.mxu0 0
        %2800 = vmatprep.subr.bf16.mxu0 0
        %2801 = vmatpush1.bf16.xpose.msra.mxu0 0
        %2802 = vmatprep.subr.bf16.mxu0 0
        %2803 = vmatpush1.bf16.xpose.msra.mxu0 0
        %2804 = vmatprep.mubr.bf16.mxu0 0
        %2805 = vmatmul.mubr.bf16.gmra.mrb[0].mxu0 %v2060
        %v2806 = vpop.f32.mrb[0].mxu0
        %v2807 = vadd.f32 0.0, %v2806
        %v2808 = vpop.f32.mrb[0].mxu0
        %v2809 = vpop.f32.mrb[0].mxu0
        %v2810 = vadd.f32 0.0, %v2809
        %v2811 = vpop.f32.mrb[0].mxu0
        %2812 = vmatprep.mubr.bf16.mxu0 0
        %2813 = vmatmul.mubr.bf16.gmra.mrb[0].mxu0 %v2072
        %v2814 = vpop.f32.mrb[0].mxu0
        %v2815 = vadd.f32 0.0, %v2814
        %v2816 = vpop.f32.mrb[0].mxu0
        %v2817 = vpop.f32.mrb[0].mxu0
        %v2818 = vadd.f32 0.0, %v2817
        %v2819 = vpop.f32.mrb[0].mxu0
        %2820 = vmatprep.mubr.bf16.mxu0 0
        %2821 = vmatmul.mubr.bf16.gmra.mrb[0].mxu0 %v2084
        %v2822 = vpop.f32.mrb[0].mxu0
        %v2823 = vadd.f32 0.0, %v2822
        %v2824 = vpop.f32.mrb[0].mxu0
        %v2825 = vpop.f32.mrb[0].mxu0
        %v2826 = vadd.f32 0.0, %v2825
        %v2827 = vpop.f32.mrb[0].mxu0
        %2828 = vmatprep.mubr.bf16.mxu0 0
        %2829 = vmatmul.mubr.bf16.gmra.mrb[0].mxu0 %v2096
        %v2830 = vpop.f32.mrb[0].mxu0
        %v2831 = vadd.f32 0.0, %v2830
        %v2832 = vpop.f32.mrb[0].mxu0
        %v2833 = vpop.f32.mrb[0].mxu0
        %v2834 = vadd.f32 0.0, %v2833
        %v2835 = vpop.f32.mrb[0].mxu0
        %2836 = vmatprep.mubr.bf16.mxu0 0
        %2837 = vmatmul.mubr.bf16.gmra.mrb[0].mxu0 %v2108
        %v2838 = vpop.f32.mrb[0].mxu0
        %v2839 = vadd.f32 0.0, %v2838
        %v2840 = vpop.f32.mrb[0].mxu0
        %v2841 = vpop.f32.mrb[0].mxu0
        %v2842 = vadd.f32 0.0, %v2841
        %v2843 = vpop.f32.mrb[0].mxu0
        %2844 = vmatprep.mubr.bf16.mxu0 0
        %2845 = vmatmul.mubr.bf16.gmra.mrb[0].mxu0 %v2120
        %v2846 = vpop.f32.mrb[0].mxu0
        %v2847 = vadd.f32 0.0, %v2846
        %v2848 = vpop.f32.mrb[0].mxu0
        %v2849 = vpop.f32.mrb[0].mxu0
        %v2850 = vadd.f32 0.0, %v2849
        %v2851 = vpop.f32.mrb[0].mxu0
        %2852 = vmatprep.mubr.bf16.mxu0 0
        %2853 = vmatmul.mubr.bf16.gmra.mrb[0].mxu0 %v2132
        %v2854 = vpop.f32.mrb[0].mxu0
        %v2855 = vadd.f32 0.0, %v2854
        %v2856 = vpop.f32.mrb[0].mxu0
        %v2857 = vpop.f32.mrb[0].mxu0
        %v2858 = vadd.f32 0.0, %v2857
        %v2859 = vpop.f32.mrb[0].mxu0
        %2860 = vmatprep.mubr.bf16.mxu0 0
        %2861 = vmatmul.mubr.bf16.gmra.mrb[0].mxu0 %v2144
        %v2862 = vpop.f32.mrb[0].mxu0
        %v2863 = vadd.f32 0.0, %v2862
        %v2864 = vpop.f32.mrb[0].mxu0
        %v2865 = vpop.f32.mrb[0].mxu0
        %v2866 = vadd.f32 0.0, %v2865
        %v2867 = vpop.f32.mrb[0].mxu0
        %2868 = vdwg.mxu0
        %v2869 = vmul.f32 %v2807, 0.17677669
        %v2870 = vmul.f32 %v2810, 0.17677669
        %v2871 = vmul.f32 %v2815, 0.17677669
        %v2872 = vmul.f32 %v2818, 0.17677669
        %v2873 = vmul.f32 %v2823, 0.17677669
        %v2874 = vmul.f32 %v2826, 0.17677669
        %v2875 = vmul.f32 %v2831, 0.17677669
        %v2876 = vmul.f32 %v2834, 0.17677669
        %v2877 = vmul.f32 %v2839, 0.17677669
        %v2878 = vmul.f32 %v2842, 0.17677669
        %v2879 = vmul.f32 %v2847, 0.17677669
        %v2880 = vmul.f32 %v2850, 0.17677669
        %v2881 = vmul.f32 %v2855, 0.17677669
        %v2882 = vmul.f32 %v2858, 0.17677669
        %v2883 = vmul.f32 %v2863, 0.17677669
        %v2884 = vmul.f32 %v2866, 0.17677669
        %v2885 = vadd.f32 %v2869, %v2288
        %v2886 = vadd.f32 %v2870, %v2288
        %v2887 = vadd.f32 %v2871, %v2288
        %v2888 = vadd.f32 %v2872, %v2288
        %v2889 = vadd.f32 %v2873, %v2288
        %v2890 = vadd.f32 %v2874, %v2288
        %v2891 = vadd.f32 %v2875, %v2288
        %v2892 = vadd.f32 %v2876, %v2288
        %v2893 = vadd.f32 %v2877, %v2288
        %v2894 = vadd.f32 %v2878, %v2288
        %v2895 = vadd.f32 %v2879, %v2288
        %v2896 = vadd.f32 %v2880, %v2288
        %v2897 = vadd.f32 %v2881, %v2288
        %v2898 = vadd.f32 %v2882, %v2288
        %v2899 = vadd.f32 %v2883, %v2288
        %v2900 = vadd.f32 %v2884, %v2288
        %2901 = vmax.xlane.f32.xlu0 %v2885
        %v2902 = vpop.xlane.xlu0 %2901
        %2903 = vmax.xlane.f32.xlu0 %v2886
        %v2904 = vpop.xlane.xlu0 %2903
        %2905 = vmax.xlane.f32.xlu0 %v2887
        %v2906 = vpop.xlane.xlu0 %2905
        %2907 = vmax.xlane.f32.xlu0 %v2888
        %v2908 = vpop.xlane.xlu0 %2907
        %2909 = vmax.xlane.f32.xlu0 %v2889
        %v2910 = vpop.xlane.xlu0 %2909
        %2911 = vmax.xlane.f32.xlu0 %v2890
        %v2912 = vpop.xlane.xlu0 %2911
        %2913 = vmax.xlane.f32.xlu0 %v2891
        %v2914 = vpop.xlane.xlu0 %2913
        %2915 = vmax.xlane.f32.xlu0 %v2892
        %v2916 = vpop.xlane.xlu0 %2915
        %2917 = vmax.xlane.f32.xlu0 %v2893
        %v2918 = vpop.xlane.xlu0 %2917
        %2919 = vmax.xlane.f32.xlu0 %v2894
        %v2920 = vpop.xlane.xlu0 %2919
        %2921 = vmax.xlane.f32.xlu0 %v2895
        %v2922 = vpop.xlane.xlu0 %2921
        %2923 = vmax.xlane.f32.xlu0 %v2896
        %v2924 = vpop.xlane.xlu0 %2923
        %2925 = vmax.xlane.f32.xlu0 %v2897
        %v2926 = vpop.xlane.xlu0 %2925
        %2927 = vmax.xlane.f32.xlu0 %v2898
        %v2928 = vpop.xlane.xlu0 %2927
        %2929 = vmax.xlane.f32.xlu0 %v2899
        %v2930 = vpop.xlane.xlu0 %2929
        %2931 = vmax.xlane.f32.xlu0 %v2900
        %v2932 = vpop.xlane.xlu0 %2931
        %v2933 = vsub.f32 %v2885, %v2902
        %v2934 = vsub.f32 %v2886, %v2904
        %v2935 = vsub.f32 %v2887, %v2906
        %v2936 = vsub.f32 %v2888, %v2908
        %v2937 = vsub.f32 %v2889, %v2910
        %v2938 = vsub.f32 %v2890, %v2912
        %v2939 = vsub.f32 %v2891, %v2914
        %v2940 = vsub.f32 %v2892, %v2916
        %v2941 = vsub.f32 %v2893, %v2918
        %v2942 = vsub.f32 %v2894, %v2920
        %v2943 = vsub.f32 %v2895, %v2922
        %v2944 = vsub.f32 %v2896, %v2924
        %v2945 = vsub.f32 %v2897, %v2926
        %v2946 = vsub.f32 %v2898, %v2928
        %v2947 = vsub.f32 %v2899, %v2930
        %v2948 = vsub.f32 %v2900, %v2932
        %v2949 = vmul.f32 %v2933, 1.442695
        %v2950 = vpow.pop %v2949
        %v2951 = vmul.f32 %v2934, 1.442695
        %v2952 = vpow.pop %v2951
        %v2953 = vmul.f32 %v2935, 1.442695
        %v2954 = vpow.pop %v2953
        %v2955 = vmul.f32 %v2936, 1.442695
        %v2956 = vpow.pop %v2955
        %v2957 = vmul.f32 %v2937, 1.442695
        %v2958 = vpow.pop %v2957
        %v2959 = vmul.f32 %v2938, 1.442695
        %v2960 = vpow.pop %v2959
        %v2961 = vmul.f32 %v2939, 1.442695
        %v2962 = vpow.pop %v2961
        %v2963 = vmul.f32 %v2940, 1.442695
        %v2964 = vpow.pop %v2963
        %v2965 = vmul.f32 %v2941, 1.442695
        %v2966 = vpow.pop %v2965
        %v2967 = vmul.f32 %v2942, 1.442695
        %v2968 = vpow.pop %v2967
        %v2969 = vmul.f32 %v2943, 1.442695
        %v2970 = vpow.pop %v2969
        %v2971 = vmul.f32 %v2944, 1.442695
        %v2972 = vpow.pop %v2971
        %v2973 = vmul.f32 %v2945, 1.442695
        %v2974 = vpow.pop %v2973
        %v2975 = vmul.f32 %v2946, 1.442695
        %v2976 = vpow.pop %v2975
        %v2977 = vmul.f32 %v2947, 1.442695
        %v2978 = vpow.pop %v2977
        %v2979 = vmul.f32 %v2948, 1.442695
        %v2980 = vpow.pop %v2979
        %2981 = vadd.xlane.f32.xlu0 %v2950
        %v2982 = vpop.xlane.xlu0 %2981
        %2983 = vadd.xlane.f32.xlu0 %v2952
        %v2984 = vpop.xlane.xlu0 %2983
        %2985 = vadd.xlane.f32.xlu0 %v2954
        %v2986 = vpop.xlane.xlu0 %2985
        %2987 = vadd.xlane.f32.xlu0 %v2956
        %v2988 = vpop.xlane.xlu0 %2987
        %2989 = vadd.xlane.f32.xlu0 %v2958
        %v2990 = vpop.xlane.xlu0 %2989
        %2991 = vadd.xlane.f32.xlu0 %v2960
        %v2992 = vpop.xlane.xlu0 %2991
        %2993 = vadd.xlane.f32.xlu0 %v2962
        %v2994 = vpop.xlane.xlu0 %2993
        %2995 = vadd.xlane.f32.xlu0 %v2964
        %v2996 = vpop.xlane.xlu0 %2995
        %2997 = vadd.xlane.f32.xlu0 %v2966
        %v2998 = vpop.xlane.xlu0 %2997
        %2999 = vadd.xlane.f32.xlu0 %v2968
        %v3000 = vpop.xlane.xlu0 %2999
        %3001 = vadd.xlane.f32.xlu0 %v2970
        %v3002 = vpop.xlane.xlu0 %3001
        %3003 = vadd.xlane.f32.xlu0 %v2972
        %v3004 = vpop.xlane.xlu0 %3003
        %3005 = vadd.xlane.f32.xlu0 %v2974
        %v3006 = vpop.xlane.xlu0 %3005
        %3007 = vadd.xlane.f32.xlu0 %v2976
        %v3008 = vpop.xlane.xlu0 %3007
        %3009 = vadd.xlane.f32.xlu0 %v2978
        %v3010 = vpop.xlane.xlu0 %3009
        %3011 = vadd.xlane.f32.xlu0 %v2980
        %v3012 = vpop.xlane.xlu0 %3011
        %v3013 = vrcp.pop %v2982
        %v3014 = vrcp.pop %v2984
        %v3015 = vrcp.pop %v2986
        %v3016 = vrcp.pop %v2988
        %v3017 = vrcp.pop %v2990
        %v3018 = vrcp.pop %v2992
        %v3019 = vrcp.pop %v2994
        %v3020 = vrcp.pop %v2996
        %v3021 = vrcp.pop %v2998
        %v3022 = vrcp.pop %v3000
        %v3023 = vrcp.pop %v3002
        %v3024 = vrcp.pop %v3004
        %v3025 = vrcp.pop %v3006
        %v3026 = vrcp.pop %v3008
        %v3027 = vrcp.pop %v3010
        %v3028 = vrcp.pop %v3012
        %v3029 = vmul.f32 %v2950, %v3013
        %v3030 = vmul.f32 %v2952, %v3014
        %v3031 = vmul.f32 %v2954, %v3015
        %v3032 = vmul.f32 %v2956, %v3016
        %v3033 = vmul.f32 %v2958, %v3017
        %v3034 = vmul.f32 %v2960, %v3018
        %v3035 = vmul.f32 %v2962, %v3019
        %v3036 = vmul.f32 %v2964, %v3020
        %v3037 = vmul.f32 %v2966, %v3021
        %v3038 = vmul.f32 %v2968, %v3022
        %v3039 = vmul.f32 %v2970, %v3023
        %v3040 = vmul.f32 %v2972, %v3024
        %v3041 = vmul.f32 %v2974, %v3025
        %v3042 = vmul.f32 %v2976, %v3026
        %v3043 = vmul.f32 %v2978, %v3027
        %v3044 = vmul.f32 %v2980, %v3028
        %v3045 = vpack.c.bf16 %v3030, %v3029
        %v3046 = vpack.c.bf16 %v3032, %v3031
        %v3047 = vpack.c.bf16 %v3034, %v3033
        %v3048 = vpack.c.bf16 %v3036, %v3035
        %v3049 = vpack.c.bf16 %v3038, %v3037
        %v3050 = vpack.c.bf16 %v3040, %v3039
        %v3051 = vpack.c.bf16 %v3042, %v3041
        %v3052 = vpack.c.bf16 %v3044, %v3043
        %3053 = vmatprep.subr.bf16.mxu0 0
        %3054 = vmatpush1.bf16.msra.mxu0 %v2068
        %3055 = vmatprep.subr.bf16.mxu0 0
        %3056 = vmatpush1.bf16.msra.mxu0 %v2080
        %3057 = vmatprep.subr.bf16.mxu0 0
        %3058 = vmatpush1.bf16.msra.mxu0 %v2092
        %3059 = vmatprep.subr.bf16.mxu0 0
        %3060 = vmatpush1.bf16.msra.mxu0 %v2104
        %3061 = vmatprep.subr.bf16.mxu0 0
        %3062 = vmatpush1.bf16.msra.mxu0 %v2116
        %3063 = vmatprep.subr.bf16.mxu0 0
        %3064 = vmatpush1.bf16.msra.mxu0 %v2128
        %3065 = vmatprep.subr.bf16.mxu0 0
        %3066 = vmatpush1.bf16.msra.mxu0 %v2140
        %3067 = vmatprep.subr.bf16.mxu0 0
        %3068 = vmatpush1.bf16.msra.mxu0 %v2152
        %3069 = vmatprep.subr.bf16.mxu0 0
        %3070 = vmatpush1.bf16.msra.mxu0 0
        %3071 = vmatprep.subr.bf16.mxu0 0
        %3072 = vmatpush1.bf16.msra.mxu0 0
        %3073 = vmatprep.subr.bf16.mxu0 0
        %3074 = vmatpush1.bf16.msra.mxu0 0
        %3075 = vmatprep.subr.bf16.mxu0 0
        %3076 = vmatpush1.bf16.msra.mxu0 0
        %3077 = vmatprep.subr.bf16.mxu0 0
        %3078 = vmatpush1.bf16.msra.mxu0 0
        %3079 = vmatprep.subr.bf16.mxu0 0
        %3080 = vmatpush1.bf16.msra.mxu0 0
        %3081 = vmatprep.subr.bf16.mxu0 0
        %3082 = vmatpush1.bf16.msra.mxu0 0
        %3083 = vmatprep.subr.bf16.mxu0 0
        %3084 = vmatpush1.bf16.msra.mxu0 0
        %3085 = vmatprep.mubr.bf16.mxu0 0
        %3086 = vmatmul.mubr.bf16.gmra.mrb[0].mxu0 %v3045
        %v3087 = vpop.f32.mrb[0].mxu0
        %v3088 = vadd.f32 0.0, %v3087
        %v3089 = vpop.f32.mrb[0].mxu0
        %v3090 = vpop.f32.mrb[0].mxu0
        %v3091 = vadd.f32 0.0, %v3090
        %v3092 = vpop.f32.mrb[0].mxu0
        %3093 = vmatprep.mubr.bf16.mxu0 0
        %3094 = vmatmul.mubr.bf16.gmra.mrb[0].mxu0 %v3046
        %v3095 = vpop.f32.mrb[0].mxu0
        %v3096 = vadd.f32 0.0, %v3095
        %v3097 = vpop.f32.mrb[0].mxu0
        %v3098 = vpop.f32.mrb[0].mxu0
        %v3099 = vadd.f32 0.0, %v3098
        %v3100 = vpop.f32.mrb[0].mxu0
        %3101 = vmatprep.mubr.bf16.mxu0 0
        %3102 = vmatmul.mubr.bf16.gmra.mrb[0].mxu0 %v3047
        %v3103 = vpop.f32.mrb[0].mxu0
        %v3104 = vadd.f32 0.0, %v3103
        %v3105 = vpop.f32.mrb[0].mxu0
        %v3106 = vpop.f32.mrb[0].mxu0
        %v3107 = vadd.f32 0.0, %v3106
        %v3108 = vpop.f32.mrb[0].mxu0
        %3109 = vmatprep.mubr.bf16.mxu0 0
        %3110 = vmatmul.mubr.bf16.gmra.mrb[0].mxu0 %v3048
        %v3111 = vpop.f32.mrb[0].mxu0
        %v3112 = vadd.f32 0.0, %v3111
        %v3113 = vpop.f32.mrb[0].mxu0
        %v3114 = vpop.f32.mrb[0].mxu0
        %v3115 = vadd.f32 0.0, %v3114
        %v3116 = vpop.f32.mrb[0].mxu0
        %3117 = vmatprep.mubr.bf16.mxu0 0
        %3118 = vmatmul.mubr.bf16.gmra.mrb[0].mxu0 %v3049
        %v3119 = vpop.f32.mrb[0].mxu0
        %v3120 = vadd.f32 0.0, %v3119
        %v3121 = vpop.f32.mrb[0].mxu0
        %v3122 = vpop.f32.mrb[0].mxu0
        %v3123 = vadd.f32 0.0, %v3122
        %v3124 = vpop.f32.mrb[0].mxu0
        %3125 = vmatprep.mubr.bf16.mxu0 0
        %3126 = vmatmul.mubr.bf16.gmra.mrb[0].mxu0 %v3050
        %v3127 = vpop.f32.mrb[0].mxu0
        %v3128 = vadd.f32 0.0, %v3127
        %v3129 = vpop.f32.mrb[0].mxu0
        %v3130 = vpop.f32.mrb[0].mxu0
        %v3131 = vadd.f32 0.0, %v3130
        %v3132 = vpop.f32.mrb[0].mxu0
        %3133 = vmatprep.mubr.bf16.mxu0 0
        %3134 = vmatmul.mubr.bf16.gmra.mrb[0].mxu0 %v3051
        %v3135 = vpop.f32.mrb[0].mxu0
        %v3136 = vadd.f32 0.0, %v3135
        %v3137 = vpop.f32.mrb[0].mxu0
        %v3138 = vpop.f32.mrb[0].mxu0
        %v3139 = vadd.f32 0.0, %v3138
        %v3140 = vpop.f32.mrb[0].mxu0
        %3141 = vmatprep.mubr.bf16.mxu0 0
        %3142 = vmatmul.mubr.bf16.gmra.mrb[0].mxu0 %v3052
        %v3143 = vpop.f32.mrb[0].mxu0
        %v3144 = vadd.f32 0.0, %v3143
        %v3145 = vpop.f32.mrb[0].mxu0
        %v3146 = vpop.f32.mrb[0].mxu0
        %v3147 = vadd.f32 0.0, %v3146
        %v3148 = vpop.f32.mrb[0].mxu0
        %3149 = vdwg.mxu0
        %v3150 = vpack.c.bf16 %v3091, %v3088
        %v3151 = vpack.c.bf16 %v3099, %v3096
        %v3152 = vpack.c.bf16 %v3107, %v3104
        %v3153 = vpack.c.bf16 %v3115, %v3112
        %v3154 = vpack.c.bf16 %v3123, %v3120
        %v3155 = vpack.c.bf16 %v3131, %v3128
        %v3156 = vpack.c.bf16 %v3139, %v3136
        %v3157 = vpack.c.bf16 %v3147, %v3144
        %v3158 = vld [vmem:[#allocation2] sm:$0xff]
        %v3159 = vld [vmem:[#allocation2 + $0x8] sm:$0xff]
        %v3160 = vld [vmem:[#allocation2 + $0x10] sm:$0xff]
        %v3161 = vld [vmem:[#allocation2 + $0x18] sm:$0xff]
        %v3162 = vld [vmem:[#allocation2 + $0x20] sm:$0xff]
        %v3163 = vld [vmem:[#allocation2 + $0x28] sm:$0xff]
        %v3164 = vld [vmem:[#allocation2 + $0x30] sm:$0xff]
        %v3165 = vld [vmem:[#allocation2 + $0x38] sm:$0xff]
        %v3166 = vld [vmem:[#allocation2 + $0x40] sm:$0xff]
        %v3167 = vld [vmem:[#allocation2 + $0x48] sm:$0xff]
        %v3168 = vld [vmem:[#allocation2 + $0x50] sm:$0xff]
        %v3169 = vld [vmem:[#allocation2 + $0x58] sm:$0xff]
        %v3170 = vld [vmem:[#allocation2 + $0x60] sm:$0xff]
        %v3171 = vld [vmem:[#allocation2 + $0x68] sm:$0xff]
        %v3172 = vld [vmem:[#allocation2 + $0x70] sm:$0xff]
        %v3173 = vld [vmem:[#allocation2 + $0x78] sm:$0xff]
        %v3174 = vld [vmem:[%s5 + $0x40] sm:$0xf]
        %v3175 = vld [vmem:[%s5 + $0x44] sm:$0xf]
        %v3176 = vld [vmem:[%s5 + $0x48] sm:$0xf]
        %v3177 = vld [vmem:[%s5 + $0x4c] sm:$0xf]
        %v3178 = vld [vmem:[%s5 + $0x50] sm:$0xf]
        %v3179 = vld [vmem:[%s5 + $0x54] sm:$0xf]
        %v3180 = vld [vmem:[%s5 + $0x58] sm:$0xf]
        %v3181 = vld [vmem:[%s5 + $0x5c] sm:$0xf]
        %v3182 = vld [vmem:[%s5 + $0x60] sm:$0xf]
        %v3183 = vld [vmem:[%s5 + $0x64] sm:$0xf]
        %v3184 = vld [vmem:[%s5 + $0x68] sm:$0xf]
        %v3185 = vld [vmem:[%s5 + $0x6c] sm:$0xf]
        %v3186 = vld [vmem:[%s5 + $0x70] sm:$0xf]
        %v3187 = vld [vmem:[%s5 + $0x74] sm:$0xf]
        %v3188 = vld [vmem:[%s5 + $0x78] sm:$0xf]
        %v3189 = vld [vmem:[%s5 + $0x7c] sm:$0xf]
        %v3206 = vunpack.c.l.b16 %v3174
        %v3207 = vunpack.c.l.b16 %v3175
        %v3208 = vunpack.c.l.b16 %v3176
        %v3209 = vunpack.c.l.b16 %v3177
        %v3210 = vunpack.c.l.b16 %v3178
        %v3211 = vunpack.c.l.b16 %v3179
        %v3212 = vunpack.c.l.b16 %v3180
        %v3213 = vunpack.c.l.b16 %v3181
        %v3214 = vunpack.c.l.b16 %v3182
        %v3215 = vunpack.c.l.b16 %v3183
        %v3216 = vunpack.c.l.b16 %v3184
        %v3217 = vunpack.c.l.b16 %v3185
        %v3218 = vunpack.c.l.b16 %v3186
        %v3219 = vunpack.c.l.b16 %v3187
        %v3220 = vunpack.c.l.b16 %v3188
        %v3221 = vunpack.c.l.b16 %v3189
        %v3222 = vpack.c.b16 %v3207, %v3206
        %v3223 = vpack.c.b16 %v3209, %v3208
        %v3224 = vpack.c.b16 %v3211, %v3210
        %v3225 = vpack.c.b16 %v3213, %v3212
        %v3226 = vpack.c.b16 %v3215, %v3214
        %v3227 = vpack.c.b16 %v3217, %v3216
        %v3228 = vpack.c.b16 %v3219, %v3218
        %v3229 = vpack.c.b16 %v3221, %v3220
        %3238 = vmatprep.subr.bf16.mxu0 0
        %3239 = vmatpush1.bf16.msra.mxu0 %v3222
        %3240 = vmatprep.subr.bf16.mxu0 0
        %3241 = vmatpush1.bf16.msra.mxu0 %v3223
        %3242 = vmatprep.subr.bf16.mxu0 0
        %3243 = vmatpush1.bf16.msra.mxu0 %v3224
        %3244 = vmatprep.subr.bf16.mxu0 0
        %3245 = vmatpush1.bf16.msra.mxu0 %v3225
        %3246 = vmatprep.subr.bf16.mxu0 0
        %3247 = vmatpush1.bf16.msra.mxu0 %v3226
        %3248 = vmatprep.subr.bf16.mxu0 0
        %3249 = vmatpush1.bf16.msra.mxu0 %v3227
        %3250 = vmatprep.subr.bf16.mxu0 0
        %3251 = vmatpush1.bf16.msra.mxu0 %v3228
        %3252 = vmatprep.subr.bf16.mxu0 0
        %3253 = vmatpush1.bf16.msra.mxu0 %v3229
        %3254 = vmatprep.subr.bf16.mxu0 0
        %3255 = vmatpush1.bf16.msra.mxu0 0
        %3256 = vmatprep.subr.bf16.mxu0 0
        %3257 = vmatpush1.bf16.msra.mxu0 0
        %3258 = vmatprep.subr.bf16.mxu0 0
        %3259 = vmatpush1.bf16.msra.mxu0 0
        %3260 = vmatprep.subr.bf16.mxu0 0
        %3261 = vmatpush1.bf16.msra.mxu0 0
        %3262 = vmatprep.subr.bf16.mxu0 0
        %3263 = vmatpush1.bf16.msra.mxu0 0
        %3264 = vmatprep.subr.bf16.mxu0 0
        %3265 = vmatpush1.bf16.msra.mxu0 0
        %3266 = vmatprep.subr.bf16.mxu0 0
        %3267 = vmatpush1.bf16.msra.mxu0 0
        %3268 = vmatprep.subr.bf16.mxu0 0
        %3269 = vmatpush1.bf16.msra.mxu0 0
        %3270 = vmatprep.mubr.bf16.mxu0 0
        %3271 = vmatmul.mubr.bf16.gmra.mrb[0].mxu0 %v3150
        %v3272 = vpop.f32.mrb[0].mxu0
        %v3273 = vadd.f32 0.0, %v3272
        %v3274 = vpop.f32.mrb[0].mxu0
        %v3275 = vpop.f32.mrb[0].mxu0
        %v3276 = vadd.f32 0.0, %v3275
        %v3277 = vpop.f32.mrb[0].mxu0
        %3278 = vmatprep.mubr.bf16.mxu0 0
        %3279 = vmatmul.mubr.bf16.gmra.mrb[0].mxu0 %v3151
        %v3280 = vpop.f32.mrb[0].mxu0
        %v3281 = vadd.f32 0.0, %v3280
        %v3282 = vpop.f32.mrb[0].mxu0
        %v3283 = vpop.f32.mrb[0].mxu0
        %v3284 = vadd.f32 0.0, %v3283
        %v3285 = vpop.f32.mrb[0].mxu0
        %3286 = vmatprep.mubr.bf16.mxu0 0
        %3287 = vmatmul.mubr.bf16.gmra.mrb[0].mxu0 %v3152
        %v3288 = vpop.f32.mrb[0].mxu0
        %v3289 = vadd.f32 0.0, %v3288
        %v3290 = vpop.f32.mrb[0].mxu0
        %v3291 = vpop.f32.mrb[0].mxu0
        %v3292 = vadd.f32 0.0, %v3291
        %v3293 = vpop.f32.mrb[0].mxu0
        %3294 = vmatprep.mubr.bf16.mxu0 0
        %3295 = vmatmul.mubr.bf16.gmra.mrb[0].mxu0 %v3153
        %v3296 = vpop.f32.mrb[0].mxu0
        %v3297 = vadd.f32 0.0, %v3296
        %v3298 = vpop.f32.mrb[0].mxu0
        %v3299 = vpop.f32.mrb[0].mxu0
        %v3300 = vadd.f32 0.0, %v3299
        %v3301 = vpop.f32.mrb[0].mxu0
        %3302 = vmatprep.mubr.bf16.mxu0 0
        %3303 = vmatmul.mubr.bf16.gmra.mrb[0].mxu0 %v3154
        %v3304 = vpop.f32.mrb[0].mxu0
        %v3305 = vadd.f32 0.0, %v3304
        %v3306 = vpop.f32.mrb[0].mxu0
        %v3307 = vpop.f32.mrb[0].mxu0
        %v3308 = vadd.f32 0.0, %v3307
        %v3309 = vpop.f32.mrb[0].mxu0
        %3310 = vmatprep.mubr.bf16.mxu0 0
        %3311 = vmatmul.mubr.bf16.gmra.mrb[0].mxu0 %v3155
        %v3312 = vpop.f32.mrb[0].mxu0
        %v3313 = vadd.f32 0.0, %v3312
        %v3314 = vpop.f32.mrb[0].mxu0
        %v3315 = vpop.f32.mrb[0].mxu0
        %v3316 = vadd.f32 0.0, %v3315
        %v3317 = vpop.f32.mrb[0].mxu0
        %3318 = vmatprep.mubr.bf16.mxu0 0
        %3319 = vmatmul.mubr.bf16.gmra.mrb[0].mxu0 %v3156
        %v3320 = vpop.f32.mrb[0].mxu0
        %v3321 = vadd.f32 0.0, %v3320
        %v3322 = vpop.f32.mrb[0].mxu0
        %v3323 = vpop.f32.mrb[0].mxu0
        %v3324 = vadd.f32 0.0, %v3323
        %v3325 = vpop.f32.mrb[0].mxu0
        %3326 = vmatprep.mubr.bf16.mxu0 0
        %3327 = vmatmul.mubr.bf16.gmra.mrb[0].mxu0 %v3157
        %v3328 = vpop.f32.mrb[0].mxu0
        %v3329 = vadd.f32 0.0, %v3328
        %v3330 = vpop.f32.mrb[0].mxu0
        %v3331 = vpop.f32.mrb[0].mxu0
        %v3332 = vadd.f32 0.0, %v3331
        %v3333 = vpop.f32.mrb[0].mxu0
        %3334 = vdwg.mxu0
        %v3335 = vadd.f32 %v3158, %v3273
        %v3336 = vadd.f32 %v3159, %v3276
        %v3337 = vadd.f32 %v3160, %v3281
        %v3338 = vadd.f32 %v3161, %v3284
        %v3339 = vadd.f32 %v3162, %v3289
        %v3340 = vadd.f32 %v3163, %v3292
        %v3341 = vadd.f32 %v3164, %v3297
        %v3342 = vadd.f32 %v3165, %v3300
        %v3343 = vadd.f32 %v3166, %v3305
        %v3344 = vadd.f32 %v3167, %v3308
        %v3345 = vadd.f32 %v3168, %v3313
        %v3346 = vadd.f32 %v3169, %v3316
        %v3347 = vadd.f32 %v3170, %v3321
        %v3348 = vadd.f32 %v3171, %v3324
        %v3349 = vadd.f32 %v3172, %v3329
        %v3350 = vadd.f32 %v3173, %v3332
        %3351 = vst [vmem:[#allocation2] sm:$0xff] %v3335
        %3352 = vst [vmem:[#allocation2 + $0x8] sm:$0xff] %v3336
        %3353 = vst [vmem:[#allocation2 + $0x10] sm:$0xff] %v3337
        %3354 = vst [vmem:[#allocation2 + $0x18] sm:$0xff] %v3338
        %3355 = vst [vmem:[#allocation2 + $0x20] sm:$0xff] %v3339
        %3356 = vst [vmem:[#allocation2 + $0x28] sm:$0xff] %v3340
        %3357 = vst [vmem:[#allocation2 + $0x30] sm:$0xff] %v3341
        %3358 = vst [vmem:[#allocation2 + $0x38] sm:$0xff] %v3342
        %3359 = vst [vmem:[#allocation2 + $0x40] sm:$0xff] %v3343
        %3360 = vst [vmem:[#allocation2 + $0x48] sm:$0xff] %v3344
        %3361 = vst [vmem:[#allocation2 + $0x50] sm:$0xff] %v3345
        %3362 = vst [vmem:[#allocation2 + $0x58] sm:$0xff] %v3346
        %3363 = vst [vmem:[#allocation2 + $0x60] sm:$0xff] %v3347
        %3364 = vst [vmem:[#allocation2 + $0x68] sm:$0xff] %v3348
        %3365 = vst [vmem:[#allocation2 + $0x70] sm:$0xff] %v3349
        %3366 = vst [vmem:[#allocation2 + $0x78] sm:$0xff] %v3350
        %3367 = vmatprep.subr.bf16.mxu0 0
        %3368 = vmatpush1.bf16.xpose.msra.mxu0 %v2065
        %3369 = vmatprep.subr.bf16.mxu0 0
        %3370 = vmatpush1.bf16.xpose.msra.mxu0 %v2077
        %3371 = vmatprep.subr.bf16.mxu0 0
        %3372 = vmatpush1.bf16.xpose.msra.mxu0 %v2089
        %3373 = vmatprep.subr.bf16.mxu0 0
        %3374 = vmatpush1.bf16.xpose.msra.mxu0 %v2101
        %3375 = vmatprep.subr.bf16.mxu0 0
        %3376 = vmatpush1.bf16.xpose.msra.mxu0 %v2113
        %3377 = vmatprep.subr.bf16.mxu0 0
        %3378 = vmatpush1.bf16.xpose.msra.mxu0 %v2125
        %3379 = vmatprep.subr.bf16.mxu0 0
        %3380 = vmatpush1.bf16.xpose.msra.mxu0 %v2137
        %3381 = vmatprep.subr.bf16.mxu0 0
        %3382 = vmatpush1.bf16.xpose.msra.mxu0 %v2149
        %3383 = vmatprep.subr.bf16.mxu0 0
        %3384 = vmatpush1.bf16.xpose.msra.mxu0 0
        %3385 = vmatprep.subr.bf16.mxu0 0
        %3386 = vmatpush1.bf16.xpose.msra.mxu0 0
        %3387 = vmatprep.subr.bf16.mxu0 0
        %3388 = vmatpush1.bf16.xpose.msra.mxu0 0
        %3389 = vmatprep.subr.bf16.mxu0 0
        %3390 = vmatpush1.bf16.xpose.msra.mxu0 0
        %3391 = vmatprep.subr.bf16.mxu0 0
        %3392 = vmatpush1.bf16.xpose.msra.mxu0 0
        %3393 = vmatprep.subr.bf16.mxu0 0
        %3394 = vmatpush1.bf16.xpose.msra.mxu0 0
        %3395 = vmatprep.subr.bf16.mxu0 0
        %3396 = vmatpush1.bf16.xpose.msra.mxu0 0
        %3397 = vmatprep.subr.bf16.mxu0 0
        %3398 = vmatpush1.bf16.xpose.msra.mxu0 0
        %3399 = vmatprep.mubr.bf16.mxu0 0
        %3400 = vmatmul.mubr.bf16.gmra.mrb[0].mxu0 %v2061
        %v3401 = vpop.f32.mrb[0].mxu0
        %v3402 = vadd.f32 0.0, %v3401
        %v3403 = vpop.f32.mrb[0].mxu0
        %v3404 = vpop.f32.mrb[0].mxu0
        %v3405 = vadd.f32 0.0, %v3404
        %v3406 = vpop.f32.mrb[0].mxu0
        %3407 = vmatprep.mubr.bf16.mxu0 0
        %3408 = vmatmul.mubr.bf16.gmra.mrb[0].mxu0 %v2073
        %v3409 = vpop.f32.mrb[0].mxu0
        %v3410 = vadd.f32 0.0, %v3409
        %v3411 = vpop.f32.mrb[0].mxu0
        %v3412 = vpop.f32.mrb[0].mxu0
        %v3413 = vadd.f32 0.0, %v3412
        %v3414 = vpop.f32.mrb[0].mxu0
        %3415 = vmatprep.mubr.bf16.mxu0 0
        %3416 = vmatmul.mubr.bf16.gmra.mrb[0].mxu0 %v2085
        %v3417 = vpop.f32.mrb[0].mxu0
        %v3418 = vadd.f32 0.0, %v3417
        %v3419 = vpop.f32.mrb[0].mxu0
        %v3420 = vpop.f32.mrb[0].mxu0
        %v3421 = vadd.f32 0.0, %v3420
        %v3422 = vpop.f32.mrb[0].mxu0
        %3423 = vmatprep.mubr.bf16.mxu0 0
        %3424 = vmatmul.mubr.bf16.gmra.mrb[0].mxu0 %v2097
        %v3425 = vpop.f32.mrb[0].mxu0
        %v3426 = vadd.f32 0.0, %v3425
        %v3427 = vpop.f32.mrb[0].mxu0
        %v3428 = vpop.f32.mrb[0].mxu0
        %v3429 = vadd.f32 0.0, %v3428
        %v3430 = vpop.f32.mrb[0].mxu0
        %3431 = vmatprep.mubr.bf16.mxu0 0
        %3432 = vmatmul.mubr.bf16.gmra.mrb[0].mxu0 %v2109
        %v3433 = vpop.f32.mrb[0].mxu0
        %v3434 = vadd.f32 0.0, %v3433
        %v3435 = vpop.f32.mrb[0].mxu0
        %v3436 = vpop.f32.mrb[0].mxu0
        %v3437 = vadd.f32 0.0, %v3436
        %v3438 = vpop.f32.mrb[0].mxu0
        %3439 = vmatprep.mubr.bf16.mxu0 0
        %3440 = vmatmul.mubr.bf16.gmra.mrb[0].mxu0 %v2121
        %v3441 = vpop.f32.mrb[0].mxu0
        %v3442 = vadd.f32 0.0, %v3441
        %v3443 = vpop.f32.mrb[0].mxu0
        %v3444 = vpop.f32.mrb[0].mxu0
        %v3445 = vadd.f32 0.0, %v3444
        %v3446 = vpop.f32.mrb[0].mxu0
        %3447 = vmatprep.mubr.bf16.mxu0 0
        %3448 = vmatmul.mubr.bf16.gmra.mrb[0].mxu0 %v2133
        %v3449 = vpop.f32.mrb[0].mxu0
        %v3450 = vadd.f32 0.0, %v3449
        %v3451 = vpop.f32.mrb[0].mxu0
        %v3452 = vpop.f32.mrb[0].mxu0
        %v3453 = vadd.f32 0.0, %v3452
        %v3454 = vpop.f32.mrb[0].mxu0
        %3455 = vmatprep.mubr.bf16.mxu0 0
        %3456 = vmatmul.mubr.bf16.gmra.mrb[0].mxu0 %v2145
        %v3457 = vpop.f32.mrb[0].mxu0
        %v3458 = vadd.f32 0.0, %v3457
        %v3459 = vpop.f32.mrb[0].mxu0
        %v3460 = vpop.f32.mrb[0].mxu0
        %v3461 = vadd.f32 0.0, %v3460
        %v3462 = vpop.f32.mrb[0].mxu0
        %3463 = vdwg.mxu0
        %v3464 = vmul.f32 %v3402, 0.17677669
        %v3465 = vmul.f32 %v3405, 0.17677669
        %v3466 = vmul.f32 %v3410, 0.17677669
        %v3467 = vmul.f32 %v3413, 0.17677669
        %v3468 = vmul.f32 %v3418, 0.17677669
        %v3469 = vmul.f32 %v3421, 0.17677669
        %v3470 = vmul.f32 %v3426, 0.17677669
        %v3471 = vmul.f32 %v3429, 0.17677669
        %v3472 = vmul.f32 %v3434, 0.17677669
        %v3473 = vmul.f32 %v3437, 0.17677669
        %v3474 = vmul.f32 %v3442, 0.17677669
        %v3475 = vmul.f32 %v3445, 0.17677669
        %v3476 = vmul.f32 %v3450, 0.17677669
        %v3477 = vmul.f32 %v3453, 0.17677669
        %v3478 = vmul.f32 %v3458, 0.17677669
        %v3479 = vmul.f32 %v3461, 0.17677669
        %v3480 = vadd.f32 %v3464, %v2288
        %v3481 = vadd.f32 %v3465, %v2288
        %v3482 = vadd.f32 %v3466, %v2288
        %v3483 = vadd.f32 %v3467, %v2288
        %v3484 = vadd.f32 %v3468, %v2288
        %v3485 = vadd.f32 %v3469, %v2288
        %v3486 = vadd.f32 %v3470, %v2288
        %v3487 = vadd.f32 %v3471, %v2288
        %v3488 = vadd.f32 %v3472, %v2288
        %v3489 = vadd.f32 %v3473, %v2288
        %v3490 = vadd.f32 %v3474, %v2288
        %v3491 = vadd.f32 %v3475, %v2288
        %v3492 = vadd.f32 %v3476, %v2288
        %v3493 = vadd.f32 %v3477, %v2288
        %v3494 = vadd.f32 %v3478, %v2288
        %v3495 = vadd.f32 %v3479, %v2288
        %3496 = vmax.xlane.f32.xlu0 %v3480
        %v3497 = vpop.xlane.xlu0 %3496
        %3498 = vmax.xlane.f32.xlu0 %v3481
        %v3499 = vpop.xlane.xlu0 %3498
        %3500 = vmax.xlane.f32.xlu0 %v3482
        %v3501 = vpop.xlane.xlu0 %3500
        %3502 = vmax.xlane.f32.xlu0 %v3483
        %v3503 = vpop.xlane.xlu0 %3502
        %3504 = vmax.xlane.f32.xlu0 %v3484
        %v3505 = vpop.xlane.xlu0 %3504
        %3506 = vmax.xlane.f32.xlu0 %v3485
        %v3507 = vpop.xlane.xlu0 %3506
        %3508 = vmax.xlane.f32.xlu0 %v3486
        %v3509 = vpop.xlane.xlu0 %3508
        %3510 = vmax.xlane.f32.xlu0 %v3487
        %v3511 = vpop.xlane.xlu0 %3510
        %3512 = vmax.xlane.f32.xlu0 %v3488
        %v3513 = vpop.xlane.xlu0 %3512
        %3514 = vmax.xlane.f32.xlu0 %v3489
        %v3515 = vpop.xlane.xlu0 %3514
        %3516 = vmax.xlane.f32.xlu0 %v3490
        %v3517 = vpop.xlane.xlu0 %3516
        %3518 = vmax.xlane.f32.xlu0 %v3491
        %v3519 = vpop.xlane.xlu0 %3518
        %3520 = vmax.xlane.f32.xlu0 %v3492
        %v3521 = vpop.xlane.xlu0 %3520
        %3522 = vmax.xlane.f32.xlu0 %v3493
        %v3523 = vpop.xlane.xlu0 %3522
        %3524 = vmax.xlane.f32.xlu0 %v3494
        %v3525 = vpop.xlane.xlu0 %3524
        %3526 = vmax.xlane.f32.xlu0 %v3495
        %v3527 = vpop.xlane.xlu0 %3526
        %v3528 = vsub.f32 %v3480, %v3497
        %v3529 = vsub.f32 %v3481, %v3499
        %v3530 = vsub.f32 %v3482, %v3501
        %v3531 = vsub.f32 %v3483, %v3503
        %v3532 = vsub.f32 %v3484, %v3505
        %v3533 = vsub.f32 %v3485, %v3507
        %v3534 = vsub.f32 %v3486, %v3509
        %v3535 = vsub.f32 %v3487, %v3511
        %v3536 = vsub.f32 %v3488, %v3513
        %v3537 = vsub.f32 %v3489, %v3515
        %v3538 = vsub.f32 %v3490, %v3517
        %v3539 = vsub.f32 %v3491, %v3519
        %v3540 = vsub.f32 %v3492, %v3521
        %v3541 = vsub.f32 %v3493, %v3523
        %v3542 = vsub.f32 %v3494, %v3525
        %v3543 = vsub.f32 %v3495, %v3527
        %v3544 = vmul.f32 %v3528, 1.442695
        %v3545 = vpow.pop %v3544
        %v3546 = vmul.f32 %v3529, 1.442695
        %v3547 = vpow.pop %v3546
        %v3548 = vmul.f32 %v3530, 1.442695
        %v3549 = vpow.pop %v3548
        %v3550 = vmul.f32 %v3531, 1.442695
        %v3551 = vpow.pop %v3550
        %v3552 = vmul.f32 %v3532, 1.442695
        %v3553 = vpow.pop %v3552
        %v3554 = vmul.f32 %v3533, 1.442695
        %v3555 = vpow.pop %v3554
        %v3556 = vmul.f32 %v3534, 1.442695
        %v3557 = vpow.pop %v3556
        %v3558 = vmul.f32 %v3535, 1.442695
        %v3559 = vpow.pop %v3558
        %v3560 = vmul.f32 %v3536, 1.442695
        %v3561 = vpow.pop %v3560
        %v3562 = vmul.f32 %v3537, 1.442695
        %v3563 = vpow.pop %v3562
        %v3564 = vmul.f32 %v3538, 1.442695
        %v3565 = vpow.pop %v3564
        %v3566 = vmul.f32 %v3539, 1.442695
        %v3567 = vpow.pop %v3566
        %v3568 = vmul.f32 %v3540, 1.442695
        %v3569 = vpow.pop %v3568
        %v3570 = vmul.f32 %v3541, 1.442695
        %v3571 = vpow.pop %v3570
        %v3572 = vmul.f32 %v3542, 1.442695
        %v3573 = vpow.pop %v3572
        %v3574 = vmul.f32 %v3543, 1.442695
        %v3575 = vpow.pop %v3574
        %3576 = vadd.xlane.f32.xlu0 %v3545
        %v3577 = vpop.xlane.xlu0 %3576
        %3578 = vadd.xlane.f32.xlu0 %v3547
        %v3579 = vpop.xlane.xlu0 %3578
        %3580 = vadd.xlane.f32.xlu0 %v3549
        %v3581 = vpop.xlane.xlu0 %3580
        %3582 = vadd.xlane.f32.xlu0 %v3551
        %v3583 = vpop.xlane.xlu0 %3582
        %3584 = vadd.xlane.f32.xlu0 %v3553
        %v3585 = vpop.xlane.xlu0 %3584
        %3586 = vadd.xlane.f32.xlu0 %v3555
        %v3587 = vpop.xlane.xlu0 %3586
        %3588 = vadd.xlane.f32.xlu0 %v3557
        %v3589 = vpop.xlane.xlu0 %3588
        %3590 = vadd.xlane.f32.xlu0 %v3559
        %v3591 = vpop.xlane.xlu0 %3590
        %3592 = vadd.xlane.f32.xlu0 %v3561
        %v3593 = vpop.xlane.xlu0 %3592
        %3594 = vadd.xlane.f32.xlu0 %v3563
        %v3595 = vpop.xlane.xlu0 %3594
        %3596 = vadd.xlane.f32.xlu0 %v3565
        %v3597 = vpop.xlane.xlu0 %3596
        %3598 = vadd.xlane.f32.xlu0 %v3567
        %v3599 = vpop.xlane.xlu0 %3598
        %3600 = vadd.xlane.f32.xlu0 %v3569
        %v3601 = vpop.xlane.xlu0 %3600
        %3602 = vadd.xlane.f32.xlu0 %v3571
        %v3603 = vpop.xlane.xlu0 %3602
        %3604 = vadd.xlane.f32.xlu0 %v3573
        %v3605 = vpop.xlane.xlu0 %3604
        %3606 = vadd.xlane.f32.xlu0 %v3575
        %v3607 = vpop.xlane.xlu0 %3606
        %v3608 = vrcp.pop %v3577
        %v3609 = vrcp.pop %v3579
        %v3610 = vrcp.pop %v3581
        %v3611 = vrcp.pop %v3583
        %v3612 = vrcp.pop %v3585
        %v3613 = vrcp.pop %v3587
        %v3614 = vrcp.pop %v3589
        %v3615 = vrcp.pop %v3591
        %v3616 = vrcp.pop %v3593
        %v3617 = vrcp.pop %v3595
        %v3618 = vrcp.pop %v3597
        %v3619 = vrcp.pop %v3599
        %v3620 = vrcp.pop %v3601
        %v3621 = vrcp.pop %v3603
        %v3622 = vrcp.pop %v3605
        %v3623 = vrcp.pop %v3607
        %v3624 = vmul.f32 %v3545, %v3608
        %v3625 = vmul.f32 %v3547, %v3609
        %v3626 = vmul.f32 %v3549, %v3610
        %v3627 = vmul.f32 %v3551, %v3611
        %v3628 = vmul.f32 %v3553, %v3612
        %v3629 = vmul.f32 %v3555, %v3613
        %v3630 = vmul.f32 %v3557, %v3614
        %v3631 = vmul.f32 %v3559, %v3615
        %v3632 = vmul.f32 %v3561, %v3616
        %v3633 = vmul.f32 %v3563, %v3617
        %v3634 = vmul.f32 %v3565, %v3618
        %v3635 = vmul.f32 %v3567, %v3619
        %v3636 = vmul.f32 %v3569, %v3620
        %v3637 = vmul.f32 %v3571, %v3621
        %v3638 = vmul.f32 %v3573, %v3622
        %v3639 = vmul.f32 %v3575, %v3623
        %v3640 = vpack.c.bf16 %v3625, %v3624
        %v3641 = vpack.c.bf16 %v3627, %v3626
        %v3642 = vpack.c.bf16 %v3629, %v3628
        %v3643 = vpack.c.bf16 %v3631, %v3630
        %v3644 = vpack.c.bf16 %v3633, %v3632
        %v3645 = vpack.c.bf16 %v3635, %v3634
        %v3646 = vpack.c.bf16 %v3637, %v3636
        %v3647 = vpack.c.bf16 %v3639, %v3638
        %3648 = vmatprep.subr.bf16.mxu0 0
        %3649 = vmatpush1.bf16.msra.mxu0 %v2069
        %3650 = vmatprep.subr.bf16.mxu0 0
        %3651 = vmatpush1.bf16.msra.mxu0 %v2081
        %3652 = vmatprep.subr.bf16.mxu0 0
        %3653 = vmatpush1.bf16.msra.mxu0 %v2093
        %3654 = vmatprep.subr.bf16.mxu0 0
        %3655 = vmatpush1.bf16.msra.mxu0 %v2105
        %3656 = vmatprep.subr.bf16.mxu0 0
        %3657 = vmatpush1.bf16.msra.mxu0 %v2117
        %3658 = vmatprep.subr.bf16.mxu0 0
        %3659 = vmatpush1.bf16.msra.mxu0 %v2129
        %3660 = vmatprep.subr.bf16.mxu0 0
        %3661 = vmatpush1.bf16.msra.mxu0 %v2141
        %3662 = vmatprep.subr.bf16.mxu0 0
        %3663 = vmatpush1.bf16.msra.mxu0 %v2153
        %3664 = vmatprep.subr.bf16.mxu0 0
        %3665 = vmatpush1.bf16.msra.mxu0 0
        %3666 = vmatprep.subr.bf16.mxu0 0
        %3667 = vmatpush1.bf16.msra.mxu0 0
        %3668 = vmatprep.subr.bf16.mxu0 0
        %3669 = vmatpush1.bf16.msra.mxu0 0
        %3670 = vmatprep.subr.bf16.mxu0 0
        %3671 = vmatpush1.bf16.msra.mxu0 0
        %3672 = vmatprep.subr.bf16.mxu0 0
        %3673 = vmatpush1.bf16.msra.mxu0 0
        %3674 = vmatprep.subr.bf16.mxu0 0
        %3675 = vmatpush1.bf16.msra.mxu0 0
        %3676 = vmatprep.subr.bf16.mxu0 0
        %3677 = vmatpush1.bf16.msra.mxu0 0
        %3678 = vmatprep.subr.bf16.mxu0 0
        %3679 = vmatpush1.bf16.msra.mxu0 0
        %3680 = vmatprep.mubr.bf16.mxu0 0
        %3681 = vmatmul.mubr.bf16.gmra.mrb[0].mxu0 %v3640
        %v3682 = vpop.f32.mrb[0].mxu0
        %v3683 = vadd.f32 0.0, %v3682
        %v3684 = vpop.f32.mrb[0].mxu0
        %v3685 = vpop.f32.mrb[0].mxu0
        %v3686 = vadd.f32 0.0, %v3685
        %v3687 = vpop.f32.mrb[0].mxu0
        %3688 = vmatprep.mubr.bf16.mxu0 0
        %3689 = vmatmul.mubr.bf16.gmra.mrb[0].mxu0 %v3641
        %v3690 = vpop.f32.mrb[0].mxu0
        %v3691 = vadd.f32 0.0, %v3690
        %v3692 = vpop.f32.mrb[0].mxu0
        %v3693 = vpop.f32.mrb[0].mxu0
        %v3694 = vadd.f32 0.0, %v3693
        %v3695 = vpop.f32.mrb[0].mxu0
        %3696 = vmatprep.mubr.bf16.mxu0 0
        %3697 = vmatmul.mubr.bf16.gmra.mrb[0].mxu0 %v3642
        %v3698 = vpop.f32.mrb[0].mxu0
        %v3699 = vadd.f32 0.0, %v3698
        %v3700 = vpop.f32.mrb[0].mxu0
        %v3701 = vpop.f32.mrb[0].mxu0
        %v3702 = vadd.f32 0.0, %v3701
        %v3703 = vpop.f32.mrb[0].mxu0
        %3704 = vmatprep.mubr.bf16.mxu0 0
        %3705 = vmatmul.mubr.bf16.gmra.mrb[0].mxu0 %v3643
        %v3706 = vpop.f32.mrb[0].mxu0
        %v3707 = vadd.f32 0.0, %v3706
        %v3708 = vpop.f32.mrb[0].mxu0
        %v3709 = vpop.f32.mrb[0].mxu0
        %v3710 = vadd.f32 0.0, %v3709
        %v3711 = vpop.f32.mrb[0].mxu0
        %3712 = vmatprep.mubr.bf16.mxu0 0
        %3713 = vmatmul.mubr.bf16.gmra.mrb[0].mxu0 %v3644
        %v3714 = vpop.f32.mrb[0].mxu0
        %v3715 = vadd.f32 0.0, %v3714
        %v3716 = vpop.f32.mrb[0].mxu0
        %v3717 = vpop.f32.mrb[0].mxu0
        %v3718 = vadd.f32 0.0, %v3717
        %v3719 = vpop.f32.mrb[0].mxu0
        %3720 = vmatprep.mubr.bf16.mxu0 0
        %3721 = vmatmul.mubr.bf16.gmra.mrb[0].mxu0 %v3645
        %v3722 = vpop.f32.mrb[0].mxu0
        %v3723 = vadd.f32 0.0, %v3722
        %v3724 = vpop.f32.mrb[0].mxu0
        %v3725 = vpop.f32.mrb[0].mxu0
        %v3726 = vadd.f32 0.0, %v3725
        %v3727 = vpop.f32.mrb[0].mxu0
        %3728 = vmatprep.mubr.bf16.mxu0 0
        %3729 = vmatmul.mubr.bf16.gmra.mrb[0].mxu0 %v3646
        %v3730 = vpop.f32.mrb[0].mxu0
        %v3731 = vadd.f32 0.0, %v3730
        %v3732 = vpop.f32.mrb[0].mxu0
        %v3733 = vpop.f32.mrb[0].mxu0
        %v3734 = vadd.f32 0.0, %v3733
        %v3735 = vpop.f32.mrb[0].mxu0
        %3736 = vmatprep.mubr.bf16.mxu0 0
        %3737 = vmatmul.mubr.bf16.gmra.mrb[0].mxu0 %v3647
        %v3738 = vpop.f32.mrb[0].mxu0
        %v3739 = vadd.f32 0.0, %v3738
        %v3740 = vpop.f32.mrb[0].mxu0
        %v3741 = vpop.f32.mrb[0].mxu0
        %v3742 = vadd.f32 0.0, %v3741
        %v3743 = vpop.f32.mrb[0].mxu0
        %3744 = vdwg.mxu0
        %v3745 = vpack.c.bf16 %v3686, %v3683
        %v3746 = vpack.c.bf16 %v3694, %v3691
        %v3747 = vpack.c.bf16 %v3702, %v3699
        %v3748 = vpack.c.bf16 %v3710, %v3707
        %v3749 = vpack.c.bf16 %v3718, %v3715
        %v3750 = vpack.c.bf16 %v3726, %v3723
        %v3751 = vpack.c.bf16 %v3734, %v3731
        %v3752 = vpack.c.bf16 %v3742, %v3739
        %v3753 = vld [vmem:[#allocation2] sm:$0xff]
        %v3754 = vld [vmem:[#allocation2 + $0x8] sm:$0xff]
        %v3755 = vld [vmem:[#allocation2 + $0x10] sm:$0xff]
        %v3756 = vld [vmem:[#allocation2 + $0x18] sm:$0xff]
        %v3757 = vld [vmem:[#allocation2 + $0x20] sm:$0xff]
        %v3758 = vld [vmem:[#allocation2 + $0x28] sm:$0xff]
        %v3759 = vld [vmem:[#allocation2 + $0x30] sm:$0xff]
        %v3760 = vld [vmem:[#allocation2 + $0x38] sm:$0xff]
        %v3761 = vld [vmem:[#allocation2 + $0x40] sm:$0xff]
        %v3762 = vld [vmem:[#allocation2 + $0x48] sm:$0xff]
        %v3763 = vld [vmem:[#allocation2 + $0x50] sm:$0xff]
        %v3764 = vld [vmem:[#allocation2 + $0x58] sm:$0xff]
        %v3765 = vld [vmem:[#allocation2 + $0x60] sm:$0xff]
        %v3766 = vld [vmem:[#allocation2 + $0x68] sm:$0xff]
        %v3767 = vld [vmem:[#allocation2 + $0x70] sm:$0xff]
        %v3768 = vld [vmem:[#allocation2 + $0x78] sm:$0xff]
        %v3769 = vld [vmem:[%s5 + $0x80] sm:$0xf]
        %v3770 = vld [vmem:[%s5 + $0x84] sm:$0xf]
        %v3771 = vld [vmem:[%s5 + $0x88] sm:$0xf]
        %v3772 = vld [vmem:[%s5 + $0x8c] sm:$0xf]
        %v3773 = vld [vmem:[%s5 + $0x90] sm:$0xf]
        %v3774 = vld [vmem:[%s5 + $0x94] sm:$0xf]
        %v3775 = vld [vmem:[%s5 + $0x98] sm:$0xf]
        %v3776 = vld [vmem:[%s5 + $0x9c] sm:$0xf]
        %v3777 = vld [vmem:[%s5 + $0xa0] sm:$0xf]
        %v3778 = vld [vmem:[%s5 + $0xa4] sm:$0xf]
        %v3779 = vld [vmem:[%s5 + $0xa8] sm:$0xf]
        %v3780 = vld [vmem:[%s5 + $0xac] sm:$0xf]
        %v3781 = vld [vmem:[%s5 + $0xb0] sm:$0xf]
        %v3782 = vld [vmem:[%s5 + $0xb4] sm:$0xf]
        %v3783 = vld [vmem:[%s5 + $0xb8] sm:$0xf]
        %v3784 = vld [vmem:[%s5 + $0xbc] sm:$0xf]
        %v3801 = vunpack.c.l.b16 %v3769
        %v3802 = vunpack.c.l.b16 %v3770
        %v3803 = vunpack.c.l.b16 %v3771
        %v3804 = vunpack.c.l.b16 %v3772
        %v3805 = vunpack.c.l.b16 %v3773
        %v3806 = vunpack.c.l.b16 %v3774
        %v3807 = vunpack.c.l.b16 %v3775
        %v3808 = vunpack.c.l.b16 %v3776
        %v3809 = vunpack.c.l.b16 %v3777
        %v3810 = vunpack.c.l.b16 %v3778
        %v3811 = vunpack.c.l.b16 %v3779
        %v3812 = vunpack.c.l.b16 %v3780
        %v3813 = vunpack.c.l.b16 %v3781
        %v3814 = vunpack.c.l.b16 %v3782
        %v3815 = vunpack.c.l.b16 %v3783
        %v3816 = vunpack.c.l.b16 %v3784
        %v3817 = vpack.c.b16 %v3802, %v3801
        %v3818 = vpack.c.b16 %v3804, %v3803
        %v3819 = vpack.c.b16 %v3806, %v3805
        %v3820 = vpack.c.b16 %v3808, %v3807
        %v3821 = vpack.c.b16 %v3810, %v3809
        %v3822 = vpack.c.b16 %v3812, %v3811
        %v3823 = vpack.c.b16 %v3814, %v3813
        %v3824 = vpack.c.b16 %v3816, %v3815
        %3833 = vmatprep.subr.bf16.mxu0 0
        %3834 = vmatpush1.bf16.msra.mxu0 %v3817
        %3835 = vmatprep.subr.bf16.mxu0 0
        %3836 = vmatpush1.bf16.msra.mxu0 %v3818
        %3837 = vmatprep.subr.bf16.mxu0 0
        %3838 = vmatpush1.bf16.msra.mxu0 %v3819
        %3839 = vmatprep.subr.bf16.mxu0 0
        %3840 = vmatpush1.bf16.msra.mxu0 %v3820
        %3841 = vmatprep.subr.bf16.mxu0 0
        %3842 = vmatpush1.bf16.msra.mxu0 %v3821
        %3843 = vmatprep.subr.bf16.mxu0 0
        %3844 = vmatpush1.bf16.msra.mxu0 %v3822
        %3845 = vmatprep.subr.bf16.mxu0 0
        %3846 = vmatpush1.bf16.msra.mxu0 %v3823
        %3847 = vmatprep.subr.bf16.mxu0 0
        %3848 = vmatpush1.bf16.msra.mxu0 %v3824
        %3849 = vmatprep.subr.bf16.mxu0 0
        %3850 = vmatpush1.bf16.msra.mxu0 0
        %3851 = vmatprep.subr.bf16.mxu0 0
        %3852 = vmatpush1.bf16.msra.mxu0 0
        %3853 = vmatprep.subr.bf16.mxu0 0
        %3854 = vmatpush1.bf16.msra.mxu0 0
        %3855 = vmatprep.subr.bf16.mxu0 0
        %3856 = vmatpush1.bf16.msra.mxu0 0
        %3857 = vmatprep.subr.bf16.mxu0 0
        %3858 = vmatpush1.bf16.msra.mxu0 0
        %3859 = vmatprep.subr.bf16.mxu0 0
        %3860 = vmatpush1.bf16.msra.mxu0 0
        %3861 = vmatprep.subr.bf16.mxu0 0
        %3862 = vmatpush1.bf16.msra.mxu0 0
        %3863 = vmatprep.subr.bf16.mxu0 0
        %3864 = vmatpush1.bf16.msra.mxu0 0
        %3865 = vmatprep.mubr.bf16.mxu0 0
        %3866 = vmatmul.mubr.bf16.gmra.mrb[0].mxu0 %v3745
        %v3867 = vpop.f32.mrb[0].mxu0
        %v3868 = vadd.f32 0.0, %v3867
        %v3869 = vpop.f32.mrb[0].mxu0
        %v3870 = vpop.f32.mrb[0].mxu0
        %v3871 = vadd.f32 0.0, %v3870
        %v3872 = vpop.f32.mrb[0].mxu0
        %3873 = vmatprep.mubr.bf16.mxu0 0
        %3874 = vmatmul.mubr.bf16.gmra.mrb[0].mxu0 %v3746
        %v3875 = vpop.f32.mrb[0].mxu0
        %v3876 = vadd.f32 0.0, %v3875
        %v3877 = vpop.f32.mrb[0].mxu0
        %v3878 = vpop.f32.mrb[0].mxu0
        %v3879 = vadd.f32 0.0, %v3878
        %v3880 = vpop.f32.mrb[0].mxu0
        %3881 = vmatprep.mubr.bf16.mxu0 0
        %3882 = vmatmul.mubr.bf16.gmra.mrb[0].mxu0 %v3747
        %v3883 = vpop.f32.mrb[0].mxu0
        %v3884 = vadd.f32 0.0, %v3883
        %v3885 = vpop.f32.mrb[0].mxu0
        %v3886 = vpop.f32.mrb[0].mxu0
        %v3887 = vadd.f32 0.0, %v3886
        %v3888 = vpop.f32.mrb[0].mxu0
        %3889 = vmatprep.mubr.bf16.mxu0 0
        %3890 = vmatmul.mubr.bf16.gmra.mrb[0].mxu0 %v3748
        %v3891 = vpop.f32.mrb[0].mxu0
        %v3892 = vadd.f32 0.0, %v3891
        %v3893 = vpop.f32.mrb[0].mxu0
        %v3894 = vpop.f32.mrb[0].mxu0
        %v3895 = vadd.f32 0.0, %v3894
        %v3896 = vpop.f32.mrb[0].mxu0
        %3897 = vmatprep.mubr.bf16.mxu0 0
        %3898 = vmatmul.mubr.bf16.gmra.mrb[0].mxu0 %v3749
        %v3899 = vpop.f32.mrb[0].mxu0
        %v3900 = vadd.f32 0.0, %v3899
        %v3901 = vpop.f32.mrb[0].mxu0
        %v3902 = vpop.f32.mrb[0].mxu0
        %v3903 = vadd.f32 0.0, %v3902
        %v3904 = vpop.f32.mrb[0].mxu0
        %3905 = vmatprep.mubr.bf16.mxu0 0
        %3906 = vmatmul.mubr.bf16.gmra.mrb[0].mxu0 %v3750
        %v3907 = vpop.f32.mrb[0].mxu0
        %v3908 = vadd.f32 0.0, %v3907
        %v3909 = vpop.f32.mrb[0].mxu0
        %v3910 = vpop.f32.mrb[0].mxu0
        %v3911 = vadd.f32 0.0, %v3910
        %v3912 = vpop.f32.mrb[0].mxu0
        %3913 = vmatprep.mubr.bf16.mxu0 0
        %3914 = vmatmul.mubr.bf16.gmra.mrb[0].mxu0 %v3751
        %v3915 = vpop.f32.mrb[0].mxu0
        %v3916 = vadd.f32 0.0, %v3915
        %v3917 = vpop.f32.mrb[0].mxu0
        %v3918 = vpop.f32.mrb[0].mxu0
        %v3919 = vadd.f32 0.0, %v3918
        %v3920 = vpop.f32.mrb[0].mxu0
        %3921 = vmatprep.mubr.bf16.mxu0 0
        %3922 = vmatmul.mubr.bf16.gmra.mrb[0].mxu0 %v3752
        %v3923 = vpop.f32.mrb[0].mxu0
        %v3924 = vadd.f32 0.0, %v3923
        %v3925 = vpop.f32.mrb[0].mxu0
        %v3926 = vpop.f32.mrb[0].mxu0
        %v3927 = vadd.f32 0.0, %v3926
        %v3928 = vpop.f32.mrb[0].mxu0
        %3929 = vdwg.mxu0
        %v3930 = vadd.f32 %v3753, %v3868
        %v3931 = vadd.f32 %v3754, %v3871
        %v3932 = vadd.f32 %v3755, %v3876
        %v3933 = vadd.f32 %v3756, %v3879
        %v3934 = vadd.f32 %v3757, %v3884
        %v3935 = vadd.f32 %v3758, %v3887
        %v3936 = vadd.f32 %v3759, %v3892
        %v3937 = vadd.f32 %v3760, %v3895
        %v3938 = vadd.f32 %v3761, %v3900
        %v3939 = vadd.f32 %v3762, %v3903
        %v3940 = vadd.f32 %v3763, %v3908
        %v3941 = vadd.f32 %v3764, %v3911
        %v3942 = vadd.f32 %v3765, %v3916
        %v3943 = vadd.f32 %v3766, %v3919
        %v3944 = vadd.f32 %v3767, %v3924
        %v3945 = vadd.f32 %v3768, %v3927
        %3946 = vst [vmem:[#allocation2] sm:$0xff] %v3930
        %3947 = vst [vmem:[#allocation2 + $0x8] sm:$0xff] %v3931
        %3948 = vst [vmem:[#allocation2 + $0x10] sm:$0xff] %v3932
        %3949 = vst [vmem:[#allocation2 + $0x18] sm:$0xff] %v3933
        %3950 = vst [vmem:[#allocation2 + $0x20] sm:$0xff] %v3934
        %3951 = vst [vmem:[#allocation2 + $0x28] sm:$0xff] %v3935
        %3952 = vst [vmem:[#allocation2 + $0x30] sm:$0xff] %v3936
        %3953 = vst [vmem:[#allocation2 + $0x38] sm:$0xff] %v3937
        %3954 = vst [vmem:[#allocation2 + $0x40] sm:$0xff] %v3938
        %3955 = vst [vmem:[#allocation2 + $0x48] sm:$0xff] %v3939
        %3956 = vst [vmem:[#allocation2 + $0x50] sm:$0xff] %v3940
        %3957 = vst [vmem:[#allocation2 + $0x58] sm:$0xff] %v3941
        %3958 = vst [vmem:[#allocation2 + $0x60] sm:$0xff] %v3942
        %3959 = vst [vmem:[#allocation2 + $0x68] sm:$0xff] %v3943
        %3960 = vst [vmem:[#allocation2 + $0x70] sm:$0xff] %v3944
        %3961 = vst [vmem:[#allocation2 + $0x78] sm:$0xff] %v3945
        %3962 = vmatprep.subr.bf16.mxu0 0
        %3963 = vmatpush1.bf16.xpose.msra.mxu0 %v2066
        %3964 = vmatprep.subr.bf16.mxu0 0
        %3965 = vmatpush1.bf16.xpose.msra.mxu0 %v2078
        %3966 = vmatprep.subr.bf16.mxu0 0
        %3967 = vmatpush1.bf16.xpose.msra.mxu0 %v2090
        %3968 = vmatprep.subr.bf16.mxu0 0
        %3969 = vmatpush1.bf16.xpose.msra.mxu0 %v2102
        %3970 = vmatprep.subr.bf16.mxu0 0
        %3971 = vmatpush1.bf16.xpose.msra.mxu0 %v2114
        %3972 = vmatprep.subr.bf16.mxu0 0
        %3973 = vmatpush1.bf16.xpose.msra.mxu0 %v2126
        %3974 = vmatprep.subr.bf16.mxu0 0
        %3975 = vmatpush1.bf16.xpose.msra.mxu0 %v2138
        %3976 = vmatprep.subr.bf16.mxu0 0
        %3977 = vmatpush1.bf16.xpose.msra.mxu0 %v2150
        %3978 = vmatprep.subr.bf16.mxu0 0
        %3979 = vmatpush1.bf16.xpose.msra.mxu0 0
        %3980 = vmatprep.subr.bf16.mxu0 0
        %3981 = vmatpush1.bf16.xpose.msra.mxu0 0
        %3982 = vmatprep.subr.bf16.mxu0 0
        %3983 = vmatpush1.bf16.xpose.msra.mxu0 0
        %3984 = vmatprep.subr.bf16.mxu0 0
        %3985 = vmatpush1.bf16.xpose.msra.mxu0 0
        %3986 = vmatprep.subr.bf16.mxu0 0
        %3987 = vmatpush1.bf16.xpose.msra.mxu0 0
        %3988 = vmatprep.subr.bf16.mxu0 0
        %3989 = vmatpush1.bf16.xpose.msra.mxu0 0
        %3990 = vmatprep.subr.bf16.mxu0 0
        %3991 = vmatpush1.bf16.xpose.msra.mxu0 0
        %3992 = vmatprep.subr.bf16.mxu0 0
        %3993 = vmatpush1.bf16.xpose.msra.mxu0 0
        %3994 = vmatprep.mubr.bf16.mxu0 0
        %3995 = vmatmul.mubr.bf16.gmra.mrb[0].mxu0 %v2062
        %v3996 = vpop.f32.mrb[0].mxu0
        %v3997 = vadd.f32 0.0, %v3996
        %v3998 = vpop.f32.mrb[0].mxu0
        %v3999 = vpop.f32.mrb[0].mxu0
        %v4000 = vadd.f32 0.0, %v3999
        %v4001 = vpop.f32.mrb[0].mxu0
        %4002 = vmatprep.mubr.bf16.mxu0 0
        %4003 = vmatmul.mubr.bf16.gmra.mrb[0].mxu0 %v2074
        %v4004 = vpop.f32.mrb[0].mxu0
        %v4005 = vadd.f32 0.0, %v4004
        %v4006 = vpop.f32.mrb[0].mxu0
        %v4007 = vpop.f32.mrb[0].mxu0
        %v4008 = vadd.f32 0.0, %v4007
        %v4009 = vpop.f32.mrb[0].mxu0
        %4010 = vmatprep.mubr.bf16.mxu0 0
        %4011 = vmatmul.mubr.bf16.gmra.mrb[0].mxu0 %v2086
        %v4012 = vpop.f32.mrb[0].mxu0
        %v4013 = vadd.f32 0.0, %v4012
        %v4014 = vpop.f32.mrb[0].mxu0
        %v4015 = vpop.f32.mrb[0].mxu0
        %v4016 = vadd.f32 0.0, %v4015
        %v4017 = vpop.f32.mrb[0].mxu0
        %4018 = vmatprep.mubr.bf16.mxu0 0
        %4019 = vmatmul.mubr.bf16.gmra.mrb[0].mxu0 %v2098
        %v4020 = vpop.f32.mrb[0].mxu0
        %v4021 = vadd.f32 0.0, %v4020
        %v4022 = vpop.f32.mrb[0].mxu0
        %v4023 = vpop.f32.mrb[0].mxu0
        %v4024 = vadd.f32 0.0, %v4023
        %v4025 = vpop.f32.mrb[0].mxu0
        %4026 = vmatprep.mubr.bf16.mxu0 0
        %4027 = vmatmul.mubr.bf16.gmra.mrb[0].mxu0 %v2110
        %v4028 = vpop.f32.mrb[0].mxu0
        %v4029 = vadd.f32 0.0, %v4028
        %v4030 = vpop.f32.mrb[0].mxu0
        %v4031 = vpop.f32.mrb[0].mxu0
        %v4032 = vadd.f32 0.0, %v4031
        %v4033 = vpop.f32.mrb[0].mxu0
        %4034 = vmatprep.mubr.bf16.mxu0 0
        %4035 = vmatmul.mubr.bf16.gmra.mrb[0].mxu0 %v2122
        %v4036 = vpop.f32.mrb[0].mxu0
        %v4037 = vadd.f32 0.0, %v4036
        %v4038 = vpop.f32.mrb[0].mxu0
        %v4039 = vpop.f32.mrb[0].mxu0
        %v4040 = vadd.f32 0.0, %v4039
        %v4041 = vpop.f32.mrb[0].mxu0
        %4042 = vmatprep.mubr.bf16.mxu0 0
        %4043 = vmatmul.mubr.bf16.gmra.mrb[0].mxu0 %v2134
        %v4044 = vpop.f32.mrb[0].mxu0
        %v4045 = vadd.f32 0.0, %v4044
        %v4046 = vpop.f32.mrb[0].mxu0
        %v4047 = vpop.f32.mrb[0].mxu0
        %v4048 = vadd.f32 0.0, %v4047
        %v4049 = vpop.f32.mrb[0].mxu0
        %4050 = vmatprep.mubr.bf16.mxu0 0
        %4051 = vmatmul.mubr.bf16.gmra.mrb[0].mxu0 %v2146
        %v4052 = vpop.f32.mrb[0].mxu0
        %v4053 = vadd.f32 0.0, %v4052
        %v4054 = vpop.f32.mrb[0].mxu0
        %v4055 = vpop.f32.mrb[0].mxu0
        %v4056 = vadd.f32 0.0, %v4055
        %v4057 = vpop.f32.mrb[0].mxu0
        %4058 = vdwg.mxu0
        %v4059 = vmul.f32 %v3997, 0.17677669
        %v4060 = vmul.f32 %v4000, 0.17677669
        %v4061 = vmul.f32 %v4005, 0.17677669
        %v4062 = vmul.f32 %v4008, 0.17677669
        %v4063 = vmul.f32 %v4013, 0.17677669
        %v4064 = vmul.f32 %v4016, 0.17677669
        %v4065 = vmul.f32 %v4021, 0.17677669
        %v4066 = vmul.f32 %v4024, 0.17677669
        %v4067 = vmul.f32 %v4029, 0.17677669
        %v4068 = vmul.f32 %v4032, 0.17677669
        %v4069 = vmul.f32 %v4037, 0.17677669
        %v4070 = vmul.f32 %v4040, 0.17677669
        %v4071 = vmul.f32 %v4045, 0.17677669
        %v4072 = vmul.f32 %v4048, 0.17677669
        %v4073 = vmul.f32 %v4053, 0.17677669
        %v4074 = vmul.f32 %v4056, 0.17677669
        %v4075 = vadd.f32 %v4059, %v2288
        %v4076 = vadd.f32 %v4060, %v2288
        %v4077 = vadd.f32 %v4061, %v2288
        %v4078 = vadd.f32 %v4062, %v2288
        %v4079 = vadd.f32 %v4063, %v2288
        %v4080 = vadd.f32 %v4064, %v2288
        %v4081 = vadd.f32 %v4065, %v2288
        %v4082 = vadd.f32 %v4066, %v2288
        %v4083 = vadd.f32 %v4067, %v2288
        %v4084 = vadd.f32 %v4068, %v2288
        %v4085 = vadd.f32 %v4069, %v2288
        %v4086 = vadd.f32 %v4070, %v2288
        %v4087 = vadd.f32 %v4071, %v2288
        %v4088 = vadd.f32 %v4072, %v2288
        %v4089 = vadd.f32 %v4073, %v2288
        %v4090 = vadd.f32 %v4074, %v2288
        %4091 = vmax.xlane.f32.xlu0 %v4075
        %v4092 = vpop.xlane.xlu0 %4091
        %4093 = vmax.xlane.f32.xlu0 %v4076
        %v4094 = vpop.xlane.xlu0 %4093
        %4095 = vmax.xlane.f32.xlu0 %v4077
        %v4096 = vpop.xlane.xlu0 %4095
        %4097 = vmax.xlane.f32.xlu0 %v4078
        %v4098 = vpop.xlane.xlu0 %4097
        %4099 = vmax.xlane.f32.xlu0 %v4079
        %v4100 = vpop.xlane.xlu0 %4099
        %4101 = vmax.xlane.f32.xlu0 %v4080
        %v4102 = vpop.xlane.xlu0 %4101
        %4103 = vmax.xlane.f32.xlu0 %v4081
        %v4104 = vpop.xlane.xlu0 %4103
        %4105 = vmax.xlane.f32.xlu0 %v4082
        %v4106 = vpop.xlane.xlu0 %4105
        %4107 = vmax.xlane.f32.xlu0 %v4083
        %v4108 = vpop.xlane.xlu0 %4107
        %4109 = vmax.xlane.f32.xlu0 %v4084
        %v4110 = vpop.xlane.xlu0 %4109
        %4111 = vmax.xlane.f32.xlu0 %v4085
        %v4112 = vpop.xlane.xlu0 %4111
        %4113 = vmax.xlane.f32.xlu0 %v4086
        %v4114 = vpop.xlane.xlu0 %4113
        %4115 = vmax.xlane.f32.xlu0 %v4087
        %v4116 = vpop.xlane.xlu0 %4115
        %4117 = vmax.xlane.f32.xlu0 %v4088
        %v4118 = vpop.xlane.xlu0 %4117
        %4119 = vmax.xlane.f32.xlu0 %v4089
        %v4120 = vpop.xlane.xlu0 %4119
        %4121 = vmax.xlane.f32.xlu0 %v4090
        %v4122 = vpop.xlane.xlu0 %4121
        %v4123 = vsub.f32 %v4075, %v4092
        %v4124 = vsub.f32 %v4076, %v4094
        %v4125 = vsub.f32 %v4077, %v4096
        %v4126 = vsub.f32 %v4078, %v4098
        %v4127 = vsub.f32 %v4079, %v4100
        %v4128 = vsub.f32 %v4080, %v4102
        %v4129 = vsub.f32 %v4081, %v4104
        %v4130 = vsub.f32 %v4082, %v4106
        %v4131 = vsub.f32 %v4083, %v4108
        %v4132 = vsub.f32 %v4084, %v4110
        %v4133 = vsub.f32 %v4085, %v4112
        %v4134 = vsub.f32 %v4086, %v4114
        %v4135 = vsub.f32 %v4087, %v4116
        %v4136 = vsub.f32 %v4088, %v4118
        %v4137 = vsub.f32 %v4089, %v4120
        %v4138 = vsub.f32 %v4090, %v4122
        %v4139 = vmul.f32 %v4123, 1.442695
        %v4140 = vpow.pop %v4139
        %v4141 = vmul.f32 %v4124, 1.442695
        %v4142 = vpow.pop %v4141
        %v4143 = vmul.f32 %v4125, 1.442695
        %v4144 = vpow.pop %v4143
        %v4145 = vmul.f32 %v4126, 1.442695
        %v4146 = vpow.pop %v4145
        %v4147 = vmul.f32 %v4127, 1.442695
        %v4148 = vpow.pop %v4147
        %v4149 = vmul.f32 %v4128, 1.442695
        %v4150 = vpow.pop %v4149
        %v4151 = vmul.f32 %v4129, 1.442695
        %v4152 = vpow.pop %v4151
        %v4153 = vmul.f32 %v4130, 1.442695
        %v4154 = vpow.pop %v4153
        %v4155 = vmul.f32 %v4131, 1.442695
        %v4156 = vpow.pop %v4155
        %v4157 = vmul.f32 %v4132, 1.442695
        %v4158 = vpow.pop %v4157
        %v4159 = vmul.f32 %v4133, 1.442695
        %v4160 = vpow.pop %v4159
        %v4161 = vmul.f32 %v4134, 1.442695
        %v4162 = vpow.pop %v4161
        %v4163 = vmul.f32 %v4135, 1.442695
        %v4164 = vpow.pop %v4163
        %v4165 = vmul.f32 %v4136, 1.442695
        %v4166 = vpow.pop %v4165
        %v4167 = vmul.f32 %v4137, 1.442695
        %v4168 = vpow.pop %v4167
        %v4169 = vmul.f32 %v4138, 1.442695
        %v4170 = vpow.pop %v4169
        %4171 = vadd.xlane.f32.xlu0 %v4140
        %v4172 = vpop.xlane.xlu0 %4171
        %4173 = vadd.xlane.f32.xlu0 %v4142
        %v4174 = vpop.xlane.xlu0 %4173
        %4175 = vadd.xlane.f32.xlu0 %v4144
        %v4176 = vpop.xlane.xlu0 %4175
        %4177 = vadd.xlane.f32.xlu0 %v4146
        %v4178 = vpop.xlane.xlu0 %4177
        %4179 = vadd.xlane.f32.xlu0 %v4148
        %v4180 = vpop.xlane.xlu0 %4179
        %4181 = vadd.xlane.f32.xlu0 %v4150
        %v4182 = vpop.xlane.xlu0 %4181
        %4183 = vadd.xlane.f32.xlu0 %v4152
        %v4184 = vpop.xlane.xlu0 %4183
        %4185 = vadd.xlane.f32.xlu0 %v4154
        %v4186 = vpop.xlane.xlu0 %4185
        %4187 = vadd.xlane.f32.xlu0 %v4156
        %v4188 = vpop.xlane.xlu0 %4187
        %4189 = vadd.xlane.f32.xlu0 %v4158
        %v4190 = vpop.xlane.xlu0 %4189
        %4191 = vadd.xlane.f32.xlu0 %v4160
        %v4192 = vpop.xlane.xlu0 %4191
        %4193 = vadd.xlane.f32.xlu0 %v4162
        %v4194 = vpop.xlane.xlu0 %4193
        %4195 = vadd.xlane.f32.xlu0 %v4164
        %v4196 = vpop.xlane.xlu0 %4195
        %4197 = vadd.xlane.f32.xlu0 %v4166
        %v4198 = vpop.xlane.xlu0 %4197
        %4199 = vadd.xlane.f32.xlu0 %v4168
        %v4200 = vpop.xlane.xlu0 %4199
        %4201 = vadd.xlane.f32.xlu0 %v4170
        %v4202 = vpop.xlane.xlu0 %4201
        %v4203 = vrcp.pop %v4172
        %v4204 = vrcp.pop %v4174
        %v4205 = vrcp.pop %v4176
        %v4206 = vrcp.pop %v4178
        %v4207 = vrcp.pop %v4180
        %v4208 = vrcp.pop %v4182
        %v4209 = vrcp.pop %v4184
        %v4210 = vrcp.pop %v4186
        %v4211 = vrcp.pop %v4188
        %v4212 = vrcp.pop %v4190
        %v4213 = vrcp.pop %v4192
        %v4214 = vrcp.pop %v4194
        %v4215 = vrcp.pop %v4196
        %v4216 = vrcp.pop %v4198
        %v4217 = vrcp.pop %v4200
        %v4218 = vrcp.pop %v4202
        %v4219 = vmul.f32 %v4140, %v4203
        %v4220 = vmul.f32 %v4142, %v4204
        %v4221 = vmul.f32 %v4144, %v4205
        %v4222 = vmul.f32 %v4146, %v4206
        %v4223 = vmul.f32 %v4148, %v4207
        %v4224 = vmul.f32 %v4150, %v4208
        %v4225 = vmul.f32 %v4152, %v4209
        %v4226 = vmul.f32 %v4154, %v4210
        %v4227 = vmul.f32 %v4156, %v4211
        %v4228 = vmul.f32 %v4158, %v4212
        %v4229 = vmul.f32 %v4160, %v4213
        %v4230 = vmul.f32 %v4162, %v4214
        %v4231 = vmul.f32 %v4164, %v4215
        %v4232 = vmul.f32 %v4166, %v4216
        %v4233 = vmul.f32 %v4168, %v4217
        %v4234 = vmul.f32 %v4170, %v4218
        %v4235 = vpack.c.bf16 %v4220, %v4219
        %v4236 = vpack.c.bf16 %v4222, %v4221
        %v4237 = vpack.c.bf16 %v4224, %v4223
        %v4238 = vpack.c.bf16 %v4226, %v4225
        %v4239 = vpack.c.bf16 %v4228, %v4227
        %v4240 = vpack.c.bf16 %v4230, %v4229
        %v4241 = vpack.c.bf16 %v4232, %v4231
        %v4242 = vpack.c.bf16 %v4234, %v4233
        %4243 = vmatprep.subr.bf16.mxu0 0
        %4244 = vmatpush1.bf16.msra.mxu0 %v2070
        %4245 = vmatprep.subr.bf16.mxu0 0
        %4246 = vmatpush1.bf16.msra.mxu0 %v2082
        %4247 = vmatprep.subr.bf16.mxu0 0
        %4248 = vmatpush1.bf16.msra.mxu0 %v2094
        %4249 = vmatprep.subr.bf16.mxu0 0
        %4250 = vmatpush1.bf16.msra.mxu0 %v2106
        %4251 = vmatprep.subr.bf16.mxu0 0
        %4252 = vmatpush1.bf16.msra.mxu0 %v2118
        %4253 = vmatprep.subr.bf16.mxu0 0
        %4254 = vmatpush1.bf16.msra.mxu0 %v2130
        %4255 = vmatprep.subr.bf16.mxu0 0
        %4256 = vmatpush1.bf16.msra.mxu0 %v2142
        %4257 = vmatprep.subr.bf16.mxu0 0
        %4258 = vmatpush1.bf16.msra.mxu0 %v2154
        %4259 = vmatprep.subr.bf16.mxu0 0
        %4260 = vmatpush1.bf16.msra.mxu0 0
        %4261 = vmatprep.subr.bf16.mxu0 0
        %4262 = vmatpush1.bf16.msra.mxu0 0
        %4263 = vmatprep.subr.bf16.mxu0 0
        %4264 = vmatpush1.bf16.msra.mxu0 0
        %4265 = vmatprep.subr.bf16.mxu0 0
        %4266 = vmatpush1.bf16.msra.mxu0 0
        %4267 = vmatprep.subr.bf16.mxu0 0
        %4268 = vmatpush1.bf16.msra.mxu0 0
        %4269 = vmatprep.subr.bf16.mxu0 0
        %4270 = vmatpush1.bf16.msra.mxu0 0
        %4271 = vmatprep.subr.bf16.mxu0 0
        %4272 = vmatpush1.bf16.msra.mxu0 0
        %4273 = vmatprep.subr.bf16.mxu0 0
        %4274 = vmatpush1.bf16.msra.mxu0 0
        %4275 = vmatprep.mubr.bf16.mxu0 0
        %4276 = vmatmul.mubr.bf16.gmra.mrb[0].mxu0 %v4235
        %v4277 = vpop.f32.mrb[0].mxu0
        %v4278 = vadd.f32 0.0, %v4277
        %v4279 = vpop.f32.mrb[0].mxu0
        %v4280 = vpop.f32.mrb[0].mxu0
        %v4281 = vadd.f32 0.0, %v4280
        %v4282 = vpop.f32.mrb[0].mxu0
        %4283 = vmatprep.mubr.bf16.mxu0 0
        %4284 = vmatmul.mubr.bf16.gmra.mrb[0].mxu0 %v4236
        %v4285 = vpop.f32.mrb[0].mxu0
        %v4286 = vadd.f32 0.0, %v4285
        %v4287 = vpop.f32.mrb[0].mxu0
        %v4288 = vpop.f32.mrb[0].mxu0
        %v4289 = vadd.f32 0.0, %v4288
        %v4290 = vpop.f32.mrb[0].mxu0
        %4291 = vmatprep.mubr.bf16.mxu0 0
        %4292 = vmatmul.mubr.bf16.gmra.mrb[0].mxu0 %v4237
        %v4293 = vpop.f32.mrb[0].mxu0
        %v4294 = vadd.f32 0.0, %v4293
        %v4295 = vpop.f32.mrb[0].mxu0
        %v4296 = vpop.f32.mrb[0].mxu0
        %v4297 = vadd.f32 0.0, %v4296
        %v4298 = vpop.f32.mrb[0].mxu0
        %4299 = vmatprep.mubr.bf16.mxu0 0
        %4300 = vmatmul.mubr.bf16.gmra.mrb[0].mxu0 %v4238
        %v4301 = vpop.f32.mrb[0].mxu0
        %v4302 = vadd.f32 0.0, %v4301
        %v4303 = vpop.f32.mrb[0].mxu0
        %v4304 = vpop.f32.mrb[0].mxu0
        %v4305 = vadd.f32 0.0, %v4304
        %v4306 = vpop.f32.mrb[0].mxu0
        %4307 = vmatprep.mubr.bf16.mxu0 0
        %4308 = vmatmul.mubr.bf16.gmra.mrb[0].mxu0 %v4239
        %v4309 = vpop.f32.mrb[0].mxu0
        %v4310 = vadd.f32 0.0, %v4309
        %v4311 = vpop.f32.mrb[0].mxu0
        %v4312 = vpop.f32.mrb[0].mxu0
        %v4313 = vadd.f32 0.0, %v4312
        %v4314 = vpop.f32.mrb[0].mxu0
        %4315 = vmatprep.mubr.bf16.mxu0 0
        %4316 = vmatmul.mubr.bf16.gmra.mrb[0].mxu0 %v4240
        %v4317 = vpop.f32.mrb[0].mxu0
        %v4318 = vadd.f32 0.0, %v4317
        %v4319 = vpop.f32.mrb[0].mxu0
        %v4320 = vpop.f32.mrb[0].mxu0
        %v4321 = vadd.f32 0.0, %v4320
        %v4322 = vpop.f32.mrb[0].mxu0
        %4323 = vmatprep.mubr.bf16.mxu0 0
        %4324 = vmatmul.mubr.bf16.gmra.mrb[0].mxu0 %v4241
        %v4325 = vpop.f32.mrb[0].mxu0
        %v4326 = vadd.f32 0.0, %v4325
        %v4327 = vpop.f32.mrb[0].mxu0
        %v4328 = vpop.f32.mrb[0].mxu0
        %v4329 = vadd.f32 0.0, %v4328
        %v4330 = vpop.f32.mrb[0].mxu0
        %4331 = vmatprep.mubr.bf16.mxu0 0
        %4332 = vmatmul.mubr.bf16.gmra.mrb[0].mxu0 %v4242
        %v4333 = vpop.f32.mrb[0].mxu0
        %v4334 = vadd.f32 0.0, %v4333
        %v4335 = vpop.f32.mrb[0].mxu0
        %v4336 = vpop.f32.mrb[0].mxu0
        %v4337 = vadd.f32 0.0, %v4336
        %v4338 = vpop.f32.mrb[0].mxu0
        %4339 = vdwg.mxu0
        %v4340 = vpack.c.bf16 %v4281, %v4278
        %v4341 = vpack.c.bf16 %v4289, %v4286
        %v4342 = vpack.c.bf16 %v4297, %v4294
        %v4343 = vpack.c.bf16 %v4305, %v4302
        %v4344 = vpack.c.bf16 %v4313, %v4310
        %v4345 = vpack.c.bf16 %v4321, %v4318
        %v4346 = vpack.c.bf16 %v4329, %v4326
        %v4347 = vpack.c.bf16 %v4337, %v4334
        %v4348 = vld [vmem:[#allocation2] sm:$0xff]
        %v4349 = vld [vmem:[#allocation2 + $0x8] sm:$0xff]
        %v4350 = vld [vmem:[#allocation2 + $0x10] sm:$0xff]
        %v4351 = vld [vmem:[#allocation2 + $0x18] sm:$0xff]
        %v4352 = vld [vmem:[#allocation2 + $0x20] sm:$0xff]
        %v4353 = vld [vmem:[#allocation2 + $0x28] sm:$0xff]
        %v4354 = vld [vmem:[#allocation2 + $0x30] sm:$0xff]
        %v4355 = vld [vmem:[#allocation2 + $0x38] sm:$0xff]
        %v4356 = vld [vmem:[#allocation2 + $0x40] sm:$0xff]
        %v4357 = vld [vmem:[#allocation2 + $0x48] sm:$0xff]
        %v4358 = vld [vmem:[#allocation2 + $0x50] sm:$0xff]
        %v4359 = vld [vmem:[#allocation2 + $0x58] sm:$0xff]
        %v4360 = vld [vmem:[#allocation2 + $0x60] sm:$0xff]
        %v4361 = vld [vmem:[#allocation2 + $0x68] sm:$0xff]
        %v4362 = vld [vmem:[#allocation2 + $0x70] sm:$0xff]
        %v4363 = vld [vmem:[#allocation2 + $0x78] sm:$0xff]
        %v4364 = vld [vmem:[%s5 + $0xc0] sm:$0xf]
        %v4365 = vld [vmem:[%s5 + $0xc4] sm:$0xf]
        %v4366 = vld [vmem:[%s5 + $0xc8] sm:$0xf]
        %v4367 = vld [vmem:[%s5 + $0xcc] sm:$0xf]
        %v4368 = vld [vmem:[%s5 + $0xd0] sm:$0xf]
        %v4369 = vld [vmem:[%s5 + $0xd4] sm:$0xf]
        %v4370 = vld [vmem:[%s5 + $0xd8] sm:$0xf]
        %v4371 = vld [vmem:[%s5 + $0xdc] sm:$0xf]
        %v4372 = vld [vmem:[%s5 + $0xe0] sm:$0xf]
        %v4373 = vld [vmem:[%s5 + $0xe4] sm:$0xf]
        %v4374 = vld [vmem:[%s5 + $0xe8] sm:$0xf]
        %v4375 = vld [vmem:[%s5 + $0xec] sm:$0xf]
        %v4376 = vld [vmem:[%s5 + $0xf0] sm:$0xf]
        %v4377 = vld [vmem:[%s5 + $0xf4] sm:$0xf]
        %v4378 = vld [vmem:[%s5 + $0xf8] sm:$0xf]
        %v4379 = vld [vmem:[%s5 + $0xfc] sm:$0xf]
        %v4396 = vunpack.c.l.b16 %v4364
        %v4397 = vunpack.c.l.b16 %v4365
        %v4398 = vunpack.c.l.b16 %v4366
        %v4399 = vunpack.c.l.b16 %v4367
        %v4400 = vunpack.c.l.b16 %v4368
        %v4401 = vunpack.c.l.b16 %v4369
        %v4402 = vunpack.c.l.b16 %v4370
        %v4403 = vunpack.c.l.b16 %v4371
        %v4404 = vunpack.c.l.b16 %v4372
        %v4405 = vunpack.c.l.b16 %v4373
        %v4406 = vunpack.c.l.b16 %v4374
        %v4407 = vunpack.c.l.b16 %v4375
        %v4408 = vunpack.c.l.b16 %v4376
        %v4409 = vunpack.c.l.b16 %v4377
        %v4410 = vunpack.c.l.b16 %v4378
        %v4411 = vunpack.c.l.b16 %v4379
        %v4412 = vpack.c.b16 %v4397, %v4396
        %v4413 = vpack.c.b16 %v4399, %v4398
        %v4414 = vpack.c.b16 %v4401, %v4400
        %v4415 = vpack.c.b16 %v4403, %v4402
        %v4416 = vpack.c.b16 %v4405, %v4404
        %v4417 = vpack.c.b16 %v4407, %v4406
        %v4418 = vpack.c.b16 %v4409, %v4408
        %v4419 = vpack.c.b16 %v4411, %v4410
        %4428 = vmatprep.subr.bf16.mxu0 0
        %4429 = vmatpush1.bf16.msra.mxu0 %v4412
        %4430 = vmatprep.subr.bf16.mxu0 0
        %4431 = vmatpush1.bf16.msra.mxu0 %v4413
        %4432 = vmatprep.subr.bf16.mxu0 0
        %4433 = vmatpush1.bf16.msra.mxu0 %v4414
        %4434 = vmatprep.subr.bf16.mxu0 0
        %4435 = vmatpush1.bf16.msra.mxu0 %v4415
        %4436 = vmatprep.subr.bf16.mxu0 0
        %4437 = vmatpush1.bf16.msra.mxu0 %v4416
        %4438 = vmatprep.subr.bf16.mxu0 0
        %4439 = vmatpush1.bf16.msra.mxu0 %v4417
        %4440 = vmatprep.subr.bf16.mxu0 0
        %4441 = vmatpush1.bf16.msra.mxu0 %v4418
        %4442 = vmatprep.subr.bf16.mxu0 0
        %4443 = vmatpush1.bf16.msra.mxu0 %v4419
        %4444 = vmatprep.subr.bf16.mxu0 0
        %4445 = vmatpush1.bf16.msra.mxu0 0
        %4446 = vmatprep.subr.bf16.mxu0 0
        %4447 = vmatpush1.bf16.msra.mxu0 0
        %4448 = vmatprep.subr.bf16.mxu0 0
        %4449 = vmatpush1.bf16.msra.mxu0 0
        %4450 = vmatprep.subr.bf16.mxu0 0
        %4451 = vmatpush1.bf16.msra.mxu0 0
        %4452 = vmatprep.subr.bf16.mxu0 0
        %4453 = vmatpush1.bf16.msra.mxu0 0
        %4454 = vmatprep.subr.bf16.mxu0 0
        %4455 = vmatpush1.bf16.msra.mxu0 0
        %4456 = vmatprep.subr.bf16.mxu0 0
        %4457 = vmatpush1.bf16.msra.mxu0 0
        %4458 = vmatprep.subr.bf16.mxu0 0
        %4459 = vmatpush1.bf16.msra.mxu0 0
        %4460 = vmatprep.mubr.bf16.mxu0 0
        %4461 = vmatmul.mubr.bf16.gmra.mrb[0].mxu0 %v4340
        %v4462 = vpop.f32.mrb[0].mxu0
        %v4463 = vadd.f32 0.0, %v4462
        %v4464 = vpop.f32.mrb[0].mxu0
        %v4465 = vpop.f32.mrb[0].mxu0
        %v4466 = vadd.f32 0.0, %v4465
        %v4467 = vpop.f32.mrb[0].mxu0
        %4468 = vmatprep.mubr.bf16.mxu0 0
        %4469 = vmatmul.mubr.bf16.gmra.mrb[0].mxu0 %v4341
        %v4470 = vpop.f32.mrb[0].mxu0
        %v4471 = vadd.f32 0.0, %v4470
        %v4472 = vpop.f32.mrb[0].mxu0
        %v4473 = vpop.f32.mrb[0].mxu0
        %v4474 = vadd.f32 0.0, %v4473
        %v4475 = vpop.f32.mrb[0].mxu0
        %4476 = vmatprep.mubr.bf16.mxu0 0
        %4477 = vmatmul.mubr.bf16.gmra.mrb[0].mxu0 %v4342
        %v4478 = vpop.f32.mrb[0].mxu0
        %v4479 = vadd.f32 0.0, %v4478
        %v4480 = vpop.f32.mrb[0].mxu0
        %v4481 = vpop.f32.mrb[0].mxu0
        %v4482 = vadd.f32 0.0, %v4481
        %v4483 = vpop.f32.mrb[0].mxu0
        %4484 = vmatprep.mubr.bf16.mxu0 0
        %4485 = vmatmul.mubr.bf16.gmra.mrb[0].mxu0 %v4343
        %v4486 = vpop.f32.mrb[0].mxu0
        %v4487 = vadd.f32 0.0, %v4486
        %v4488 = vpop.f32.mrb[0].mxu0
        %v4489 = vpop.f32.mrb[0].mxu0
        %v4490 = vadd.f32 0.0, %v4489
        %v4491 = vpop.f32.mrb[0].mxu0
        %4492 = vmatprep.mubr.bf16.mxu0 0
        %4493 = vmatmul.mubr.bf16.gmra.mrb[0].mxu0 %v4344
        %v4494 = vpop.f32.mrb[0].mxu0
        %v4495 = vadd.f32 0.0, %v4494
        %v4496 = vpop.f32.mrb[0].mxu0
        %v4497 = vpop.f32.mrb[0].mxu0
        %v4498 = vadd.f32 0.0, %v4497
        %v4499 = vpop.f32.mrb[0].mxu0
        %4500 = vmatprep.mubr.bf16.mxu0 0
        %4501 = vmatmul.mubr.bf16.gmra.mrb[0].mxu0 %v4345
        %v4502 = vpop.f32.mrb[0].mxu0
        %v4503 = vadd.f32 0.0, %v4502
        %v4504 = vpop.f32.mrb[0].mxu0
        %v4505 = vpop.f32.mrb[0].mxu0
        %v4506 = vadd.f32 0.0, %v4505
        %v4507 = vpop.f32.mrb[0].mxu0
        %4508 = vmatprep.mubr.bf16.mxu0 0
        %4509 = vmatmul.mubr.bf16.gmra.mrb[0].mxu0 %v4346
        %v4510 = vpop.f32.mrb[0].mxu0
        %v4511 = vadd.f32 0.0, %v4510
        %v4512 = vpop.f32.mrb[0].mxu0
        %v4513 = vpop.f32.mrb[0].mxu0
        %v4514 = vadd.f32 0.0, %v4513
        %v4515 = vpop.f32.mrb[0].mxu0
        %4516 = vmatprep.mubr.bf16.mxu0 0
        %4517 = vmatmul.mubr.bf16.gmra.mrb[0].mxu0 %v4347
        %v4518 = vpop.f32.mrb[0].mxu0
        %v4519 = vadd.f32 0.0, %v4518
        %v4520 = vpop.f32.mrb[0].mxu0
        %v4521 = vpop.f32.mrb[0].mxu0
        %v4522 = vadd.f32 0.0, %v4521
        %v4523 = vpop.f32.mrb[0].mxu0
        %4524 = vdwg.mxu0
        %v4525 = vadd.f32 %v4348, %v4463
        %v4526 = vadd.f32 %v4349, %v4466
        %v4527 = vadd.f32 %v4350, %v4471
        %v4528 = vadd.f32 %v4351, %v4474
        %v4529 = vadd.f32 %v4352, %v4479
        %v4530 = vadd.f32 %v4353, %v4482
        %v4531 = vadd.f32 %v4354, %v4487
        %v4532 = vadd.f32 %v4355, %v4490
        %v4533 = vadd.f32 %v4356, %v4495
        %v4534 = vadd.f32 %v4357, %v4498
        %v4535 = vadd.f32 %v4358, %v4503
        %v4536 = vadd.f32 %v4359, %v4506
        %v4537 = vadd.f32 %v4360, %v4511
        %v4538 = vadd.f32 %v4361, %v4514
        %v4539 = vadd.f32 %v4362, %v4519
        %v4540 = vadd.f32 %v4363, %v4522
        %4541 = vst [vmem:[#allocation2] sm:$0xff] %v4525
        %4542 = vst [vmem:[#allocation2 + $0x8] sm:$0xff] %v4526
        %4543 = vst [vmem:[#allocation2 + $0x10] sm:$0xff] %v4527
        %4544 = vst [vmem:[#allocation2 + $0x18] sm:$0xff] %v4528
        %4545 = vst [vmem:[#allocation2 + $0x20] sm:$0xff] %v4529
        %4546 = vst [vmem:[#allocation2 + $0x28] sm:$0xff] %v4530
        %4547 = vst [vmem:[#allocation2 + $0x30] sm:$0xff] %v4531
        %4548 = vst [vmem:[#allocation2 + $0x38] sm:$0xff] %v4532
        %4549 = vst [vmem:[#allocation2 + $0x40] sm:$0xff] %v4533
        %4550 = vst [vmem:[#allocation2 + $0x48] sm:$0xff] %v4534
        %4551 = vst [vmem:[#allocation2 + $0x50] sm:$0xff] %v4535
        %4552 = vst [vmem:[#allocation2 + $0x58] sm:$0xff] %v4536
        %4553 = vst [vmem:[#allocation2 + $0x60] sm:$0xff] %v4537
        %4554 = vst [vmem:[#allocation2 + $0x68] sm:$0xff] %v4538
        %4555 = vst [vmem:[#allocation2 + $0x70] sm:$0xff] %v4539
        %4556 = vst [vmem:[#allocation2 + $0x78] sm:$0xff] %v4540
        %v4557 = vld [vmem:[#allocation2] sm:$0xff]
        %v4558 = vld [vmem:[#allocation2 + $0x8] sm:$0xff]
        %v4559 = vld [vmem:[#allocation2 + $0x10] sm:$0xff]
        %v4560 = vld [vmem:[#allocation2 + $0x18] sm:$0xff]
        %v4561 = vld [vmem:[#allocation2 + $0x20] sm:$0xff]
        %v4562 = vld [vmem:[#allocation2 + $0x28] sm:$0xff]
        %v4563 = vld [vmem:[#allocation2 + $0x30] sm:$0xff]
        %v4564 = vld [vmem:[#allocation2 + $0x38] sm:$0xff]
        %v4565 = vld [vmem:[#allocation2 + $0x40] sm:$0xff]
        %v4566 = vld [vmem:[#allocation2 + $0x48] sm:$0xff]
        %v4567 = vld [vmem:[#allocation2 + $0x50] sm:$0xff]
        %v4568 = vld [vmem:[#allocation2 + $0x58] sm:$0xff]
        %v4569 = vld [vmem:[#allocation2 + $0x60] sm:$0xff]
        %v4570 = vld [vmem:[#allocation2 + $0x68] sm:$0xff]
        %v4571 = vld [vmem:[#allocation2 + $0x70] sm:$0xff]
        %v4572 = vld [vmem:[#allocation2 + $0x78] sm:$0xff]
        %v4573 = vadd.f32 %v534, %v4557
        %v4574 = vadd.f32 %v535, %v4558
        %v4575 = vadd.f32 %v536, %v4559
        %v4576 = vadd.f32 %v537, %v4560
        %v4577 = vadd.f32 %v538, %v4561
        %v4578 = vadd.f32 %v539, %v4562
        %v4579 = vadd.f32 %v540, %v4563
        %v4580 = vadd.f32 %v541, %v4564
        %v4581 = vadd.f32 %v542, %v4565
        %v4582 = vadd.f32 %v543, %v4566
        %v4583 = vadd.f32 %v544, %v4567
        %v4584 = vadd.f32 %v545, %v4568
        %v4585 = vadd.f32 %v546, %v4569
        %v4586 = vadd.f32 %v547, %v4570
        %v4587 = vadd.f32 %v548, %v4571
        %v4588 = vadd.f32 %v549, %v4572
        %v4589 = vld [vmem:[%s6] sm:$0x1]
        %v4591 = vlaneseq
        %v4592 = vshrl.u32 %v4591, 7
        %v4593 = vsub.s32 0, %v4592
        %v4594 = vrot.slane %v4589, %v4593
        %v4596 = vadd.f32 %v4573, %v4594
        %v4597 = vadd.f32 %v4574, %v4594
        %v4598 = vadd.f32 %v4575, %v4594
        %v4599 = vadd.f32 %v4576, %v4594
        %v4600 = vadd.f32 %v4577, %v4594
        %v4601 = vadd.f32 %v4578, %v4594
        %v4602 = vadd.f32 %v4579, %v4594
        %v4603 = vadd.f32 %v4580, %v4594
        %v4604 = vadd.f32 %v4581, %v4594
        %v4605 = vadd.f32 %v4582, %v4594
        %v4606 = vadd.f32 %v4583, %v4594
        %v4607 = vadd.f32 %v4584, %v4594
        %v4608 = vadd.f32 %v4585, %v4594
        %v4609 = vadd.f32 %v4586, %v4594
        %v4610 = vadd.f32 %v4587, %v4594
        %v4611 = vadd.f32 %v4588, %v4594
        %v4612 = vld [vmem:[%s7] sm:$0x1]
        %v4613 = vld [vmem:[%s8] sm:$0x1]
        %4614 = vadd.xlane.f32.xlu0 %v4596
        %v4615 = vpop.xlane.xlu0 %4614
        %4616 = vadd.xlane.f32.xlu0 %v4597
        %v4617 = vpop.xlane.xlu0 %4616
        %4618 = vadd.xlane.f32.xlu0 %v4598
        %v4619 = vpop.xlane.xlu0 %4618
        %4620 = vadd.xlane.f32.xlu0 %v4599
        %v4621 = vpop.xlane.xlu0 %4620
        %4622 = vadd.xlane.f32.xlu0 %v4600
        %v4623 = vpop.xlane.xlu0 %4622
        %4624 = vadd.xlane.f32.xlu0 %v4601
        %v4625 = vpop.xlane.xlu0 %4624
        %4626 = vadd.xlane.f32.xlu0 %v4602
        %v4627 = vpop.xlane.xlu0 %4626
        %4628 = vadd.xlane.f32.xlu0 %v4603
        %v4629 = vpop.xlane.xlu0 %4628
        %4630 = vadd.xlane.f32.xlu0 %v4604
        %v4631 = vpop.xlane.xlu0 %4630
        %4632 = vadd.xlane.f32.xlu0 %v4605
        %v4633 = vpop.xlane.xlu0 %4632
        %4634 = vadd.xlane.f32.xlu0 %v4606
        %v4635 = vpop.xlane.xlu0 %4634
        %4636 = vadd.xlane.f32.xlu0 %v4607
        %v4637 = vpop.xlane.xlu0 %4636
        %4638 = vadd.xlane.f32.xlu0 %v4608
        %v4639 = vpop.xlane.xlu0 %4638
        %4640 = vadd.xlane.f32.xlu0 %v4609
        %v4641 = vpop.xlane.xlu0 %4640
        %4642 = vadd.xlane.f32.xlu0 %v4610
        %v4643 = vpop.xlane.xlu0 %4642
        %4644 = vadd.xlane.f32.xlu0 %v4611
        %v4645 = vpop.xlane.xlu0 %4644
        %v4646 = vmul.f32 %v4615, %v592
        %v4647 = vmul.f32 %v4617, %v592
        %v4648 = vmul.f32 %v4619, %v592
        %v4649 = vmul.f32 %v4621, %v592
        %v4650 = vmul.f32 %v4623, %v592
        %v4651 = vmul.f32 %v4625, %v592
        %v4652 = vmul.f32 %v4627, %v592
        %v4653 = vmul.f32 %v4629, %v592
        %v4654 = vmul.f32 %v4631, %v592
        %v4655 = vmul.f32 %v4633, %v592
        %v4656 = vmul.f32 %v4635, %v592
        %v4657 = vmul.f32 %v4637, %v592
        %v4658 = vmul.f32 %v4639, %v592
        %v4659 = vmul.f32 %v4641, %v592
        %v4660 = vmul.f32 %v4643, %v592
        %v4661 = vmul.f32 %v4645, %v592
        %v4662 = vsub.f32 %v4596, %v4646
        %v4663 = vsub.f32 %v4597, %v4647
        %v4664 = vsub.f32 %v4598, %v4648
        %v4665 = vsub.f32 %v4599, %v4649
        %v4666 = vsub.f32 %v4600, %v4650
        %v4667 = vsub.f32 %v4601, %v4651
        %v4668 = vsub.f32 %v4602, %v4652
        %v4669 = vsub.f32 %v4603, %v4653
        %v4670 = vsub.f32 %v4604, %v4654
        %v4671 = vsub.f32 %v4605, %v4655
        %v4672 = vsub.f32 %v4606, %v4656
        %v4673 = vsub.f32 %v4607, %v4657
        %v4674 = vsub.f32 %v4608, %v4658
        %v4675 = vsub.f32 %v4609, %v4659
        %v4676 = vsub.f32 %v4610, %v4660
        %v4677 = vsub.f32 %v4611, %v4661
        %v4678 = vmul.f32 %v4662, %v555
        %v4679 = vmul.f32 %v4663, %v555
        %v4680 = vmul.f32 %v4664, %v555
        %v4681 = vmul.f32 %v4665, %v555
        %v4682 = vmul.f32 %v4666, %v555
        %v4683 = vmul.f32 %v4667, %v555
        %v4684 = vmul.f32 %v4668, %v555
        %v4685 = vmul.f32 %v4669, %v555
        %v4686 = vmul.f32 %v4670, %v555
        %v4687 = vmul.f32 %v4671, %v555
        %v4688 = vmul.f32 %v4672, %v555
        %v4689 = vmul.f32 %v4673, %v555
        %v4690 = vmul.f32 %v4674, %v555
        %v4691 = vmul.f32 %v4675, %v555
        %v4692 = vmul.f32 %v4676, %v555
        %v4693 = vmul.f32 %v4677, %v555
        %v4694 = vmul.f32 %v4678, %v4678
        %v4695 = vmul.f32 %v4679, %v4679
        %v4696 = vmul.f32 %v4680, %v4680
        %v4697 = vmul.f32 %v4681, %v4681
        %v4698 = vmul.f32 %v4682, %v4682
        %v4699 = vmul.f32 %v4683, %v4683
        %v4700 = vmul.f32 %v4684, %v4684
        %v4701 = vmul.f32 %v4685, %v4685
        %v4702 = vmul.f32 %v4686, %v4686
        %v4703 = vmul.f32 %v4687, %v4687
        %v4704 = vmul.f32 %v4688, %v4688
        %v4705 = vmul.f32 %v4689, %v4689
        %v4706 = vmul.f32 %v4690, %v4690
        %v4707 = vmul.f32 %v4691, %v4691
        %v4708 = vmul.f32 %v4692, %v4692
        %v4709 = vmul.f32 %v4693, %v4693
        %4710 = vadd.xlane.f32.xlu0 %v4694
        %v4711 = vpop.xlane.xlu0 %4710
        %4712 = vadd.xlane.f32.xlu0 %v4695
        %v4713 = vpop.xlane.xlu0 %4712
        %4714 = vadd.xlane.f32.xlu0 %v4696
        %v4715 = vpop.xlane.xlu0 %4714
        %4716 = vadd.xlane.f32.xlu0 %v4697
        %v4717 = vpop.xlane.xlu0 %4716
        %4718 = vadd.xlane.f32.xlu0 %v4698
        %v4719 = vpop.xlane.xlu0 %4718
        %4720 = vadd.xlane.f32.xlu0 %v4699
        %v4721 = vpop.xlane.xlu0 %4720
        %4722 = vadd.xlane.f32.xlu0 %v4700
        %v4723 = vpop.xlane.xlu0 %4722
        %4724 = vadd.xlane.f32.xlu0 %v4701
        %v4725 = vpop.xlane.xlu0 %4724
        %4726 = vadd.xlane.f32.xlu0 %v4702
        %v4727 = vpop.xlane.xlu0 %4726
        %4728 = vadd.xlane.f32.xlu0 %v4703
        %v4729 = vpop.xlane.xlu0 %4728
        %4730 = vadd.xlane.f32.xlu0 %v4704
        %v4731 = vpop.xlane.xlu0 %4730
        %4732 = vadd.xlane.f32.xlu0 %v4705
        %v4733 = vpop.xlane.xlu0 %4732
        %4734 = vadd.xlane.f32.xlu0 %v4706
        %v4735 = vpop.xlane.xlu0 %4734
        %4736 = vadd.xlane.f32.xlu0 %v4707
        %v4737 = vpop.xlane.xlu0 %4736
        %4738 = vadd.xlane.f32.xlu0 %v4708
        %v4739 = vpop.xlane.xlu0 %4738
        %4740 = vadd.xlane.f32.xlu0 %v4709
        %v4741 = vpop.xlane.xlu0 %4740
        %v4742 = vmul.f32 %v4711, %v592
        %v4743 = vmul.f32 %v4713, %v592
        %v4744 = vmul.f32 %v4715, %v592
        %v4745 = vmul.f32 %v4717, %v592
        %v4746 = vmul.f32 %v4719, %v592
        %v4747 = vmul.f32 %v4721, %v592
        %v4748 = vmul.f32 %v4723, %v592
        %v4749 = vmul.f32 %v4725, %v592
        %v4750 = vmul.f32 %v4727, %v592
        %v4751 = vmul.f32 %v4729, %v592
        %v4752 = vmul.f32 %v4731, %v592
        %v4753 = vmul.f32 %v4733, %v592
        %v4754 = vmul.f32 %v4735, %v592
        %v4755 = vmul.f32 %v4737, %v592
        %v4756 = vmul.f32 %v4739, %v592
        %v4757 = vmul.f32 %v4741, %v592
        %v4758 = vadd.f32 %v4742, 1e-05
        %v4759 = vadd.f32 %v4743, 1e-05
        %v4760 = vadd.f32 %v4744, 1e-05
        %v4761 = vadd.f32 %v4745, 1e-05
        %v4762 = vadd.f32 %v4746, 1e-05
        %v4763 = vadd.f32 %v4747, 1e-05
        %v4764 = vadd.f32 %v4748, 1e-05
        %v4765 = vadd.f32 %v4749, 1e-05
        %v4766 = vadd.f32 %v4750, 1e-05
        %v4767 = vadd.f32 %v4751, 1e-05
        %v4768 = vadd.f32 %v4752, 1e-05
        %v4769 = vadd.f32 %v4753, 1e-05
        %v4770 = vadd.f32 %v4754, 1e-05
        %v4771 = vadd.f32 %v4755, 1e-05
        %v4772 = vadd.f32 %v4756, 1e-05
        %v4773 = vadd.f32 %v4757, 1e-05
        %v4774 = vrsqrt.pop %v4758
        %v4775 = vrsqrt.pop %v4759
        %v4776 = vrsqrt.pop %v4760
        %v4777 = vrsqrt.pop %v4761
        %v4778 = vrsqrt.pop %v4762
        %v4779 = vrsqrt.pop %v4763
        %v4780 = vrsqrt.pop %v4764
        %v4781 = vrsqrt.pop %v4765
        %v4782 = vrsqrt.pop %v4766
        %v4783 = vrsqrt.pop %v4767
        %v4784 = vrsqrt.pop %v4768
        %v4785 = vrsqrt.pop %v4769
        %v4786 = vrsqrt.pop %v4770
        %v4787 = vrsqrt.pop %v4771
        %v4788 = vrsqrt.pop %v4772
        %v4789 = vrsqrt.pop %v4773
        %v4790 = vmul.f32 %v4678, %v4774
        %v4791 = vmul.f32 %v4679, %v4775
        %v4792 = vmul.f32 %v4680, %v4776
        %v4793 = vmul.f32 %v4681, %v4777
        %v4794 = vmul.f32 %v4682, %v4778
        %v4795 = vmul.f32 %v4683, %v4779
        %v4796 = vmul.f32 %v4684, %v4780
        %v4797 = vmul.f32 %v4685, %v4781
        %v4798 = vmul.f32 %v4686, %v4782
        %v4799 = vmul.f32 %v4687, %v4783
        %v4800 = vmul.f32 %v4688, %v4784
        %v4801 = vmul.f32 %v4689, %v4785
        %v4802 = vmul.f32 %v4690, %v4786
        %v4803 = vmul.f32 %v4691, %v4787
        %v4804 = vmul.f32 %v4692, %v4788
        %v4805 = vmul.f32 %v4693, %v4789
        %v4807 = vlaneseq
        %v4808 = vshrl.u32 %v4807, 7
        %v4809 = vsub.s32 0, %v4808
        %v4810 = vrot.slane %v4612, %v4809
        %v4812 = vmul.f32 %v4790, %v4810
        %v4813 = vmul.f32 %v4791, %v4810
        %v4814 = vmul.f32 %v4792, %v4810
        %v4815 = vmul.f32 %v4793, %v4810
        %v4816 = vmul.f32 %v4794, %v4810
        %v4817 = vmul.f32 %v4795, %v4810
        %v4818 = vmul.f32 %v4796, %v4810
        %v4819 = vmul.f32 %v4797, %v4810
        %v4820 = vmul.f32 %v4798, %v4810
        %v4821 = vmul.f32 %v4799, %v4810
        %v4822 = vmul.f32 %v4800, %v4810
        %v4823 = vmul.f32 %v4801, %v4810
        %v4824 = vmul.f32 %v4802, %v4810
        %v4825 = vmul.f32 %v4803, %v4810
        %v4826 = vmul.f32 %v4804, %v4810
        %v4827 = vmul.f32 %v4805, %v4810
        %v4829 = vlaneseq
        %v4830 = vshrl.u32 %v4829, 7
        %v4831 = vsub.s32 0, %v4830
        %v4832 = vrot.slane %v4613, %v4831
        %v4834 = vadd.f32 %v4812, %v4832
        %v4835 = vadd.f32 %v4813, %v4832
        %v4836 = vadd.f32 %v4814, %v4832
        %v4837 = vadd.f32 %v4815, %v4832
        %v4838 = vadd.f32 %v4816, %v4832
        %v4839 = vadd.f32 %v4817, %v4832
        %v4840 = vadd.f32 %v4818, %v4832
        %v4841 = vadd.f32 %v4819, %v4832
        %v4842 = vadd.f32 %v4820, %v4832
        %v4843 = vadd.f32 %v4821, %v4832
        %v4844 = vadd.f32 %v4822, %v4832
        %v4845 = vadd.f32 %v4823, %v4832
        %v4846 = vadd.f32 %v4824, %v4832
        %v4847 = vadd.f32 %v4825, %v4832
        %v4848 = vadd.f32 %v4826, %v4832
        %v4849 = vadd.f32 %v4827, %v4832
        %v4850 = vpack.c.bf16 %v4835, %v4834
        %v4851 = vpack.c.bf16 %v4837, %v4836
        %v4852 = vpack.c.bf16 %v4839, %v4838
        %v4853 = vpack.c.bf16 %v4841, %v4840
        %v4854 = vpack.c.bf16 %v4843, %v4842
        %v4855 = vpack.c.bf16 %v4845, %v4844
        %v4856 = vpack.c.bf16 %v4847, %v4846
        %v4857 = vpack.c.bf16 %v4849, %v4848
        %4858 = vst [vmem:[#allocation2] sm:$0xff] 0.0
        %4859 = vst [vmem:[#allocation2 + $0x8] sm:$0xff] 0.0
        %4860 = vst [vmem:[#allocation2 + $0x10] sm:$0xff] 0.0
        %4861 = vst [vmem:[#allocation2 + $0x18] sm:$0xff] 0.0
        %4862 = vst [vmem:[#allocation2 + $0x20] sm:$0xff] 0.0
        %4863 = vst [vmem:[#allocation2 + $0x28] sm:$0xff] 0.0
        %4864 = vst [vmem:[#allocation2 + $0x30] sm:$0xff] 0.0
        %4865 = vst [vmem:[#allocation2 + $0x38] sm:$0xff] 0.0
        %4866 = vst [vmem:[#allocation2 + $0x40] sm:$0xff] 0.0
        %4867 = vst [vmem:[#allocation2 + $0x48] sm:$0xff] 0.0
        %4868 = vst [vmem:[#allocation2 + $0x50] sm:$0xff] 0.0
        %4869 = vst [vmem:[#allocation2 + $0x58] sm:$0xff] 0.0
        %4870 = vst [vmem:[#allocation2 + $0x60] sm:$0xff] 0.0
        %4871 = vst [vmem:[#allocation2 + $0x68] sm:$0xff] 0.0
        %4872 = vst [vmem:[#allocation2 + $0x70] sm:$0xff] 0.0
        %4873 = vst [vmem:[#allocation2 + $0x78] sm:$0xff] 0.0
        %v4874 = vld [vmem:[#allocation8] sm:$0xf]
        %v4875 = vld [vmem:[#allocation8 + $0x4] sm:$0xf]
        %v4876 = vld [vmem:[#allocation8 + $0x8] sm:$0xf]
        %v4877 = vld [vmem:[#allocation8 + $0xc] sm:$0xf]
        %v4878 = vld [vmem:[#allocation8 + $0x10] sm:$0xf]
        %v4879 = vld [vmem:[#allocation8 + $0x14] sm:$0xf]
        %v4880 = vld [vmem:[#allocation8 + $0x18] sm:$0xf]
        %v4881 = vld [vmem:[#allocation8 + $0x1c] sm:$0xf]
        %v4882 = vld [vmem:[#allocation8 + $0x20] sm:$0xf]
        %v4883 = vld [vmem:[#allocation8 + $0x24] sm:$0xf]
        %v4884 = vld [vmem:[#allocation8 + $0x28] sm:$0xf]
        %v4885 = vld [vmem:[#allocation8 + $0x2c] sm:$0xf]
        %v4886 = vld [vmem:[#allocation8 + $0x30] sm:$0xf]
        %v4887 = vld [vmem:[#allocation8 + $0x34] sm:$0xf]
        %v4888 = vld [vmem:[#allocation8 + $0x38] sm:$0xf]
        %v4889 = vld [vmem:[#allocation8 + $0x3c] sm:$0xf]
        %v4890 = vld [vmem:[%s10] sm:$0x1]
        %v4892 = vlaneseq
        %v4893 = vshrl.u32 %v4892, 7
        %v4894 = vsub.s32 0, %v4893
        %v4895 = vrot.slane %v4890, %v4894
        %v4913 = vunpack.c.l.b16 %v4874
        %v4914 = vunpack.c.l.b16 %v4875
        %v4915 = vunpack.c.l.b16 %v4876
        %v4916 = vunpack.c.l.b16 %v4877
        %v4917 = vunpack.c.l.b16 %v4878
        %v4918 = vunpack.c.l.b16 %v4879
        %v4919 = vunpack.c.l.b16 %v4880
        %v4920 = vunpack.c.l.b16 %v4881
        %v4921 = vunpack.c.l.b16 %v4882
        %v4922 = vunpack.c.l.b16 %v4883
        %v4923 = vunpack.c.l.b16 %v4884
        %v4924 = vunpack.c.l.b16 %v4885
        %v4925 = vunpack.c.l.b16 %v4886
        %v4926 = vunpack.c.l.b16 %v4887
        %v4927 = vunpack.c.l.b16 %v4888
        %v4928 = vunpack.c.l.b16 %v4889
        %v4929 = vpack.c.b16 %v4914, %v4913
        %v4930 = vpack.c.b16 %v4916, %v4915
        %v4931 = vpack.c.b16 %v4918, %v4917
        %v4932 = vpack.c.b16 %v4920, %v4919
        %v4933 = vpack.c.b16 %v4922, %v4921
        %v4934 = vpack.c.b16 %v4924, %v4923
        %v4935 = vpack.c.b16 %v4926, %v4925
        %v4936 = vpack.c.b16 %v4928, %v4927
        %4945 = vmatprep.subr.bf16.mxu0 0
        %4946 = vmatpush1.bf16.msra.mxu0 %v4929
        %4947 = vmatprep.subr.bf16.mxu0 0
        %4948 = vmatpush1.bf16.msra.mxu0 %v4930
        %4949 = vmatprep.subr.bf16.mxu0 0
        %4950 = vmatpush1.bf16.msra.mxu0 %v4931
        %4951 = vmatprep.subr.bf16.mxu0 0
        %4952 = vmatpush1.bf16.msra.mxu0 %v4932
        %4953 = vmatprep.subr.bf16.mxu0 0
        %4954 = vmatpush1.bf16.msra.mxu0 %v4933
        %4955 = vmatprep.subr.bf16.mxu0 0
        %4956 = vmatpush1.bf16.msra.mxu0 %v4934
        %4957 = vmatprep.subr.bf16.mxu0 0
        %4958 = vmatpush1.bf16.msra.mxu0 %v4935
        %4959 = vmatprep.subr.bf16.mxu0 0
        %4960 = vmatpush1.bf16.msra.mxu0 %v4936
        %4961 = vmatprep.subr.bf16.mxu0 0
        %4962 = vmatpush1.bf16.msra.mxu0 0
        %4963 = vmatprep.subr.bf16.mxu0 0
        %4964 = vmatpush1.bf16.msra.mxu0 0
        %4965 = vmatprep.subr.bf16.mxu0 0
        %4966 = vmatpush1.bf16.msra.mxu0 0
        %4967 = vmatprep.subr.bf16.mxu0 0
        %4968 = vmatpush1.bf16.msra.mxu0 0
        %4969 = vmatprep.subr.bf16.mxu0 0
        %4970 = vmatpush1.bf16.msra.mxu0 0
        %4971 = vmatprep.subr.bf16.mxu0 0
        %4972 = vmatpush1.bf16.msra.mxu0 0
        %4973 = vmatprep.subr.bf16.mxu0 0
        %4974 = vmatpush1.bf16.msra.mxu0 0
        %4975 = vmatprep.subr.bf16.mxu0 0
        %4976 = vmatpush1.bf16.msra.mxu0 0
        %4977 = vmatprep.mubr.bf16.mxu0 0
        %4978 = vmatmul.mubr.bf16.gmra.mrb[0].mxu0 %v4850
        %v4979 = vpop.f32.mrb[0].mxu0
        %v4980 = vadd.f32 %v4895, %v4979
        %v4981 = vpop.f32.mrb[0].mxu0
        %v4982 = vpop.f32.mrb[0].mxu0
        %v4983 = vadd.f32 %v4895, %v4982
        %v4984 = vpop.f32.mrb[0].mxu0
        %4985 = vmatprep.mubr.bf16.mxu0 0
        %4986 = vmatmul.mubr.bf16.gmra.mrb[0].mxu0 %v4851
        %v4987 = vpop.f32.mrb[0].mxu0
        %v4988 = vadd.f32 %v4895, %v4987
        %v4989 = vpop.f32.mrb[0].mxu0
        %v4990 = vpop.f32.mrb[0].mxu0
        %v4991 = vadd.f32 %v4895, %v4990
        %v4992 = vpop.f32.mrb[0].mxu0
        %4993 = vmatprep.mubr.bf16.mxu0 0
        %4994 = vmatmul.mubr.bf16.gmra.mrb[0].mxu0 %v4852
        %v4995 = vpop.f32.mrb[0].mxu0
        %v4996 = vadd.f32 %v4895, %v4995
        %v4997 = vpop.f32.mrb[0].mxu0
        %v4998 = vpop.f32.mrb[0].mxu0
        %v4999 = vadd.f32 %v4895, %v4998
        %v5000 = vpop.f32.mrb[0].mxu0
        %5001 = vmatprep.mubr.bf16.mxu0 0
        %5002 = vmatmul.mubr.bf16.gmra.mrb[0].mxu0 %v4853
        %v5003 = vpop.f32.mrb[0].mxu0
        %v5004 = vadd.f32 %v4895, %v5003
        %v5005 = vpop.f32.mrb[0].mxu0
        %v5006 = vpop.f32.mrb[0].mxu0
        %v5007 = vadd.f32 %v4895, %v5006
        %v5008 = vpop.f32.mrb[0].mxu0
        %5009 = vmatprep.mubr.bf16.mxu0 0
        %5010 = vmatmul.mubr.bf16.gmra.mrb[0].mxu0 %v4854
        %v5011 = vpop.f32.mrb[0].mxu0
        %v5012 = vadd.f32 %v4895, %v5011
        %v5013 = vpop.f32.mrb[0].mxu0
        %v5014 = vpop.f32.mrb[0].mxu0
        %v5015 = vadd.f32 %v4895, %v5014
        %v5016 = vpop.f32.mrb[0].mxu0
        %5017 = vmatprep.mubr.bf16.mxu0 0
        %5018 = vmatmul.mubr.bf16.gmra.mrb[0].mxu0 %v4855
        %v5019 = vpop.f32.mrb[0].mxu0
        %v5020 = vadd.f32 %v4895, %v5019
        %v5021 = vpop.f32.mrb[0].mxu0
        %v5022 = vpop.f32.mrb[0].mxu0
        %v5023 = vadd.f32 %v4895, %v5022
        %v5024 = vpop.f32.mrb[0].mxu0
        %5025 = vmatprep.mubr.bf16.mxu0 0
        %5026 = vmatmul.mubr.bf16.gmra.mrb[0].mxu0 %v4856
        %v5027 = vpop.f32.mrb[0].mxu0
        %v5028 = vadd.f32 %v4895, %v5027
        %v5029 = vpop.f32.mrb[0].mxu0
        %v5030 = vpop.f32.mrb[0].mxu0
        %v5031 = vadd.f32 %v4895, %v5030
        %v5032 = vpop.f32.mrb[0].mxu0
        %5033 = vmatprep.mubr.bf16.mxu0 0
        %5034 = vmatmul.mubr.bf16.gmra.mrb[0].mxu0 %v4857
        %v5035 = vpop.f32.mrb[0].mxu0
        %v5036 = vadd.f32 %v4895, %v5035
        %v5037 = vpop.f32.mrb[0].mxu0
        %v5038 = vpop.f32.mrb[0].mxu0
        %v5039 = vadd.f32 %v4895, %v5038
        %v5040 = vpop.f32.mrb[0].mxu0
        %5041 = vdwg.mxu0
        %v5042 = vmax.f32 %v4980, 0.0
        %v5043 = vmax.f32 %v4983, 0.0
        %v5044 = vmax.f32 %v4988, 0.0
        %v5045 = vmax.f32 %v4991, 0.0
        %v5046 = vmax.f32 %v4996, 0.0
        %v5047 = vmax.f32 %v4999, 0.0
        %v5048 = vmax.f32 %v5004, 0.0
        %v5049 = vmax.f32 %v5007, 0.0
        %v5050 = vmax.f32 %v5012, 0.0
        %v5051 = vmax.f32 %v5015, 0.0
        %v5052 = vmax.f32 %v5020, 0.0
        %v5053 = vmax.f32 %v5023, 0.0
        %v5054 = vmax.f32 %v5028, 0.0
        %v5055 = vmax.f32 %v5031, 0.0
        %v5056 = vmax.f32 %v5036, 0.0
        %v5057 = vmax.f32 %v5039, 0.0
        %v5058 = vpack.c.bf16 %v5043, %v5042
        %v5059 = vpack.c.bf16 %v5045, %v5044
        %v5060 = vpack.c.bf16 %v5047, %v5046
        %v5061 = vpack.c.bf16 %v5049, %v5048
        %v5062 = vpack.c.bf16 %v5051, %v5050
        %v5063 = vpack.c.bf16 %v5053, %v5052
        %v5064 = vpack.c.bf16 %v5055, %v5054
        %v5065 = vpack.c.bf16 %v5057, %v5056
        %v5066 = vld [vmem:[#allocation2] sm:$0xff]
        %v5067 = vld [vmem:[#allocation2 + $0x8] sm:$0xff]
        %v5068 = vld [vmem:[#allocation2 + $0x10] sm:$0xff]
        %v5069 = vld [vmem:[#allocation2 + $0x18] sm:$0xff]
        %v5070 = vld [vmem:[#allocation2 + $0x20] sm:$0xff]
        %v5071 = vld [vmem:[#allocation2 + $0x28] sm:$0xff]
        %v5072 = vld [vmem:[#allocation2 + $0x30] sm:$0xff]
        %v5073 = vld [vmem:[#allocation2 + $0x38] sm:$0xff]
        %v5074 = vld [vmem:[#allocation2 + $0x40] sm:$0xff]
        %v5075 = vld [vmem:[#allocation2 + $0x48] sm:$0xff]
        %v5076 = vld [vmem:[#allocation2 + $0x50] sm:$0xff]
        %v5077 = vld [vmem:[#allocation2 + $0x58] sm:$0xff]
        %v5078 = vld [vmem:[#allocation2 + $0x60] sm:$0xff]
        %v5079 = vld [vmem:[#allocation2 + $0x68] sm:$0xff]
        %v5080 = vld [vmem:[#allocation2 + $0x70] sm:$0xff]
        %v5081 = vld [vmem:[#allocation2 + $0x78] sm:$0xff]
        %v5082 = vld [vmem:[#allocation9] sm:$0xf]
        %v5083 = vld [vmem:[#allocation9 + $0x4] sm:$0xf]
        %v5084 = vld [vmem:[#allocation9 + $0x8] sm:$0xf]
        %v5085 = vld [vmem:[#allocation9 + $0xc] sm:$0xf]
        %v5086 = vld [vmem:[#allocation9 + $0x10] sm:$0xf]
        %v5087 = vld [vmem:[#allocation9 + $0x14] sm:$0xf]
        %v5088 = vld [vmem:[#allocation9 + $0x18] sm:$0xf]
        %v5089 = vld [vmem:[#allocation9 + $0x1c] sm:$0xf]
        %v5090 = vld [vmem:[#allocation9 + $0x20] sm:$0xf]
        %v5091 = vld [vmem:[#allocation9 + $0x24] sm:$0xf]
        %v5092 = vld [vmem:[#allocation9 + $0x28] sm:$0xf]
        %v5093 = vld [vmem:[#allocation9 + $0x2c] sm:$0xf]
        %v5094 = vld [vmem:[#allocation9 + $0x30] sm:$0xf]
        %v5095 = vld [vmem:[#allocation9 + $0x34] sm:$0xf]
        %v5096 = vld [vmem:[#allocation9 + $0x38] sm:$0xf]
        %v5097 = vld [vmem:[#allocation9 + $0x3c] sm:$0xf]
        %v5114 = vunpack.c.l.b16 %v5082
        %v5115 = vunpack.c.l.b16 %v5083
        %v5116 = vunpack.c.l.b16 %v5084
        %v5117 = vunpack.c.l.b16 %v5085
        %v5118 = vunpack.c.l.b16 %v5086
        %v5119 = vunpack.c.l.b16 %v5087
        %v5120 = vunpack.c.l.b16 %v5088
        %v5121 = vunpack.c.l.b16 %v5089
        %v5122 = vunpack.c.l.b16 %v5090
        %v5123 = vunpack.c.l.b16 %v5091
        %v5124 = vunpack.c.l.b16 %v5092
        %v5125 = vunpack.c.l.b16 %v5093
        %v5126 = vunpack.c.l.b16 %v5094
        %v5127 = vunpack.c.l.b16 %v5095
        %v5128 = vunpack.c.l.b16 %v5096
        %v5129 = vunpack.c.l.b16 %v5097
        %v5130 = vpack.c.b16 %v5115, %v5114
        %v5131 = vpack.c.b16 %v5117, %v5116
        %v5132 = vpack.c.b16 %v5119, %v5118
        %v5133 = vpack.c.b16 %v5121, %v5120
        %v5134 = vpack.c.b16 %v5123, %v5122
        %v5135 = vpack.c.b16 %v5125, %v5124
        %v5136 = vpack.c.b16 %v5127, %v5126
        %v5137 = vpack.c.b16 %v5129, %v5128
        %5146 = vmatprep.subr.bf16.mxu0 0
        %5147 = vmatpush1.bf16.msra.mxu0 %v5130
        %5148 = vmatprep.subr.bf16.mxu0 0
        %5149 = vmatpush1.bf16.msra.mxu0 %v5131
        %5150 = vmatprep.subr.bf16.mxu0 0
        %5151 = vmatpush1.bf16.msra.mxu0 %v5132
        %5152 = vmatprep.subr.bf16.mxu0 0
        %5153 = vmatpush1.bf16.msra.mxu0 %v5133
        %5154 = vmatprep.subr.bf16.mxu0 0
        %5155 = vmatpush1.bf16.msra.mxu0 %v5134
        %5156 = vmatprep.subr.bf16.mxu0 0
        %5157 = vmatpush1.bf16.msra.mxu0 %v5135
        %5158 = vmatprep.subr.bf16.mxu0 0
        %5159 = vmatpush1.bf16.msra.mxu0 %v5136
        %5160 = vmatprep.subr.bf16.mxu0 0
        %5161 = vmatpush1.bf16.msra.mxu0 %v5137
        %5162 = vmatprep.subr.bf16.mxu0 0
        %5163 = vmatpush1.bf16.msra.mxu0 0
        %5164 = vmatprep.subr.bf16.mxu0 0
        %5165 = vmatpush1.bf16.msra.mxu0 0
        %5166 = vmatprep.subr.bf16.mxu0 0
        %5167 = vmatpush1.bf16.msra.mxu0 0
        %5168 = vmatprep.subr.bf16.mxu0 0
        %5169 = vmatpush1.bf16.msra.mxu0 0
        %5170 = vmatprep.subr.bf16.mxu0 0
        %5171 = vmatpush1.bf16.msra.mxu0 0
        %5172 = vmatprep.subr.bf16.mxu0 0
        %5173 = vmatpush1.bf16.msra.mxu0 0
        %5174 = vmatprep.subr.bf16.mxu0 0
        %5175 = vmatpush1.bf16.msra.mxu0 0
        %5176 = vmatprep.subr.bf16.mxu0 0
        %5177 = vmatpush1.bf16.msra.mxu0 0
        %5178 = vmatprep.mubr.bf16.mxu0 0
        %5179 = vmatmul.mubr.bf16.gmra.mrb[0].mxu0 %v5058
        %v5180 = vpop.f32.mrb[0].mxu0
        %v5181 = vadd.f32 0.0, %v5180
        %v5182 = vpop.f32.mrb[0].mxu0
        %v5183 = vpop.f32.mrb[0].mxu0
        %v5184 = vadd.f32 0.0, %v5183
        %v5185 = vpop.f32.mrb[0].mxu0
        %5186 = vmatprep.mubr.bf16.mxu0 0
        %5187 = vmatmul.mubr.bf16.gmra.mrb[0].mxu0 %v5059
        %v5188 = vpop.f32.mrb[0].mxu0
        %v5189 = vadd.f32 0.0, %v5188
        %v5190 = vpop.f32.mrb[0].mxu0
        %v5191 = vpop.f32.mrb[0].mxu0
        %v5192 = vadd.f32 0.0, %v5191
        %v5193 = vpop.f32.mrb[0].mxu0
        %5194 = vmatprep.mubr.bf16.mxu0 0
        %5195 = vmatmul.mubr.bf16.gmra.mrb[0].mxu0 %v5060
        %v5196 = vpop.f32.mrb[0].mxu0
        %v5197 = vadd.f32 0.0, %v5196
        %v5198 = vpop.f32.mrb[0].mxu0
        %v5199 = vpop.f32.mrb[0].mxu0
        %v5200 = vadd.f32 0.0, %v5199
        %v5201 = vpop.f32.mrb[0].mxu0
        %5202 = vmatprep.mubr.bf16.mxu0 0
        %5203 = vmatmul.mubr.bf16.gmra.mrb[0].mxu0 %v5061
        %v5204 = vpop.f32.mrb[0].mxu0
        %v5205 = vadd.f32 0.0, %v5204
        %v5206 = vpop.f32.mrb[0].mxu0
        %v5207 = vpop.f32.mrb[0].mxu0
        %v5208 = vadd.f32 0.0, %v5207
        %v5209 = vpop.f32.mrb[0].mxu0
        %5210 = vmatprep.mubr.bf16.mxu0 0
        %5211 = vmatmul.mubr.bf16.gmra.mrb[0].mxu0 %v5062
        %v5212 = vpop.f32.mrb[0].mxu0
        %v5213 = vadd.f32 0.0, %v5212
        %v5214 = vpop.f32.mrb[0].mxu0
        %v5215 = vpop.f32.mrb[0].mxu0
        %v5216 = vadd.f32 0.0, %v5215
        %v5217 = vpop.f32.mrb[0].mxu0
        %5218 = vmatprep.mubr.bf16.mxu0 0
        %5219 = vmatmul.mubr.bf16.gmra.mrb[0].mxu0 %v5063
        %v5220 = vpop.f32.mrb[0].mxu0
        %v5221 = vadd.f32 0.0, %v5220
        %v5222 = vpop.f32.mrb[0].mxu0
        %v5223 = vpop.f32.mrb[0].mxu0
        %v5224 = vadd.f32 0.0, %v5223
        %v5225 = vpop.f32.mrb[0].mxu0
        %5226 = vmatprep.mubr.bf16.mxu0 0
        %5227 = vmatmul.mubr.bf16.gmra.mrb[0].mxu0 %v5064
        %v5228 = vpop.f32.mrb[0].mxu0
        %v5229 = vadd.f32 0.0, %v5228
        %v5230 = vpop.f32.mrb[0].mxu0
        %v5231 = vpop.f32.mrb[0].mxu0
        %v5232 = vadd.f32 0.0, %v5231
        %v5233 = vpop.f32.mrb[0].mxu0
        %5234 = vmatprep.mubr.bf16.mxu0 0
        %5235 = vmatmul.mubr.bf16.gmra.mrb[0].mxu0 %v5065
        %v5236 = vpop.f32.mrb[0].mxu0
        %v5237 = vadd.f32 0.0, %v5236
        %v5238 = vpop.f32.mrb[0].mxu0
        %v5239 = vpop.f32.mrb[0].mxu0
        %v5240 = vadd.f32 0.0, %v5239
        %v5241 = vpop.f32.mrb[0].mxu0
        %5242 = vdwg.mxu0
        %v5243 = vadd.f32 %v5066, %v5181
        %v5244 = vadd.f32 %v5067, %v5184
        %v5245 = vadd.f32 %v5068, %v5189
        %v5246 = vadd.f32 %v5069, %v5192
        %v5247 = vadd.f32 %v5070, %v5197
        %v5248 = vadd.f32 %v5071, %v5200
        %v5249 = vadd.f32 %v5072, %v5205
        %v5250 = vadd.f32 %v5073, %v5208
        %v5251 = vadd.f32 %v5074, %v5213
        %v5252 = vadd.f32 %v5075, %v5216
        %v5253 = vadd.f32 %v5076, %v5221
        %v5254 = vadd.f32 %v5077, %v5224
        %v5255 = vadd.f32 %v5078, %v5229
        %v5256 = vadd.f32 %v5079, %v5232
        %v5257 = vadd.f32 %v5080, %v5237
        %v5258 = vadd.f32 %v5081, %v5240
        %5259 = vst [vmem:[#allocation2] sm:$0xff] %v5243
        %5260 = vst [vmem:[#allocation2 + $0x8] sm:$0xff] %v5244
        %5261 = vst [vmem:[#allocation2 + $0x10] sm:$0xff] %v5245
        %5262 = vst [vmem:[#allocation2 + $0x18] sm:$0xff] %v5246
        %5263 = vst [vmem:[#allocation2 + $0x20] sm:$0xff] %v5247
        %5264 = vst [vmem:[#allocation2 + $0x28] sm:$0xff] %v5248
        %5265 = vst [vmem:[#allocation2 + $0x30] sm:$0xff] %v5249
        %5266 = vst [vmem:[#allocation2 + $0x38] sm:$0xff] %v5250
        %5267 = vst [vmem:[#allocation2 + $0x40] sm:$0xff] %v5251
        %5268 = vst [vmem:[#allocation2 + $0x48] sm:$0xff] %v5252
        %5269 = vst [vmem:[#allocation2 + $0x50] sm:$0xff] %v5253
        %5270 = vst [vmem:[#allocation2 + $0x58] sm:$0xff] %v5254
        %5271 = vst [vmem:[#allocation2 + $0x60] sm:$0xff] %v5255
        %5272 = vst [vmem:[#allocation2 + $0x68] sm:$0xff] %v5256
        %5273 = vst [vmem:[#allocation2 + $0x70] sm:$0xff] %v5257
        %5274 = vst [vmem:[#allocation2 + $0x78] sm:$0xff] %v5258
        %v5275 = vld [vmem:[#allocation2] sm:$0xff]
        %v5276 = vld [vmem:[#allocation2 + $0x8] sm:$0xff]
        %v5277 = vld [vmem:[#allocation2 + $0x10] sm:$0xff]
        %v5278 = vld [vmem:[#allocation2 + $0x18] sm:$0xff]
        %v5279 = vld [vmem:[#allocation2 + $0x20] sm:$0xff]
        %v5280 = vld [vmem:[#allocation2 + $0x28] sm:$0xff]
        %v5281 = vld [vmem:[#allocation2 + $0x30] sm:$0xff]
        %v5282 = vld [vmem:[#allocation2 + $0x38] sm:$0xff]
        %v5283 = vld [vmem:[#allocation2 + $0x40] sm:$0xff]
        %v5284 = vld [vmem:[#allocation2 + $0x48] sm:$0xff]
        %v5285 = vld [vmem:[#allocation2 + $0x50] sm:$0xff]
        %v5286 = vld [vmem:[#allocation2 + $0x58] sm:$0xff]
        %v5287 = vld [vmem:[#allocation2 + $0x60] sm:$0xff]
        %v5288 = vld [vmem:[#allocation2 + $0x68] sm:$0xff]
        %v5289 = vld [vmem:[#allocation2 + $0x70] sm:$0xff]
        %v5290 = vld [vmem:[#allocation2 + $0x78] sm:$0xff]
        %v5291 = vadd.f32 %v4596, %v5275
        %v5292 = vadd.f32 %v4597, %v5276
        %v5293 = vadd.f32 %v4598, %v5277
        %v5294 = vadd.f32 %v4599, %v5278
        %v5295 = vadd.f32 %v4600, %v5279
        %v5296 = vadd.f32 %v4601, %v5280
        %v5297 = vadd.f32 %v4602, %v5281
        %v5298 = vadd.f32 %v4603, %v5282
        %v5299 = vadd.f32 %v4604, %v5283
        %v5300 = vadd.f32 %v4605, %v5284
        %v5301 = vadd.f32 %v4606, %v5285
        %v5302 = vadd.f32 %v4607, %v5286
        %v5303 = vadd.f32 %v4608, %v5287
        %v5304 = vadd.f32 %v4609, %v5288
        %v5305 = vadd.f32 %v4610, %v5289
        %v5306 = vadd.f32 %v4611, %v5290
        %v5307 = vld [vmem:[%s12] sm:$0x1]
        %v5309 = vlaneseq
        %v5310 = vshrl.u32 %v5309, 7
        %v5311 = vsub.s32 0, %v5310
        %v5312 = vrot.slane %v5307, %v5311
        %v5314 = vadd.f32 %v5291, %v5312
        %v5315 = vadd.f32 %v5292, %v5312
        %v5316 = vadd.f32 %v5293, %v5312
        %v5317 = vadd.f32 %v5294, %v5312
        %v5318 = vadd.f32 %v5295, %v5312
        %v5319 = vadd.f32 %v5296, %v5312
        %v5320 = vadd.f32 %v5297, %v5312
        %v5321 = vadd.f32 %v5298, %v5312
        %v5322 = vadd.f32 %v5299, %v5312
        %v5323 = vadd.f32 %v5300, %v5312
        %v5324 = vadd.f32 %v5301, %v5312
        %v5325 = vadd.f32 %v5302, %v5312
        %v5326 = vadd.f32 %v5303, %v5312
        %v5327 = vadd.f32 %v5304, %v5312
        %v5328 = vadd.f32 %v5305, %v5312
        %v5329 = vadd.f32 %v5306, %v5312
        %v5330 = vpack.c.bf16 %v5315, %v5314
        %v5331 = vpack.c.bf16 %v5317, %v5316
        %v5332 = vpack.c.bf16 %v5319, %v5318
        %v5333 = vpack.c.bf16 %v5321, %v5320
        %v5334 = vpack.c.bf16 %v5323, %v5322
        %v5335 = vpack.c.bf16 %v5325, %v5324
        %v5336 = vpack.c.bf16 %v5327, %v5326
        %v5337 = vpack.c.bf16 %v5329, %v5328
        %v5346 = vunpack.c.l.b16 %v5330
        %v5347 = vunpack.c.h.b16 %v5330
        %v5348 = vunpack.c.l.b16 %v5331
        %v5349 = vunpack.c.h.b16 %v5331
        %v5350 = vunpack.c.l.b16 %v5332
        %v5351 = vunpack.c.h.b16 %v5332
        %v5352 = vunpack.c.l.b16 %v5333
        %v5353 = vunpack.c.h.b16 %v5333
        %v5354 = vunpack.c.l.b16 %v5334
        %v5355 = vunpack.c.h.b16 %v5334
        %v5356 = vunpack.c.l.b16 %v5335
        %v5357 = vunpack.c.h.b16 %v5335
        %v5358 = vunpack.c.l.b16 %v5336
        %v5359 = vunpack.c.h.b16 %v5336
        %v5360 = vunpack.c.l.b16 %v5337
        %v5361 = vunpack.c.h.b16 %v5337
        %v5362 = vpack.c.b16 %v5346, %v5346
        %v5363 = vpack.c.b16 %v5347, %v5347
        %v5364 = vpack.c.b16 %v5348, %v5348
        %v5365 = vpack.c.b16 %v5349, %v5349
        %v5366 = vpack.c.b16 %v5350, %v5350
        %v5367 = vpack.c.b16 %v5351, %v5351
        %v5368 = vpack.c.b16 %v5352, %v5352
        %v5369 = vpack.c.b16 %v5353, %v5353
        %v5370 = vpack.c.b16 %v5354, %v5354
        %v5371 = vpack.c.b16 %v5355, %v5355
        %v5372 = vpack.c.b16 %v5356, %v5356
        %v5373 = vpack.c.b16 %v5357, %v5357
        %v5374 = vpack.c.b16 %v5358, %v5358
        %v5375 = vpack.c.b16 %v5359, %v5359
        %v5376 = vpack.c.b16 %v5360, %v5360
        %v5377 = vpack.c.b16 %v5361, %v5361
        %5394 = vst [vmem:[%s513] sm:$0xf] %v5362
        %5395 = vst [vmem:[%s513 + $0x4] sm:$0xf] %v5363
        %5396 = vst [vmem:[%s513 + $0x8] sm:$0xf] %v5364
        %5397 = vst [vmem:[%s513 + $0xc] sm:$0xf] %v5365
        %5398 = vst [vmem:[%s513 + $0x10] sm:$0xf] %v5366
        %5399 = vst [vmem:[%s513 + $0x14] sm:$0xf] %v5367
        %5400 = vst [vmem:[%s513 + $0x18] sm:$0xf] %v5368
        %5401 = vst [vmem:[%s513 + $0x1c] sm:$0xf] %v5369
        %5402 = vst [vmem:[%s513 + $0x20] sm:$0xf] %v5370
        %5403 = vst [vmem:[%s513 + $0x24] sm:$0xf] %v5371
        %5404 = vst [vmem:[%s513 + $0x28] sm:$0xf] %v5372
        %5405 = vst [vmem:[%s513 + $0x2c] sm:$0xf] %v5373
        %5406 = vst [vmem:[%s513 + $0x30] sm:$0xf] %v5374
        %5407 = vst [vmem:[%s513 + $0x34] sm:$0xf] %v5375
        %5408 = vst [vmem:[%s513 + $0x38] sm:$0xf] %v5376
        %5409 = vst [vmem:[%s513 + $0x3c] sm:$0xf] %v5377
        %s5410 = sand.u32 %s323, 1
        %s5411 = scalar_lea.sflag [#allocation5], %s5410
        %s5412 = sand.u32 %s323, 1
        %s5413 = smul.addr %s5412, 64
        %s5414 = scalar_lea.vmem [#allocation11], %s5413
        // Predicated region
        $region89: #{tpu_custom_call.1} parent=71 // pred_check
          %p5415 = pneg %p333
        $region90: #{tpu_custom_call.1} parent=71 // pred_check_branch
          %5417 = sbr.rel (%p5415) target = $region92
        $region91: #{tpu_custom_call.1} parent=71 // pred_region
          %s5419 = ssub.s32 1024, 1024
          %5420 = vsyncadd %s5411, %s5419
          %s5421 = smul.addr %s32, 16
          %s5422 = smul.addr %s5421, 64
          %s5423 = scalar_lea.hbm %s13, %s5422
          %s5424 = sshll.u32 %s5414, 4
          %s5425 = int_to_ptr.vmem [resolvable:$true] %s5424
          %5430 = dma.vmem_to_hbm [thread:$0]  %s5425, 1024, %s5423, %s5411, 64, 64, 4
        $region92: #{tpu_custom_call.1} parent=71 // pred_fallthru
          _
      $region72: #{tpu_custom_call.1} parent=5 // pred_fallthru
        _
      %p5431 = scmp.le.s32.totalorder 2, %s27
      // Predicated region
      $region93: #{tpu_custom_call.1} parent=5 // pred_check
        %p5432 = pneg %p5431
      $region94: #{tpu_custom_call.1} parent=5 // pred_check_branch
        %5434 = sbr.rel (%p5432) target = $region96
      $region95: #{tpu_custom_call.1} parent=5 // pred_region
        %s5435 = ssub.s32 %s27, 2
        // Predicated region
        $region97: #{tpu_custom_call.1} parent=95 // pred_check
          %p5436 = pneg %p339
        $region98: #{tpu_custom_call.1} parent=95 // pred_check_branch
          %5438 = sbr.rel (%p5436) target = $region100
        $region99: #{tpu_custom_call.1} parent=95 // pred_region
          %s5439 = sand.u32 %s324, 1
          %s5440 = scalar_lea.sflag [#allocation5], %s5439
          %s5441 = sand.u32 %s324, 1
          %s5442 = smul.addr %s5441, 64
          %s5443 = scalar_lea.vmem [#allocation11], %s5442
          %5444 = dma.done %s5440, 1024
        $region100: #{tpu_custom_call.1} parent=95 // pred_fallthru
          _
      $region96: #{tpu_custom_call.1} parent=5 // pred_fallthru
        _
    $region6: #{tpu_custom_call.1} parent=1 // loop_footer
      %s31 = sadd.s32 1, %s27
    $region7: #{tpu_custom_call.1} parent=1 // loop_footer_branch
      %26 = sbr.rel target = $region3
    $region8: #{tpu_custom_call.1} parent=1 // loop_exit
      _
    %5445 = vsyncpa [#allocation4], 1
    %s5446 = scalar_lea.sflag [#allocation4], 1
    %5447 = vsyncpa %s5446, 1
    %5448 = vsyncpa [#allocation7], 1
    %5449 = vsyncpa [#allocation10], 1
    %5450 = vsyncpa [#allocation5], 1
    %s5451 = scalar_lea.sflag [#allocation5], 1
    %5452 = vsyncpa %s5451, 1

</llo_original>
